<compile_context>
chip_gen: v5e
topology: v5e:2x2
jax: 0.10.0
libtpu: 0.0.40
codegen_flags: <defaults>
</compile_context>

<pallas_src>
import functools

import jax
import jax.numpy as jnp
from jax import lax
from jax.experimental import pallas as pl
from jax.experimental.pallas import tpu as pltpu

H_PAD = 128   # hidden dim padded to one full 128-lane tile per gate
P_PAD = 128   # classifier output padded to a lane-dense 128 lanes
TB = 8        # batch tile (sublane multiple); also the batch-grid block


# ------------------------------- Pallas kernel -------------------------------

def _bilstm_kernel(emb_ref,      # (T, TB, E)   bf16  time-major embedded tokens (batch block)
                   len_ref,      # (TB, 1)      i32   valid lengths
                   wih_ref,      # (E, 8*Hp)    bf16  [W_ih_fwd | W_ih_bwd], gate order [i,f,g,o]
                   bproj_ref,    # (1, 8*Hp)    f32   [b_fwd | b_bwd] (bias_ih + bias_hh)
                   whhf_ref,     # (Hp, 4*Hp)   bf16  forward hidden weights
                   whhb_ref,     # (Hp, 4*Hp)   bf16  backward hidden weights
                   wdf_ref,      # (Hp, Pp)     bf16  dense weights for h_fwd
                   wdb_ref,      # (Hp, Pp)     bf16  dense weights for h_bwd
                   bd_ref,       # (1, Pp)      f32   dense bias
                   out_ref,      # (TB, Pp)     f32   logits (padded)
                   xf_ref,       # (T, TB, 4Hp) f32   scratch: precomputed x@W_ih_fwd + b_fwd
                   xb_ref):      # (T, TB, 4Hp) f32   scratch: precomputed x@W_ih_bwd + b_bwd
    T, B, E = emb_ref.shape
    Hp = whhf_ref.shape[0]

    # ---- phase 1: hoisted input projection (one big MXU matmul, bias folded) ----
    x_all = emb_ref[...].reshape(T * B, E)                            # bf16
    proj = jnp.dot(x_all, wih_ref[...],
                   preferred_element_type=jnp.float32) + bproj_ref[...]
    xf_ref[...] = proj[:, : 4 * Hp].reshape(T, B, 4 * Hp)
    xb_ref[...] = proj[:, 4 * Hp:].reshape(T, B, 4 * Hp)

    lengths = len_ref[...]                                            # (TB, 1) i32
    whh_f = whhf_ref[...]                                             # bf16
    whh_b = whhb_ref[...]

    def cell(gates, c):
        # gate order [i, f, g, o]; every slice is a full 128-lane tile (Hp == 128)
        i = jax.nn.sigmoid(gates[:, 0 * Hp:1 * Hp])
        f = jax.nn.sigmoid(gates[:, 1 * Hp:2 * Hp])
        g = jnp.tanh(gates[:, 2 * Hp:3 * Hp])
        o = jax.nn.sigmoid(gates[:, 3 * Hp:4 * Hp])
        c_new = f * c + i * g
        h_new = o * jnp.tanh(c_new)
        return h_new, c_new

    # ---- phase 2: fused fwd+bwd recurrence (two independent chains interleaved) ----
    def step(s, carry):
        h_f, c_f, h_b, c_b = carry
        t_b = T - 1 - s

        gates_f = xf_ref[s] + jnp.dot(h_f.astype(jnp.bfloat16), whh_f,
                                      preferred_element_type=jnp.float32)
        gates_b = xb_ref[t_b] + jnp.dot(h_b.astype(jnp.bfloat16), whh_b,
                                        preferred_element_type=jnp.float32)

        hf_new, cf_new = cell(gates_f, c_f)
        hb_new, cb_new = cell(gates_b, c_b)

        vf = lengths > s                                              # (TB, 1) bool
        vb = lengths > t_b
        h_f = jnp.where(vf, hf_new, h_f)
        c_f = jnp.where(vf, cf_new, c_f)
        h_b = jnp.where(vb, hb_new, h_b)
        c_b = jnp.where(vb, cb_new, c_b)
        return h_f, c_f, h_b, c_b

    zeros = jnp.zeros((B, Hp), jnp.float32)
    h_f, _, h_b, _ = lax.fori_loop(0, T, step, (zeros, zeros, zeros, zeros),
                                   unroll=True)

    # ---- phase 3: dense classifier (split weights avoid a lane concat) ----
    logits = (jnp.dot(h_f.astype(jnp.bfloat16), wdf_ref[...],
                      preferred_element_type=jnp.float32)
              + jnp.dot(h_b.astype(jnp.bfloat16), wdb_ref[...],
                        preferred_element_type=jnp.float32)
              + bd_ref[...])
    out_ref[...] = logits


# ------------------------------- Parameter prep -------------------------------

def _pad_gate_cols(w, h, hp):
    """(..., 4h) -> (..., 4hp): zero-pad each [i,f,g,o] gate block from h to hp lanes."""
    parts = jnp.split(w, 4, axis=-1)
    pad = [(0, 0)] * (w.ndim - 1) + [(0, hp - h)]
    return jnp.concatenate([jnp.pad(p, pad) for p in parts], axis=-1)


def prepare_params(p):
    """Pad hidden dim to 128 lanes, fuse fwd/bwd input projections, cast MXU operands to bf16."""
    H = p["whh_f"].shape[0]
    Hp = H_PAD
    P_out = p["bd"].shape[-1]

    wih = jnp.concatenate([_pad_gate_cols(p["wih_f"], H, Hp),
                           _pad_gate_cols(p["wih_b"], H, Hp)],
                          axis=-1).astype(jnp.bfloat16)                # (E, 8Hp)
    b_proj = jnp.concatenate([_pad_gate_cols(p["b_f"], H, Hp),
                              _pad_gate_cols(p["b_b"], H, Hp)],
                             axis=-1).astype(jnp.float32)              # (1, 8Hp)

    def pad_whh(w):
        w = _pad_gate_cols(w, H, Hp)                                   # (H, 4Hp)
        return jnp.pad(w, ((0, Hp - H), (0, 0))).astype(jnp.bfloat16)  # (Hp, 4Hp)

    def pad_wd(w):                                                     # (H, P) -> (Hp, Pp)
        return jnp.pad(w, ((0, Hp - H), (0, P_PAD - P_out))).astype(jnp.bfloat16)

    return {
        "wih": wih,
        "b_proj": b_proj,
        "whh_f": pad_whh(p["whh_f"]),
        "whh_b": pad_whh(p["whh_b"]),
        "wd_f": pad_wd(p["wd"][:H]),
        "wd_b": pad_wd(p["wd"][H:]),
        "bd": jnp.pad(p["bd"], ((0, 0), (0, P_PAD - P_out))).astype(jnp.float32),
    }


# ------------------------------- Wrapper --------------------------------------

@functools.partial(jax.jit, static_argnames=("num_classes",))
def bilstm_forward(indices, embedding_matrix, prepped, *, num_classes):
    """indices: (B, T) int32 token ids (0 = pad). Returns logits (B, num_classes)."""
    B, T = indices.shape
    E = embedding_matrix.shape[-1]
    Hp = H_PAD
    Bp = ((B + TB - 1) // TB) * TB

    # glue (XLA): embedding gather, length computation, time-major layout, padding
    emb = embedding_matrix[indices]                                    # (B, T, E) f32
    emb = jnp.transpose(emb, (1, 0, 2))                                # (T, B, E)
    emb = jnp.pad(emb, ((0, 0), (0, Bp - B), (0, 0))).astype(jnp.bfloat16)
    lengths = jnp.sum(indices != 0, axis=-1).astype(jnp.int32)
    lengths = jnp.pad(lengths, (0, Bp - B)).reshape(Bp, 1)

    full = lambda b: (0, 0)
    in_specs = [
        pl.BlockSpec((T, TB, E), lambda b: (0, b, 0)),                 # emb (batch-blocked)
        pl.BlockSpec((TB, 1), lambda b: (b, 0)),                       # lengths
        pl.BlockSpec((E, 8 * Hp), full),                               # wih (fused fwd|bwd)
        pl.BlockSpec((1, 8 * Hp), full),                               # b_proj
        pl.BlockSpec((Hp, 4 * Hp), full),                              # whh_f
        pl.BlockSpec((Hp, 4 * Hp), full),                              # whh_b
        pl.BlockSpec((Hp, P_PAD), full),                               # wd_f
        pl.BlockSpec((Hp, P_PAD), full),                               # wd_b
        pl.BlockSpec((1, P_PAD), full),                                # bd
    ]
    out_specs = pl.BlockSpec((TB, P_PAD), lambda b: (b, 0))

    logits_padded = pl.pallas_call(
        _bilstm_kernel,
        out_shape=jax.ShapeDtypeStruct((Bp, P_PAD), jnp.float32),
        grid=(Bp // TB,),
        in_specs=in_specs,
        out_specs=out_specs,
        scratch_shapes=[
            pltpu.VMEM((T, TB, 4 * Hp), jnp.float32),                  # fwd input projection
            pltpu.VMEM((T, TB, 4 * Hp), jnp.float32),                  # bwd input projection
        ],
        compiler_params=pltpu.CompilerParams(
            dimension_semantics=("parallel",)),                        # batch-parallel (megacore)
    )(emb, lengths, prepped["wih"], prepped["b_proj"],
      prepped["whh_f"], prepped["whh_b"],
      prepped["wd_f"], prepped["wd_b"], prepped["bd"])

    return logits_padded[:B, :num_classes]


# ------------------------------- Pure-JAX f32 reference ------------------------

def bilstm_reference(indices, embedding_matrix, p):
    emb = embedding_matrix[indices]                                    # (B, T, E)
    lengths = jnp.sum(indices != 0, axis=-1)
    B, T, _ = emb.shape
    H = p["whh_f"].shape[0]

    def cell(x_t, h, c, wih, whh, b):
        gates = x_t @ wih + h @ whh + b
        i = jax.nn.sigmoid(gates[:, :H])
        f = jax.nn.sigmoid(gates[:, H:2 * H])
        g = jnp.tanh(gates[:, 2 * H:3 * H])
        o = jax.nn.sigmoid(gates[:, 3 * H:])
        c2 = f * c + i * g
        return o * jnp.tanh(c2), c2

    h = jnp.zeros((B, H)); c = jnp.zeros((B, H))
    for t in range(T):
        h2, c2 = cell(emb[:, t], h, c, p["wih_f"], p["whh_f"], p["b_f"])
        m = (lengths > t)[:, None]
        h = jnp.where(m, h2, h); c = jnp.where(m, c2, c)
    h_f = h

    h = jnp.zeros((B, H)); c = jnp.zeros((B, H))
    for t in range(T - 1, -1, -1):
        h2, c2 = cell(emb[:, t], h, c, p["wih_b"], p["whh_b"], p["b_b"])
        m = (lengths > t)[:, None]
        h = jnp.where(m, h2, h); c = jnp.where(m, c2, c)
    h_b = h

    rep = jnp.concatenate([h_f, h_b], axis=-1)
    return rep @ p["wd"] + p["bd"]


# ------------------------------- Main ------------------------------------------

if __name__ == "__main__":
    EMBED_DIM = 300
    HIDDEN_DIM = 64
    POLARITIES_DIM = 3
    VOCAB = 20
    B, T = 2, 8

    key = jax.random.PRNGKey(0)
    keys = jax.random.split(key, 12)
    k = 1.0 / jnp.sqrt(jnp.float32(HIDDEN_DIM))

    def uni(kk, shape, scale):
        return jax.random.uniform(kk, shape, jnp.float32, -scale, scale)

    # frozen "pretrained" embedding matrix (row 0 = padding)
    emb_matrix = jax.random.normal(keys[0], (VOCAB, EMBED_DIM), jnp.float32) * 0.1
    emb_matrix = emb_matrix.at[0].set(0.0)

    params = {
        # forward direction (weights stored transposed: x @ W_ih.T -> (E, 4H)), gate order [i,f,g,o]
        "wih_f": uni(keys[1], (EMBED_DIM, 4 * HIDDEN_DIM), k),
        "whh_f": uni(keys[2], (HIDDEN_DIM, 4 * HIDDEN_DIM), k),
        "b_f": uni(keys[3], (1, 4 * HIDDEN_DIM), k),
        # backward direction
        "wih_b": uni(keys[4], (EMBED_DIM, 4 * HIDDEN_DIM), k),
        "whh_b": uni(keys[5], (HIDDEN_DIM, 4 * HIDDEN_DIM), k),
        "b_b": uni(keys[6], (1, 4 * HIDDEN_DIM), k),
        # dense classifier
        "wd": uni(keys[7], (2 * HIDDEN_DIM, POLARITIES_DIM), k),
        "bd": uni(keys[8], (1, POLARITIES_DIM), k),
    }

    # token ids with trailing zero padding (lengths 8 and 5)
    raw = jax.random.randint(keys[9], (B, T), 1, VOCAB, dtype=jnp.int32)
    lens = jnp.array([T, 5], dtype=jnp.int32)
    pos = jnp.arange(T, dtype=jnp.int32)[None, :]
    indices = jnp.where(pos < lens[:, None], raw, 0)

    prepped = prepare_params(params)
    logits = bilstm_forward(indices, emb_matrix, prepped, num_classes=POLARITIES_DIM)
    jax.block_until_ready(logits)

    ref = bilstm_reference(indices, emb_matrix, params)
    assert logits.shape == (B, POLARITIES_DIM)
    # tolerance accounts for bf16 MXU operands in the kernel vs the pure-f32 reference
    assert jnp.allclose(logits, ref, atol=1e-2, rtol=1e-2), (logits, ref)

    print("KERNEL_OK")
</pallas_src>

<mosaic_0001>
module attributes {stable_mosaic.version = 11 : i64} {
  func.func @_bilstm_kernel(%arg0: i32, %arg1: memref<8x8x300xbf16, #tpu.memory_space<vmem>>, %arg2: memref<8x1xi32, #tpu.memory_space<vmem>>, %arg3: memref<300x1024xbf16, #tpu.memory_space<vmem>>, %arg4: memref<1x1024xf32, #tpu.memory_space<vmem>>, %arg5: memref<128x512xbf16, #tpu.memory_space<vmem>>, %arg6: memref<128x512xbf16, #tpu.memory_space<vmem>>, %arg7: memref<128x128xbf16, #tpu.memory_space<vmem>>, %arg8: memref<128x128xbf16, #tpu.memory_space<vmem>>, %arg9: memref<1x128xf32, #tpu.memory_space<vmem>>, %arg10: memref<8x128xf32, #tpu.memory_space<vmem>>, %arg11: memref<8x8x512xf32, #tpu.memory_space<vmem>>, %arg12: memref<8x8x512xf32, #tpu.memory_space<vmem>>) attributes {dimension_semantics = [#tpu.dimension_semantics<parallel>], iteration_bounds = array<i64: 1>, scalar_prefetch = 0 : i64, scratch_operands = 2 : i64, tpu.core_type = #tpu.core_type<tc>, window_params = [{transform_indices = @transform_0, window_bounds = array<i64: 8, 8, 300>}, {transform_indices = @transform_1, window_bounds = array<i64: 8, 1>}, {pipeline_mode = #tpu.pipeline_mode<synchronous>, transform_indices = @transform_2, window_bounds = array<i64: 300, 1024>}, {pipeline_mode = #tpu.pipeline_mode<synchronous>, transform_indices = @transform_3, window_bounds = array<i64: 1, 1024>}, {pipeline_mode = #tpu.pipeline_mode<synchronous>, transform_indices = @transform_4, window_bounds = array<i64: 128, 512>}, {pipeline_mode = #tpu.pipeline_mode<synchronous>, transform_indices = @transform_5, window_bounds = array<i64: 128, 512>}, {pipeline_mode = #tpu.pipeline_mode<synchronous>, transform_indices = @transform_6, window_bounds = array<i64: 128, 128>}, {pipeline_mode = #tpu.pipeline_mode<synchronous>, transform_indices = @transform_7, window_bounds = array<i64: 128, 128>}, {pipeline_mode = #tpu.pipeline_mode<synchronous>, transform_indices = @transform_8, window_bounds = array<i64: 1, 128>}, {transform_indices = @transform_9, window_bounds = array<i64: 8, 128>}]} {
    %c0 = arith.constant 0 : index
    %c0_0 = arith.constant 0 : index
    %c0_1 = arith.constant 0 : index
    %0 = vector.load %arg1[%c0, %c0_0, %c0_1] : memref<8x8x300xbf16, #tpu.memory_space<vmem>>, vector<8x8x300xbf16>
    %1 = vector.shape_cast %0 : vector<8x8x300xbf16> to vector<64x300xbf16>
    %c0_2 = arith.constant 0 : index
    %c0_3 = arith.constant 0 : index
    %2 = vector.load %arg3[%c0_2, %c0_3] : memref<300x1024xbf16, #tpu.memory_space<vmem>>, vector<300x1024xbf16>
    %cst = arith.constant dense<0.000000e+00> : vector<64x1024xf32>
    %3 = tpu.matmul %1, %2, %cst {dimension_numbers = #tpu.dot_dimension_numbers<[1], [0], [0], [1], [0, 0, 1, 1], [], []>} : vector<64x300xbf16>, vector<300x1024xbf16>, vector<64x1024xf32> -> vector<64x1024xf32>
    %c0_4 = arith.constant 0 : index
    %c0_5 = arith.constant 0 : index
    %4 = vector.load %arg4[%c0_4, %c0_5] : memref<1x1024xf32, #tpu.memory_space<vmem>>, vector<1x1024xf32>
    %5 = vector.broadcast %4 : vector<1x1024xf32> to vector<64x1024xf32>
    %6 = arith.addf %3, %5 : vector<64x1024xf32>
    %7 = vector.extract_strided_slice %6 {offsets = [0, 0], sizes = [64, 512], strides = [1, 1]} : vector<64x1024xf32> to vector<64x512xf32>
    %8 = vector.shape_cast %7 : vector<64x512xf32> to vector<8x8x512xf32>
    %c0_6 = arith.constant 0 : index
    %c0_7 = arith.constant 0 : index
    %c0_8 = arith.constant 0 : index
    %9 = vector.load %arg11[%c0_6, %c0_7, %c0_8] : memref<8x8x512xf32, #tpu.memory_space<vmem>>, vector<8x8x512xf32>
    tpu.vector_store %arg11[%c0_6, %c0_7, %c0_8], %8 {strides = array<i32>} : memref<8x8x512xf32, #tpu.memory_space<vmem>>, vector<8x8x512xf32>,
    %10 = vector.extract_strided_slice %6 {offsets = [0, 512], sizes = [64, 512], strides = [1, 1]} : vector<64x1024xf32> to vector<64x512xf32>
    %11 = vector.shape_cast %10 : vector<64x512xf32> to vector<8x8x512xf32>
    %c0_9 = arith.constant 0 : index
    %c0_10 = arith.constant 0 : index
    %c0_11 = arith.constant 0 : index
    %12 = vector.load %arg12[%c0_9, %c0_10, %c0_11] : memref<8x8x512xf32, #tpu.memory_space<vmem>>, vector<8x8x512xf32>
    tpu.vector_store %arg12[%c0_9, %c0_10, %c0_11], %11 {strides = array<i32>} : memref<8x8x512xf32, #tpu.memory_space<vmem>>, vector<8x8x512xf32>,
    %c0_12 = arith.constant 0 : index
    %c0_13 = arith.constant 0 : index
    %13 = vector.load %arg2[%c0_12, %c0_13] : memref<8x1xi32, #tpu.memory_space<vmem>>, vector<8x1xi32>
    %c0_14 = arith.constant 0 : index
    %c0_15 = arith.constant 0 : index
    %14 = vector.load %arg5[%c0_14, %c0_15] : memref<128x512xbf16, #tpu.memory_space<vmem>>, vector<128x512xbf16>
    %c0_16 = arith.constant 0 : index
    %c0_17 = arith.constant 0 : index
    %15 = vector.load %arg6[%c0_16, %c0_17] : memref<128x512xbf16, #tpu.memory_space<vmem>>, vector<128x512xbf16>
    %cst_18 = arith.constant 0.000000e+00 : f32
    %16 = vector.broadcast %cst_18 : f32 to vector<8x128xf32>
    %c0_i32 = arith.constant 0 : i32
    %c7_i32 = arith.constant 7 : i32
    %17 = arith.subi %c7_i32, %c0_i32 : i32
    %18 = arith.index_cast %c0_i32 : i32 to index
    %c0_19 = arith.constant 0 : index
    %c0_20 = arith.constant 0 : index
    %19 = vector.load %arg11[%18, %c0_19, %c0_20] : memref<8x8x512xf32, #tpu.memory_space<vmem>>, vector<1x8x512xf32>
    %20 = vector.shape_cast %19 : vector<1x8x512xf32> to vector<8x512xf32>
    %21 = arith.truncf %16 : vector<8x128xf32> to vector<8x128xbf16>
    %cst_21 = arith.constant dense<0.000000e+00> : vector<8x512xf32>
    %22 = tpu.matmul %21, %14, %cst_21 {dimension_numbers = #tpu.dot_dimension_numbers<[1], [0], [0], [1], [0, 0, 1, 1], [], []>} : vector<8x128xbf16>, vector<128x512xbf16>, vector<8x512xf32> -> vector<8x512xf32>
    %23 = arith.addf %20, %22 : vector<8x512xf32>
    %24 = arith.index_cast %17 : i32 to index
    %c0_22 = arith.constant 0 : index
    %c0_23 = arith.constant 0 : index
    %25 = vector.load %arg12[%24, %c0_22, %c0_23] : memref<8x8x512xf32, #tpu.memory_space<vmem>>, vector<1x8x512xf32>
    %26 = vector.shape_cast %25 : vector<1x8x512xf32> to vector<8x512xf32>
    %27 = arith.truncf %16 : vector<8x128xf32> to vector<8x128xbf16>
    %cst_24 = arith.constant dense<0.000000e+00> : vector<8x512xf32>
    %28 = tpu.matmul %27, %15, %cst_24 {dimension_numbers = #tpu.dot_dimension_numbers<[1], [0], [0], [1], [0, 0, 1, 1], [], []>} : vector<8x128xbf16>, vector<128x512xbf16>, vector<8x512xf32> -> vector<8x512xf32>
    %29 = arith.addf %26, %28 : vector<8x512xf32>
    %30 = vector.extract_strided_slice %23 {offsets = [0, 0], sizes = [8, 128], strides = [1, 1]} : vector<8x512xf32> to vector<8x128xf32>
    %31 = arith.negf %30 : vector<8x128xf32>
    %32 = math.exp %31 : vector<8x128xf32>
    %cst_25 = arith.constant 1.000000e+00 : f32
    %33 = vector.broadcast %cst_25 : f32 to vector<8x128xf32>
    %34 = arith.addf %33, %32 : vector<8x128xf32>
    %35 = arith.divf %33, %34 : vector<8x128xf32>
    %36 = vector.extract_strided_slice %23 {offsets = [0, 128], sizes = [8, 128], strides = [1, 1]} : vector<8x512xf32> to vector<8x128xf32>
    %37 = arith.negf %36 : vector<8x128xf32>
    %38 = math.exp %37 : vector<8x128xf32>
    %cst_26 = arith.constant 1.000000e+00 : f32
    %39 = vector.broadcast %cst_26 : f32 to vector<8x128xf32>
    %40 = arith.addf %39, %38 : vector<8x128xf32>
    %41 = arith.divf %39, %40 : vector<8x128xf32>
    %42 = vector.extract_strided_slice %23 {offsets = [0, 256], sizes = [8, 128], strides = [1, 1]} : vector<8x512xf32> to vector<8x128xf32>
    %43 = math.tanh %42 : vector<8x128xf32>
    %44 = vector.extract_strided_slice %23 {offsets = [0, 384], sizes = [8, 128], strides = [1, 1]} : vector<8x512xf32> to vector<8x128xf32>
    %45 = arith.negf %44 : vector<8x128xf32>
    %46 = math.exp %45 : vector<8x128xf32>
    %cst_27 = arith.constant 1.000000e+00 : f32
    %47 = vector.broadcast %cst_27 : f32 to vector<8x128xf32>
    %48 = arith.addf %47, %46 : vector<8x128xf32>
    %49 = arith.divf %47, %48 : vector<8x128xf32>
    %50 = arith.mulf %41, %16 : vector<8x128xf32>
    %51 = arith.mulf %35, %43 : vector<8x128xf32>
    %52 = arith.addf %50, %51 : vector<8x128xf32>
    %53 = math.tanh %52 : vector<8x128xf32>
    %54 = arith.mulf %49, %53 : vector<8x128xf32>
    %55 = vector.extract_strided_slice %29 {offsets = [0, 0], sizes = [8, 128], strides = [1, 1]} : vector<8x512xf32> to vector<8x128xf32>
    %56 = arith.negf %55 : vector<8x128xf32>
    %57 = math.exp %56 : vector<8x128xf32>
    %cst_28 = arith.constant 1.000000e+00 : f32
    %58 = vector.broadcast %cst_28 : f32 to vector<8x128xf32>
    %59 = arith.addf %58, %57 : vector<8x128xf32>
    %60 = arith.divf %58, %59 : vector<8x128xf32>
    %61 = vector.extract_strided_slice %29 {offsets = [0, 128], sizes = [8, 128], strides = [1, 1]} : vector<8x512xf32> to vector<8x128xf32>
    %62 = arith.negf %61 : vector<8x128xf32>
    %63 = math.exp %62 : vector<8x128xf32>
    %cst_29 = arith.constant 1.000000e+00 : f32
    %64 = vector.broadcast %cst_29 : f32 to vector<8x128xf32>
    %65 = arith.addf %64, %63 : vector<8x128xf32>
    %66 = arith.divf %64, %65 : vector<8x128xf32>
    %67 = vector.extract_strided_slice %29 {offsets = [0, 256], sizes = [8, 128], strides = [1, 1]} : vector<8x512xf32> to vector<8x128xf32>
    %68 = math.tanh %67 : vector<8x128xf32>
    %69 = vector.extract_strided_slice %29 {offsets = [0, 384], sizes = [8, 128], strides = [1, 1]} : vector<8x512xf32> to vector<8x128xf32>
    %70 = arith.negf %69 : vector<8x128xf32>
    %71 = math.exp %70 : vector<8x128xf32>
    %cst_30 = arith.constant 1.000000e+00 : f32
    %72 = vector.broadcast %cst_30 : f32 to vector<8x128xf32>
    %73 = arith.addf %72, %71 : vector<8x128xf32>
    %74 = arith.divf %72, %73 : vector<8x128xf32>
    %75 = arith.mulf %66, %16 : vector<8x128xf32>
    %76 = arith.mulf %60, %68 : vector<8x128xf32>
    %77 = arith.addf %75, %76 : vector<8x128xf32>
    %78 = math.tanh %77 : vector<8x128xf32>
    %79 = arith.mulf %74, %78 : vector<8x128xf32>
    %80 = vector.broadcast %c0_i32 : i32 to vector<8x1xi32>
    %81 = arith.cmpi sgt, %13, %80 : vector<8x1xi32>
    %82 = vector.broadcast %17 : i32 to vector<8x1xi32>
    %83 = arith.cmpi sgt, %13, %82 : vector<8x1xi32>
    %84 = vector.shape_cast %81 : vector<8x1xi1> to vector<8x1xi1>
    %85 = vector.broadcast %84 : vector<8x1xi1> to vector<8x128xi1>
    %86 = arith.select %85, %54, %16 : vector<8x128xi1>, vector<8x128xf32>
    %87 = vector.shape_cast %81 : vector<8x1xi1> to vector<8x1xi1>
    %88 = vector.broadcast %87 : vector<8x1xi1> to vector<8x128xi1>
    %89 = arith.select %88, %52, %16 : vector<8x128xi1>, vector<8x128xf32>
    %90 = vector.shape_cast %83 : vector<8x1xi1> to vector<8x1xi1>
    %91 = vector.broadcast %90 : vector<8x1xi1> to vector<8x128xi1>
    %92 = arith.select %91, %79, %16 : vector<8x128xi1>, vector<8x128xf32>
    %93 = vector.shape_cast %83 : vector<8x1xi1> to vector<8x1xi1>
    %94 = vector.broadcast %93 : vector<8x1xi1> to vector<8x128xi1>
    %95 = arith.select %94, %77, %16 : vector<8x128xi1>, vector<8x128xf32>
    %c1_i32 = arith.constant 1 : i32
    %c7_i32_31 = arith.constant 7 : i32
    %96 = arith.subi %c7_i32_31, %c1_i32 : i32
    %97 = arith.index_cast %c1_i32 : i32 to index
    %c0_32 = arith.constant 0 : index
    %c0_33 = arith.constant 0 : index
    %98 = vector.load %arg11[%97, %c0_32, %c0_33] : memref<8x8x512xf32, #tpu.memory_space<vmem>>, vector<1x8x512xf32>
    %99 = vector.shape_cast %98 : vector<1x8x512xf32> to vector<8x512xf32>
    %100 = arith.truncf %86 : vector<8x128xf32> to vector<8x128xbf16>
    %cst_34 = arith.constant dense<0.000000e+00> : vector<8x512xf32>
    %101 = tpu.matmul %100, %14, %cst_34 {dimension_numbers = #tpu.dot_dimension_numbers<[1], [0], [0], [1], [0, 0, 1, 1], [], []>} : vector<8x128xbf16>, vector<128x512xbf16>, vector<8x512xf32> -> vector<8x512xf32>
    %102 = arith.addf %99, %101 : vector<8x512xf32>
    %103 = arith.index_cast %96 : i32 to index
    %c0_35 = arith.constant 0 : index
    %c0_36 = arith.constant 0 : index
    %104 = vector.load %arg12[%103, %c0_35, %c0_36] : memref<8x8x512xf32, #tpu.memory_space<vmem>>, vector<1x8x512xf32>
    %105 = vector.shape_cast %104 : vector<1x8x512xf32> to vector<8x512xf32>
    %106 = arith.truncf %92 : vector<8x128xf32> to vector<8x128xbf16>
    %cst_37 = arith.constant dense<0.000000e+00> : vector<8x512xf32>
    %107 = tpu.matmul %106, %15, %cst_37 {dimension_numbers = #tpu.dot_dimension_numbers<[1], [0], [0], [1], [0, 0, 1, 1], [], []>} : vector<8x128xbf16>, vector<128x512xbf16>, vector<8x512xf32> -> vector<8x512xf32>
    %108 = arith.addf %105, %107 : vector<8x512xf32>
    %109 = vector.extract_strided_slice %102 {offsets = [0, 0], sizes = [8, 128], strides = [1, 1]} : vector<8x512xf32> to vector<8x128xf32>
    %110 = arith.negf %109 : vector<8x128xf32>
    %111 = math.exp %110 : vector<8x128xf32>
    %cst_38 = arith.constant 1.000000e+00 : f32
    %112 = vector.broadcast %cst_38 : f32 to vector<8x128xf32>
    %113 = arith.addf %112, %111 : vector<8x128xf32>
    %114 = arith.divf %112, %113 : vector<8x128xf32>
    %115 = vector.extract_strided_slice %102 {offsets = [0, 128], sizes = [8, 128], strides = [1, 1]} : vector<8x512xf32> to vector<8x128xf32>
    %116 = arith.negf %115 : vector<8x128xf32>
    %117 = math.exp %116 : vector<8x128xf32>
    %cst_39 = arith.constant 1.000000e+00 : f32
    %118 = vector.broadcast %cst_39 : f32 to vector<8x128xf32>
    %119 = arith.addf %118, %117 : vector<8x128xf32>
    %120 = arith.divf %118, %119 : vector<8x128xf32>
    %121 = vector.extract_strided_slice %102 {offsets = [0, 256], sizes = [8, 128], strides = [1, 1]} : vector<8x512xf32> to vector<8x128xf32>
    %122 = math.tanh %121 : vector<8x128xf32>
    %123 = vector.extract_strided_slice %102 {offsets = [0, 384], sizes = [8, 128], strides = [1, 1]} : vector<8x512xf32> to vector<8x128xf32>
    %124 = arith.negf %123 : vector<8x128xf32>
    %125 = math.exp %124 : vector<8x128xf32>
    %cst_40 = arith.constant 1.000000e+00 : f32
    %126 = vector.broadcast %cst_40 : f32 to vector<8x128xf32>
    %127 = arith.addf %126, %125 : vector<8x128xf32>
    %128 = arith.divf %126, %127 : vector<8x128xf32>
    %129 = arith.mulf %120, %89 : vector<8x128xf32>
    %130 = arith.mulf %114, %122 : vector<8x128xf32>
    %131 = arith.addf %129, %130 : vector<8x128xf32>
    %132 = math.tanh %131 : vector<8x128xf32>
    %133 = arith.mulf %128, %132 : vector<8x128xf32>
    %134 = vector.extract_strided_slice %108 {offsets = [0, 0], sizes = [8, 128], strides = [1, 1]} : vector<8x512xf32> to vector<8x128xf32>
    %135 = arith.negf %134 : vector<8x128xf32>
    %136 = math.exp %135 : vector<8x128xf32>
    %cst_41 = arith.constant 1.000000e+00 : f32
    %137 = vector.broadcast %cst_41 : f32 to vector<8x128xf32>
    %138 = arith.addf %137, %136 : vector<8x128xf32>
    %139 = arith.divf %137, %138 : vector<8x128xf32>
    %140 = vector.extract_strided_slice %108 {offsets = [0, 128], sizes = [8, 128], strides = [1, 1]} : vector<8x512xf32> to vector<8x128xf32>
    %141 = arith.negf %140 : vector<8x128xf32>
    %142 = math.exp %141 : vector<8x128xf32>
    %cst_42 = arith.constant 1.000000e+00 : f32
    %143 = vector.broadcast %cst_42 : f32 to vector<8x128xf32>
    %144 = arith.addf %143, %142 : vector<8x128xf32>
    %145 = arith.divf %143, %144 : vector<8x128xf32>
    %146 = vector.extract_strided_slice %108 {offsets = [0, 256], sizes = [8, 128], strides = [1, 1]} : vector<8x512xf32> to vector<8x128xf32>
    %147 = math.tanh %146 : vector<8x128xf32>
    %148 = vector.extract_strided_slice %108 {offsets = [0, 384], sizes = [8, 128], strides = [1, 1]} : vector<8x512xf32> to vector<8x128xf32>
    %149 = arith.negf %148 : vector<8x128xf32>
    %150 = math.exp %149 : vector<8x128xf32>
    %cst_43 = arith.constant 1.000000e+00 : f32
    %151 = vector.broadcast %cst_43 : f32 to vector<8x128xf32>
    %152 = arith.addf %151, %150 : vector<8x128xf32>
    %153 = arith.divf %151, %152 : vector<8x128xf32>
    %154 = arith.mulf %145, %95 : vector<8x128xf32>
    %155 = arith.mulf %139, %147 : vector<8x128xf32>
    %156 = arith.addf %154, %155 : vector<8x128xf32>
    %157 = math.tanh %156 : vector<8x128xf32>
    %158 = arith.mulf %153, %157 : vector<8x128xf32>
    %159 = vector.broadcast %c1_i32 : i32 to vector<8x1xi32>
    %160 = arith.cmpi sgt, %13, %159 : vector<8x1xi32>
    %161 = vector.broadcast %96 : i32 to vector<8x1xi32>
    %162 = arith.cmpi sgt, %13, %161 : vector<8x1xi32>
    %163 = vector.shape_cast %160 : vector<8x1xi1> to vector<8x1xi1>
    %164 = vector.broadcast %163 : vector<8x1xi1> to vector<8x128xi1>
    %165 = arith.select %164, %133, %86 : vector<8x128xi1>, vector<8x128xf32>
    %166 = vector.shape_cast %160 : vector<8x1xi1> to vector<8x1xi1>
    %167 = vector.broadcast %166 : vector<8x1xi1> to vector<8x128xi1>
    %168 = arith.select %167, %131, %89 : vector<8x128xi1>, vector<8x128xf32>
    %169 = vector.shape_cast %162 : vector<8x1xi1> to vector<8x1xi1>
    %170 = vector.broadcast %169 : vector<8x1xi1> to vector<8x128xi1>
    %171 = arith.select %170, %158, %92 : vector<8x128xi1>, vector<8x128xf32>
    %172 = vector.shape_cast %162 : vector<8x1xi1> to vector<8x1xi1>
    %173 = vector.broadcast %172 : vector<8x1xi1> to vector<8x128xi1>
    %174 = arith.select %173, %156, %95 : vector<8x128xi1>, vector<8x128xf32>
    %c2_i32 = arith.constant 2 : i32
    %c7_i32_44 = arith.constant 7 : i32
    %175 = arith.subi %c7_i32_44, %c2_i32 : i32
    %176 = arith.index_cast %c2_i32 : i32 to index
    %c0_45 = arith.constant 0 : index
    %c0_46 = arith.constant 0 : index
    %177 = vector.load %arg11[%176, %c0_45, %c0_46] : memref<8x8x512xf32, #tpu.memory_space<vmem>>, vector<1x8x512xf32>
    %178 = vector.shape_cast %177 : vector<1x8x512xf32> to vector<8x512xf32>
    %179 = arith.truncf %165 : vector<8x128xf32> to vector<8x128xbf16>
    %cst_47 = arith.constant dense<0.000000e+00> : vector<8x512xf32>
    %180 = tpu.matmul %179, %14, %cst_47 {dimension_numbers = #tpu.dot_dimension_numbers<[1], [0], [0], [1], [0, 0, 1, 1], [], []>} : vector<8x128xbf16>, vector<128x512xbf16>, vector<8x512xf32> -> vector<8x512xf32>
    %181 = arith.addf %178, %180 : vector<8x512xf32>
    %182 = arith.index_cast %175 : i32 to index
    %c0_48 = arith.constant 0 : index
    %c0_49 = arith.constant 0 : index
    %183 = vector.load %arg12[%182, %c0_48, %c0_49] : memref<8x8x512xf32, #tpu.memory_space<vmem>>, vector<1x8x512xf32>
    %184 = vector.shape_cast %183 : vector<1x8x512xf32> to vector<8x512xf32>
    %185 = arith.truncf %171 : vector<8x128xf32> to vector<8x128xbf16>
    %cst_50 = arith.constant dense<0.000000e+00> : vector<8x512xf32>
    %186 = tpu.matmul %185, %15, %cst_50 {dimension_numbers = #tpu.dot_dimension_numbers<[1], [0], [0], [1], [0, 0, 1, 1], [], []>} : vector<8x128xbf16>, vector<128x512xbf16>, vector<8x512xf32> -> vector<8x512xf32>
    %187 = arith.addf %184, %186 : vector<8x512xf32>
    %188 = vector.extract_strided_slice %181 {offsets = [0, 0], sizes = [8, 128], strides = [1, 1]} : vector<8x512xf32> to vector<8x128xf32>
    %189 = arith.negf %188 : vector<8x128xf32>
    %190 = math.exp %189 : vector<8x128xf32>
    %cst_51 = arith.constant 1.000000e+00 : f32
    %191 = vector.broadcast %cst_51 : f32 to vector<8x128xf32>
    %192 = arith.addf %191, %190 : vector<8x128xf32>
    %193 = arith.divf %191, %192 : vector<8x128xf32>
    %194 = vector.extract_strided_slice %181 {offsets = [0, 128], sizes = [8, 128], strides = [1, 1]} : vector<8x512xf32> to vector<8x128xf32>
    %195 = arith.negf %194 : vector<8x128xf32>
    %196 = math.exp %195 : vector<8x128xf32>
    %cst_52 = arith.constant 1.000000e+00 : f32
    %197 = vector.broadcast %cst_52 : f32 to vector<8x128xf32>
    %198 = arith.addf %197, %196 : vector<8x128xf32>
    %199 = arith.divf %197, %198 : vector<8x128xf32>
    %200 = vector.extract_strided_slice %181 {offsets = [0, 256], sizes = [8, 128], strides = [1, 1]} : vector<8x512xf32> to vector<8x128xf32>
    %201 = math.tanh %200 : vector<8x128xf32>
    %202 = vector.extract_strided_slice %181 {offsets = [0, 384], sizes = [8, 128], strides = [1, 1]} : vector<8x512xf32> to vector<8x128xf32>
    %203 = arith.negf %202 : vector<8x128xf32>
    %204 = math.exp %203 : vector<8x128xf32>
    %cst_53 = arith.constant 1.000000e+00 : f32
    %205 = vector.broadcast %cst_53 : f32 to vector<8x128xf32>
    %206 = arith.addf %205, %204 : vector<8x128xf32>
    %207 = arith.divf %205, %206 : vector<8x128xf32>
    %208 = arith.mulf %199, %168 : vector<8x128xf32>
    %209 = arith.mulf %193, %201 : vector<8x128xf32>
    %210 = arith.addf %208, %209 : vector<8x128xf32>
    %211 = math.tanh %210 : vector<8x128xf32>
    %212 = arith.mulf %207, %211 : vector<8x128xf32>
    %213 = vector.extract_strided_slice %187 {offsets = [0, 0], sizes = [8, 128], strides = [1, 1]} : vector<8x512xf32> to vector<8x128xf32>
    %214 = arith.negf %213 : vector<8x128xf32>
    %215 = math.exp %214 : vector<8x128xf32>
    %cst_54 = arith.constant 1.000000e+00 : f32
    %216 = vector.broadcast %cst_54 : f32 to vector<8x128xf32>
    %217 = arith.addf %216, %215 : vector<8x128xf32>
    %218 = arith.divf %216, %217 : vector<8x128xf32>
    %219 = vector.extract_strided_slice %187 {offsets = [0, 128], sizes = [8, 128], strides = [1, 1]} : vector<8x512xf32> to vector<8x128xf32>
    %220 = arith.negf %219 : vector<8x128xf32>
    %221 = math.exp %220 : vector<8x128xf32>
    %cst_55 = arith.constant 1.000000e+00 : f32
    %222 = vector.broadcast %cst_55 : f32 to vector<8x128xf32>
    %223 = arith.addf %222, %221 : vector<8x128xf32>
    %224 = arith.divf %222, %223 : vector<8x128xf32>
    %225 = vector.extract_strided_slice %187 {offsets = [0, 256], sizes = [8, 128], strides = [1, 1]} : vector<8x512xf32> to vector<8x128xf32>
    %226 = math.tanh %225 : vector<8x128xf32>
    %227 = vector.extract_strided_slice %187 {offsets = [0, 384], sizes = [8, 128], strides = [1, 1]} : vector<8x512xf32> to vector<8x128xf32>
    %228 = arith.negf %227 : vector<8x128xf32>
    %229 = math.exp %228 : vector<8x128xf32>
    %cst_56 = arith.constant 1.000000e+00 : f32
    %230 = vector.broadcast %cst_56 : f32 to vector<8x128xf32>
    %231 = arith.addf %230, %229 : vector<8x128xf32>
    %232 = arith.divf %230, %231 : vector<8x128xf32>
    %233 = arith.mulf %224, %174 : vector<8x128xf32>
    %234 = arith.mulf %218, %226 : vector<8x128xf32>
    %235 = arith.addf %233, %234 : vector<8x128xf32>
    %236 = math.tanh %235 : vector<8x128xf32>
    %237 = arith.mulf %232, %236 : vector<8x128xf32>
    %238 = vector.broadcast %c2_i32 : i32 to vector<8x1xi32>
    %239 = arith.cmpi sgt, %13, %238 : vector<8x1xi32>
    %240 = vector.broadcast %175 : i32 to vector<8x1xi32>
    %241 = arith.cmpi sgt, %13, %240 : vector<8x1xi32>
    %242 = vector.shape_cast %239 : vector<8x1xi1> to vector<8x1xi1>
    %243 = vector.broadcast %242 : vector<8x1xi1> to vector<8x128xi1>
    %244 = arith.select %243, %212, %165 : vector<8x128xi1>, vector<8x128xf32>
    %245 = vector.shape_cast %239 : vector<8x1xi1> to vector<8x1xi1>
    %246 = vector.broadcast %245 : vector<8x1xi1> to vector<8x128xi1>
    %247 = arith.select %246, %210, %168 : vector<8x128xi1>, vector<8x128xf32>
    %248 = vector.shape_cast %241 : vector<8x1xi1> to vector<8x1xi1>
    %249 = vector.broadcast %248 : vector<8x1xi1> to vector<8x128xi1>
    %250 = arith.select %249, %237, %171 : vector<8x128xi1>, vector<8x128xf32>
    %251 = vector.shape_cast %241 : vector<8x1xi1> to vector<8x1xi1>
    %252 = vector.broadcast %251 : vector<8x1xi1> to vector<8x128xi1>
    %253 = arith.select %252, %235, %174 : vector<8x128xi1>, vector<8x128xf32>
    %c3_i32 = arith.constant 3 : i32
    %c7_i32_57 = arith.constant 7 : i32
    %254 = arith.subi %c7_i32_57, %c3_i32 : i32
    %255 = arith.index_cast %c3_i32 : i32 to index
    %c0_58 = arith.constant 0 : index
    %c0_59 = arith.constant 0 : index
    %256 = vector.load %arg11[%255, %c0_58, %c0_59] : memref<8x8x512xf32, #tpu.memory_space<vmem>>, vector<1x8x512xf32>
    %257 = vector.shape_cast %256 : vector<1x8x512xf32> to vector<8x512xf32>
    %258 = arith.truncf %244 : vector<8x128xf32> to vector<8x128xbf16>
    %cst_60 = arith.constant dense<0.000000e+00> : vector<8x512xf32>
    %259 = tpu.matmul %258, %14, %cst_60 {dimension_numbers = #tpu.dot_dimension_numbers<[1], [0], [0], [1], [0, 0, 1, 1], [], []>} : vector<8x128xbf16>, vector<128x512xbf16>, vector<8x512xf32> -> vector<8x512xf32>
    %260 = arith.addf %257, %259 : vector<8x512xf32>
    %261 = arith.index_cast %254 : i32 to index
    %c0_61 = arith.constant 0 : index
    %c0_62 = arith.constant 0 : index
    %262 = vector.load %arg12[%261, %c0_61, %c0_62] : memref<8x8x512xf32, #tpu.memory_space<vmem>>, vector<1x8x512xf32>
    %263 = vector.shape_cast %262 : vector<1x8x512xf32> to vector<8x512xf32>
    %264 = arith.truncf %250 : vector<8x128xf32> to vector<8x128xbf16>
    %cst_63 = arith.constant dense<0.000000e+00> : vector<8x512xf32>
    %265 = tpu.matmul %264, %15, %cst_63 {dimension_numbers = #tpu.dot_dimension_numbers<[1], [0], [0], [1], [0, 0, 1, 1], [], []>} : vector<8x128xbf16>, vector<128x512xbf16>, vector<8x512xf32> -> vector<8x512xf32>
    %266 = arith.addf %263, %265 : vector<8x512xf32>
    %267 = vector.extract_strided_slice %260 {offsets = [0, 0], sizes = [8, 128], strides = [1, 1]} : vector<8x512xf32> to vector<8x128xf32>
    %268 = arith.negf %267 : vector<8x128xf32>
    %269 = math.exp %268 : vector<8x128xf32>
    %cst_64 = arith.constant 1.000000e+00 : f32
    %270 = vector.broadcast %cst_64 : f32 to vector<8x128xf32>
    %271 = arith.addf %270, %269 : vector<8x128xf32>
    %272 = arith.divf %270, %271 : vector<8x128xf32>
    %273 = vector.extract_strided_slice %260 {offsets = [0, 128], sizes = [8, 128], strides = [1, 1]} : vector<8x512xf32> to vector<8x128xf32>
    %274 = arith.negf %273 : vector<8x128xf32>
    %275 = math.exp %274 : vector<8x128xf32>
    %cst_65 = arith.constant 1.000000e+00 : f32
    %276 = vector.broadcast %cst_65 : f32 to vector<8x128xf32>
    %277 = arith.addf %276, %275 : vector<8x128xf32>
    %278 = arith.divf %276, %277 : vector<8x128xf32>
    %279 = vector.extract_strided_slice %260 {offsets = [0, 256], sizes = [8, 128], strides = [1, 1]} : vector<8x512xf32> to vector<8x128xf32>
    %280 = math.tanh %279 : vector<8x128xf32>
    %281 = vector.extract_strided_slice %260 {offsets = [0, 384], sizes = [8, 128], strides = [1, 1]} : vector<8x512xf32> to vector<8x128xf32>
    %282 = arith.negf %281 : vector<8x128xf32>
    %283 = math.exp %282 : vector<8x128xf32>
    %cst_66 = arith.constant 1.000000e+00 : f32
    %284 = vector.broadcast %cst_66 : f32 to vector<8x128xf32>
    %285 = arith.addf %284, %283 : vector<8x128xf32>
    %286 = arith.divf %284, %285 : vector<8x128xf32>
    %287 = arith.mulf %278, %247 : vector<8x128xf32>
    %288 = arith.mulf %272, %280 : vector<8x128xf32>
    %289 = arith.addf %287, %288 : vector<8x128xf32>
    %290 = math.tanh %289 : vector<8x128xf32>
    %291 = arith.mulf %286, %290 : vector<8x128xf32>
    %292 = vector.extract_strided_slice %266 {offsets = [0, 0], sizes = [8, 128], strides = [1, 1]} : vector<8x512xf32> to vector<8x128xf32>
    %293 = arith.negf %292 : vector<8x128xf32>
    %294 = math.exp %293 : vector<8x128xf32>
    %cst_67 = arith.constant 1.000000e+00 : f32
    %295 = vector.broadcast %cst_67 : f32 to vector<8x128xf32>
    %296 = arith.addf %295, %294 : vector<8x128xf32>
    %297 = arith.divf %295, %296 : vector<8x128xf32>
    %298 = vector.extract_strided_slice %266 {offsets = [0, 128], sizes = [8, 128], strides = [1, 1]} : vector<8x512xf32> to vector<8x128xf32>
    %299 = arith.negf %298 : vector<8x128xf32>
    %300 = math.exp %299 : vector<8x128xf32>
    %cst_68 = arith.constant 1.000000e+00 : f32
    %301 = vector.broadcast %cst_68 : f32 to vector<8x128xf32>
    %302 = arith.addf %301, %300 : vector<8x128xf32>
    %303 = arith.divf %301, %302 : vector<8x128xf32>
    %304 = vector.extract_strided_slice %266 {offsets = [0, 256], sizes = [8, 128], strides = [1, 1]} : vector<8x512xf32> to vector<8x128xf32>
    %305 = math.tanh %304 : vector<8x128xf32>
    %306 = vector.extract_strided_slice %266 {offsets = [0, 384], sizes = [8, 128], strides = [1, 1]} : vector<8x512xf32> to vector<8x128xf32>
    %307 = arith.negf %306 : vector<8x128xf32>
    %308 = math.exp %307 : vector<8x128xf32>
    %cst_69 = arith.constant 1.000000e+00 : f32
    %309 = vector.broadcast %cst_69 : f32 to vector<8x128xf32>
    %310 = arith.addf %309, %308 : vector<8x128xf32>
    %311 = arith.divf %309, %310 : vector<8x128xf32>
    %312 = arith.mulf %303, %253 : vector<8x128xf32>
    %313 = arith.mulf %297, %305 : vector<8x128xf32>
    %314 = arith.addf %312, %313 : vector<8x128xf32>
    %315 = math.tanh %314 : vector<8x128xf32>
    %316 = arith.mulf %311, %315 : vector<8x128xf32>
    %317 = vector.broadcast %c3_i32 : i32 to vector<8x1xi32>
    %318 = arith.cmpi sgt, %13, %317 : vector<8x1xi32>
    %319 = vector.broadcast %254 : i32 to vector<8x1xi32>
    %320 = arith.cmpi sgt, %13, %319 : vector<8x1xi32>
    %321 = vector.shape_cast %318 : vector<8x1xi1> to vector<8x1xi1>
    %322 = vector.broadcast %321 : vector<8x1xi1> to vector<8x128xi1>
    %323 = arith.select %322, %291, %244 : vector<8x128xi1>, vector<8x128xf32>
    %324 = vector.shape_cast %318 : vector<8x1xi1> to vector<8x1xi1>
    %325 = vector.broadcast %324 : vector<8x1xi1> to vector<8x128xi1>
    %326 = arith.select %325, %289, %247 : vector<8x128xi1>, vector<8x128xf32>
    %327 = vector.shape_cast %320 : vector<8x1xi1> to vector<8x1xi1>
    %328 = vector.broadcast %327 : vector<8x1xi1> to vector<8x128xi1>
    %329 = arith.select %328, %316, %250 : vector<8x128xi1>, vector<8x128xf32>
    %330 = vector.shape_cast %320 : vector<8x1xi1> to vector<8x1xi1>
    %331 = vector.broadcast %330 : vector<8x1xi1> to vector<8x128xi1>
    %332 = arith.select %331, %314, %253 : vector<8x128xi1>, vector<8x128xf32>
    %c4_i32 = arith.constant 4 : i32
    %c7_i32_70 = arith.constant 7 : i32
    %333 = arith.subi %c7_i32_70, %c4_i32 : i32
    %334 = arith.index_cast %c4_i32 : i32 to index
    %c0_71 = arith.constant 0 : index
    %c0_72 = arith.constant 0 : index
    %335 = vector.load %arg11[%334, %c0_71, %c0_72] : memref<8x8x512xf32, #tpu.memory_space<vmem>>, vector<1x8x512xf32>
    %336 = vector.shape_cast %335 : vector<1x8x512xf32> to vector<8x512xf32>
    %337 = arith.truncf %323 : vector<8x128xf32> to vector<8x128xbf16>
    %cst_73 = arith.constant dense<0.000000e+00> : vector<8x512xf32>
    %338 = tpu.matmul %337, %14, %cst_73 {dimension_numbers = #tpu.dot_dimension_numbers<[1], [0], [0], [1], [0, 0, 1, 1], [], []>} : vector<8x128xbf16>, vector<128x512xbf16>, vector<8x512xf32> -> vector<8x512xf32>
    %339 = arith.addf %336, %338 : vector<8x512xf32>
    %340 = arith.index_cast %333 : i32 to index
    %c0_74 = arith.constant 0 : index
    %c0_75 = arith.constant 0 : index
    %341 = vector.load %arg12[%340, %c0_74, %c0_75] : memref<8x8x512xf32, #tpu.memory_space<vmem>>, vector<1x8x512xf32>
    %342 = vector.shape_cast %341 : vector<1x8x512xf32> to vector<8x512xf32>
    %343 = arith.truncf %329 : vector<8x128xf32> to vector<8x128xbf16>
    %cst_76 = arith.constant dense<0.000000e+00> : vector<8x512xf32>
    %344 = tpu.matmul %343, %15, %cst_76 {dimension_numbers = #tpu.dot_dimension_numbers<[1], [0], [0], [1], [0, 0, 1, 1], [], []>} : vector<8x128xbf16>, vector<128x512xbf16>, vector<8x512xf32> -> vector<8x512xf32>
    %345 = arith.addf %342, %344 : vector<8x512xf32>
    %346 = vector.extract_strided_slice %339 {offsets = [0, 0], sizes = [8, 128], strides = [1, 1]} : vector<8x512xf32> to vector<8x128xf32>
    %347 = arith.negf %346 : vector<8x128xf32>
    %348 = math.exp %347 : vector<8x128xf32>
    %cst_77 = arith.constant 1.000000e+00 : f32
    %349 = vector.broadcast %cst_77 : f32 to vector<8x128xf32>
    %350 = arith.addf %349, %348 : vector<8x128xf32>
    %351 = arith.divf %349, %350 : vector<8x128xf32>
    %352 = vector.extract_strided_slice %339 {offsets = [0, 128], sizes = [8, 128], strides = [1, 1]} : vector<8x512xf32> to vector<8x128xf32>
    %353 = arith.negf %352 : vector<8x128xf32>
    %354 = math.exp %353 : vector<8x128xf32>
    %cst_78 = arith.constant 1.000000e+00 : f32
    %355 = vector.broadcast %cst_78 : f32 to vector<8x128xf32>
    %356 = arith.addf %355, %354 : vector<8x128xf32>
    %357 = arith.divf %355, %356 : vector<8x128xf32>
    %358 = vector.extract_strided_slice %339 {offsets = [0, 256], sizes = [8, 128], strides = [1, 1]} : vector<8x512xf32> to vector<8x128xf32>
    %359 = math.tanh %358 : vector<8x128xf32>
    %360 = vector.extract_strided_slice %339 {offsets = [0, 384], sizes = [8, 128], strides = [1, 1]} : vector<8x512xf32> to vector<8x128xf32>
    %361 = arith.negf %360 : vector<8x128xf32>
    %362 = math.exp %361 : vector<8x128xf32>
    %cst_79 = arith.constant 1.000000e+00 : f32
    %363 = vector.broadcast %cst_79 : f32 to vector<8x128xf32>
    %364 = arith.addf %363, %362 : vector<8x128xf32>
    %365 = arith.divf %363, %364 : vector<8x128xf32>
    %366 = arith.mulf %357, %326 : vector<8x128xf32>
    %367 = arith.mulf %351, %359 : vector<8x128xf32>
    %368 = arith.addf %366, %367 : vector<8x128xf32>
    %369 = math.tanh %368 : vector<8x128xf32>
    %370 = arith.mulf %365, %369 : vector<8x128xf32>
    %371 = vector.extract_strided_slice %345 {offsets = [0, 0], sizes = [8, 128], strides = [1, 1]} : vector<8x512xf32> to vector<8x128xf32>
    %372 = arith.negf %371 : vector<8x128xf32>
    %373 = math.exp %372 : vector<8x128xf32>
    %cst_80 = arith.constant 1.000000e+00 : f32
    %374 = vector.broadcast %cst_80 : f32 to vector<8x128xf32>
    %375 = arith.addf %374, %373 : vector<8x128xf32>
    %376 = arith.divf %374, %375 : vector<8x128xf32>
    %377 = vector.extract_strided_slice %345 {offsets = [0, 128], sizes = [8, 128], strides = [1, 1]} : vector<8x512xf32> to vector<8x128xf32>
    %378 = arith.negf %377 : vector<8x128xf32>
    %379 = math.exp %378 : vector<8x128xf32>
    %cst_81 = arith.constant 1.000000e+00 : f32
    %380 = vector.broadcast %cst_81 : f32 to vector<8x128xf32>
    %381 = arith.addf %380, %379 : vector<8x128xf32>
    %382 = arith.divf %380, %381 : vector<8x128xf32>
    %383 = vector.extract_strided_slice %345 {offsets = [0, 256], sizes = [8, 128], strides = [1, 1]} : vector<8x512xf32> to vector<8x128xf32>
    %384 = math.tanh %383 : vector<8x128xf32>
    %385 = vector.extract_strided_slice %345 {offsets = [0, 384], sizes = [8, 128], strides = [1, 1]} : vector<8x512xf32> to vector<8x128xf32>
    %386 = arith.negf %385 : vector<8x128xf32>
    %387 = math.exp %386 : vector<8x128xf32>
    %cst_82 = arith.constant 1.000000e+00 : f32
    %388 = vector.broadcast %cst_82 : f32 to vector<8x128xf32>
    %389 = arith.addf %388, %387 : vector<8x128xf32>
    %390 = arith.divf %388, %389 : vector<8x128xf32>
    %391 = arith.mulf %382, %332 : vector<8x128xf32>
    %392 = arith.mulf %376, %384 : vector<8x128xf32>
    %393 = arith.addf %391, %392 : vector<8x128xf32>
    %394 = math.tanh %393 : vector<8x128xf32>
    %395 = arith.mulf %390, %394 : vector<8x128xf32>
    %396 = vector.broadcast %c4_i32 : i32 to vector<8x1xi32>
    %397 = arith.cmpi sgt, %13, %396 : vector<8x1xi32>
    %398 = vector.broadcast %333 : i32 to vector<8x1xi32>
    %399 = arith.cmpi sgt, %13, %398 : vector<8x1xi32>
    %400 = vector.shape_cast %397 : vector<8x1xi1> to vector<8x1xi1>
    %401 = vector.broadcast %400 : vector<8x1xi1> to vector<8x128xi1>
    %402 = arith.select %401, %370, %323 : vector<8x128xi1>, vector<8x128xf32>
    %403 = vector.shape_cast %397 : vector<8x1xi1> to vector<8x1xi1>
    %404 = vector.broadcast %403 : vector<8x1xi1> to vector<8x128xi1>
    %405 = arith.select %404, %368, %326 : vector<8x128xi1>, vector<8x128xf32>
    %406 = vector.shape_cast %399 : vector<8x1xi1> to vector<8x1xi1>
    %407 = vector.broadcast %406 : vector<8x1xi1> to vector<8x128xi1>
    %408 = arith.select %407, %395, %329 : vector<8x128xi1>, vector<8x128xf32>
    %409 = vector.shape_cast %399 : vector<8x1xi1> to vector<8x1xi1>
    %410 = vector.broadcast %409 : vector<8x1xi1> to vector<8x128xi1>
    %411 = arith.select %410, %393, %332 : vector<8x128xi1>, vector<8x128xf32>
    %c5_i32 = arith.constant 5 : i32
    %c7_i32_83 = arith.constant 7 : i32
    %412 = arith.subi %c7_i32_83, %c5_i32 : i32
    %413 = arith.index_cast %c5_i32 : i32 to index
    %c0_84 = arith.constant 0 : index
    %c0_85 = arith.constant 0 : index
    %414 = vector.load %arg11[%413, %c0_84, %c0_85] : memref<8x8x512xf32, #tpu.memory_space<vmem>>, vector<1x8x512xf32>
    %415 = vector.shape_cast %414 : vector<1x8x512xf32> to vector<8x512xf32>
    %416 = arith.truncf %402 : vector<8x128xf32> to vector<8x128xbf16>
    %cst_86 = arith.constant dense<0.000000e+00> : vector<8x512xf32>
    %417 = tpu.matmul %416, %14, %cst_86 {dimension_numbers = #tpu.dot_dimension_numbers<[1], [0], [0], [1], [0, 0, 1, 1], [], []>} : vector<8x128xbf16>, vector<128x512xbf16>, vector<8x512xf32> -> vector<8x512xf32>
    %418 = arith.addf %415, %417 : vector<8x512xf32>
    %419 = arith.index_cast %412 : i32 to index
    %c0_87 = arith.constant 0 : index
    %c0_88 = arith.constant 0 : index
    %420 = vector.load %arg12[%419, %c0_87, %c0_88] : memref<8x8x512xf32, #tpu.memory_space<vmem>>, vector<1x8x512xf32>
    %421 = vector.shape_cast %420 : vector<1x8x512xf32> to vector<8x512xf32>
    %422 = arith.truncf %408 : vector<8x128xf32> to vector<8x128xbf16>
    %cst_89 = arith.constant dense<0.000000e+00> : vector<8x512xf32>
    %423 = tpu.matmul %422, %15, %cst_89 {dimension_numbers = #tpu.dot_dimension_numbers<[1], [0], [0], [1], [0, 0, 1, 1], [], []>} : vector<8x128xbf16>, vector<128x512xbf16>, vector<8x512xf32> -> vector<8x512xf32>
    %424 = arith.addf %421, %423 : vector<8x512xf32>
    %425 = vector.extract_strided_slice %418 {offsets = [0, 0], sizes = [8, 128], strides = [1, 1]} : vector<8x512xf32> to vector<8x128xf32>
    %426 = arith.negf %425 : vector<8x128xf32>
    %427 = math.exp %426 : vector<8x128xf32>
    %cst_90 = arith.constant 1.000000e+00 : f32
    %428 = vector.broadcast %cst_90 : f32 to vector<8x128xf32>
    %429 = arith.addf %428, %427 : vector<8x128xf32>
    %430 = arith.divf %428, %429 : vector<8x128xf32>
    %431 = vector.extract_strided_slice %418 {offsets = [0, 128], sizes = [8, 128], strides = [1, 1]} : vector<8x512xf32> to vector<8x128xf32>
    %432 = arith.negf %431 : vector<8x128xf32>
    %433 = math.exp %432 : vector<8x128xf32>
    %cst_91 = arith.constant 1.000000e+00 : f32
    %434 = vector.broadcast %cst_91 : f32 to vector<8x128xf32>
    %435 = arith.addf %434, %433 : vector<8x128xf32>
    %436 = arith.divf %434, %435 : vector<8x128xf32>
    %437 = vector.extract_strided_slice %418 {offsets = [0, 256], sizes = [8, 128], strides = [1, 1]} : vector<8x512xf32> to vector<8x128xf32>
    %438 = math.tanh %437 : vector<8x128xf32>
    %439 = vector.extract_strided_slice %418 {offsets = [0, 384], sizes = [8, 128], strides = [1, 1]} : vector<8x512xf32> to vector<8x128xf32>
    %440 = arith.negf %439 : vector<8x128xf32>
    %441 = math.exp %440 : vector<8x128xf32>
    %cst_92 = arith.constant 1.000000e+00 : f32
    %442 = vector.broadcast %cst_92 : f32 to vector<8x128xf32>
    %443 = arith.addf %442, %441 : vector<8x128xf32>
    %444 = arith.divf %442, %443 : vector<8x128xf32>
    %445 = arith.mulf %436, %405 : vector<8x128xf32>
    %446 = arith.mulf %430, %438 : vector<8x128xf32>
    %447 = arith.addf %445, %446 : vector<8x128xf32>
    %448 = math.tanh %447 : vector<8x128xf32>
    %449 = arith.mulf %444, %448 : vector<8x128xf32>
    %450 = vector.extract_strided_slice %424 {offsets = [0, 0], sizes = [8, 128], strides = [1, 1]} : vector<8x512xf32> to vector<8x128xf32>
    %451 = arith.negf %450 : vector<8x128xf32>
    %452 = math.exp %451 : vector<8x128xf32>
    %cst_93 = arith.constant 1.000000e+00 : f32
    %453 = vector.broadcast %cst_93 : f32 to vector<8x128xf32>
    %454 = arith.addf %453, %452 : vector<8x128xf32>
    %455 = arith.divf %453, %454 : vector<8x128xf32>
    %456 = vector.extract_strided_slice %424 {offsets = [0, 128], sizes = [8, 128], strides = [1, 1]} : vector<8x512xf32> to vector<8x128xf32>
    %457 = arith.negf %456 : vector<8x128xf32>
    %458 = math.exp %457 : vector<8x128xf32>
    %cst_94 = arith.constant 1.000000e+00 : f32
    %459 = vector.broadcast %cst_94 : f32 to vector<8x128xf32>
    %460 = arith.addf %459, %458 : vector<8x128xf32>
    %461 = arith.divf %459, %460 : vector<8x128xf32>
    %462 = vector.extract_strided_slice %424 {offsets = [0, 256], sizes = [8, 128], strides = [1, 1]} : vector<8x512xf32> to vector<8x128xf32>
    %463 = math.tanh %462 : vector<8x128xf32>
    %464 = vector.extract_strided_slice %424 {offsets = [0, 384], sizes = [8, 128], strides = [1, 1]} : vector<8x512xf32> to vector<8x128xf32>
    %465 = arith.negf %464 : vector<8x128xf32>
    %466 = math.exp %465 : vector<8x128xf32>
    %cst_95 = arith.constant 1.000000e+00 : f32
    %467 = vector.broadcast %cst_95 : f32 to vector<8x128xf32>
    %468 = arith.addf %467, %466 : vector<8x128xf32>
    %469 = arith.divf %467, %468 : vector<8x128xf32>
    %470 = arith.mulf %461, %411 : vector<8x128xf32>
    %471 = arith.mulf %455, %463 : vector<8x128xf32>
    %472 = arith.addf %470, %471 : vector<8x128xf32>
    %473 = math.tanh %472 : vector<8x128xf32>
    %474 = arith.mulf %469, %473 : vector<8x128xf32>
    %475 = vector.broadcast %c5_i32 : i32 to vector<8x1xi32>
    %476 = arith.cmpi sgt, %13, %475 : vector<8x1xi32>
    %477 = vector.broadcast %412 : i32 to vector<8x1xi32>
    %478 = arith.cmpi sgt, %13, %477 : vector<8x1xi32>
    %479 = vector.shape_cast %476 : vector<8x1xi1> to vector<8x1xi1>
    %480 = vector.broadcast %479 : vector<8x1xi1> to vector<8x128xi1>
    %481 = arith.select %480, %449, %402 : vector<8x128xi1>, vector<8x128xf32>
    %482 = vector.shape_cast %476 : vector<8x1xi1> to vector<8x1xi1>
    %483 = vector.broadcast %482 : vector<8x1xi1> to vector<8x128xi1>
    %484 = arith.select %483, %447, %405 : vector<8x128xi1>, vector<8x128xf32>
    %485 = vector.shape_cast %478 : vector<8x1xi1> to vector<8x1xi1>
    %486 = vector.broadcast %485 : vector<8x1xi1> to vector<8x128xi1>
    %487 = arith.select %486, %474, %408 : vector<8x128xi1>, vector<8x128xf32>
    %488 = vector.shape_cast %478 : vector<8x1xi1> to vector<8x1xi1>
    %489 = vector.broadcast %488 : vector<8x1xi1> to vector<8x128xi1>
    %490 = arith.select %489, %472, %411 : vector<8x128xi1>, vector<8x128xf32>
    %c6_i32 = arith.constant 6 : i32
    %c7_i32_96 = arith.constant 7 : i32
    %491 = arith.subi %c7_i32_96, %c6_i32 : i32
    %492 = arith.index_cast %c6_i32 : i32 to index
    %c0_97 = arith.constant 0 : index
    %c0_98 = arith.constant 0 : index
    %493 = vector.load %arg11[%492, %c0_97, %c0_98] : memref<8x8x512xf32, #tpu.memory_space<vmem>>, vector<1x8x512xf32>
    %494 = vector.shape_cast %493 : vector<1x8x512xf32> to vector<8x512xf32>
    %495 = arith.truncf %481 : vector<8x128xf32> to vector<8x128xbf16>
    %cst_99 = arith.constant dense<0.000000e+00> : vector<8x512xf32>
    %496 = tpu.matmul %495, %14, %cst_99 {dimension_numbers = #tpu.dot_dimension_numbers<[1], [0], [0], [1], [0, 0, 1, 1], [], []>} : vector<8x128xbf16>, vector<128x512xbf16>, vector<8x512xf32> -> vector<8x512xf32>
    %497 = arith.addf %494, %496 : vector<8x512xf32>
    %498 = arith.index_cast %491 : i32 to index
    %c0_100 = arith.constant 0 : index
    %c0_101 = arith.constant 0 : index
    %499 = vector.load %arg12[%498, %c0_100, %c0_101] : memref<8x8x512xf32, #tpu.memory_space<vmem>>, vector<1x8x512xf32>
    %500 = vector.shape_cast %499 : vector<1x8x512xf32> to vector<8x512xf32>
    %501 = arith.truncf %487 : vector<8x128xf32> to vector<8x128xbf16>
    %cst_102 = arith.constant dense<0.000000e+00> : vector<8x512xf32>
    %502 = tpu.matmul %501, %15, %cst_102 {dimension_numbers = #tpu.dot_dimension_numbers<[1], [0], [0], [1], [0, 0, 1, 1], [], []>} : vector<8x128xbf16>, vector<128x512xbf16>, vector<8x512xf32> -> vector<8x512xf32>
    %503 = arith.addf %500, %502 : vector<8x512xf32>
    %504 = vector.extract_strided_slice %497 {offsets = [0, 0], sizes = [8, 128], strides = [1, 1]} : vector<8x512xf32> to vector<8x128xf32>
    %505 = arith.negf %504 : vector<8x128xf32>
    %506 = math.exp %505 : vector<8x128xf32>
    %cst_103 = arith.constant 1.000000e+00 : f32
    %507 = vector.broadcast %cst_103 : f32 to vector<8x128xf32>
    %508 = arith.addf %507, %506 : vector<8x128xf32>
    %509 = arith.divf %507, %508 : vector<8x128xf32>
    %510 = vector.extract_strided_slice %497 {offsets = [0, 128], sizes = [8, 128], strides = [1, 1]} : vector<8x512xf32> to vector<8x128xf32>
    %511 = arith.negf %510 : vector<8x128xf32>
    %512 = math.exp %511 : vector<8x128xf32>
    %cst_104 = arith.constant 1.000000e+00 : f32
    %513 = vector.broadcast %cst_104 : f32 to vector<8x128xf32>
    %514 = arith.addf %513, %512 : vector<8x128xf32>
    %515 = arith.divf %513, %514 : vector<8x128xf32>
    %516 = vector.extract_strided_slice %497 {offsets = [0, 256], sizes = [8, 128], strides = [1, 1]} : vector<8x512xf32> to vector<8x128xf32>
    %517 = math.tanh %516 : vector<8x128xf32>
    %518 = vector.extract_strided_slice %497 {offsets = [0, 384], sizes = [8, 128], strides = [1, 1]} : vector<8x512xf32> to vector<8x128xf32>
    %519 = arith.negf %518 : vector<8x128xf32>
    %520 = math.exp %519 : vector<8x128xf32>
    %cst_105 = arith.constant 1.000000e+00 : f32
    %521 = vector.broadcast %cst_105 : f32 to vector<8x128xf32>
    %522 = arith.addf %521, %520 : vector<8x128xf32>
    %523 = arith.divf %521, %522 : vector<8x128xf32>
    %524 = arith.mulf %515, %484 : vector<8x128xf32>
    %525 = arith.mulf %509, %517 : vector<8x128xf32>
    %526 = arith.addf %524, %525 : vector<8x128xf32>
    %527 = math.tanh %526 : vector<8x128xf32>
    %528 = arith.mulf %523, %527 : vector<8x128xf32>
    %529 = vector.extract_strided_slice %503 {offsets = [0, 0], sizes = [8, 128], strides = [1, 1]} : vector<8x512xf32> to vector<8x128xf32>
    %530 = arith.negf %529 : vector<8x128xf32>
    %531 = math.exp %530 : vector<8x128xf32>
    %cst_106 = arith.constant 1.000000e+00 : f32
    %532 = vector.broadcast %cst_106 : f32 to vector<8x128xf32>
    %533 = arith.addf %532, %531 : vector<8x128xf32>
    %534 = arith.divf %532, %533 : vector<8x128xf32>
    %535 = vector.extract_strided_slice %503 {offsets = [0, 128], sizes = [8, 128], strides = [1, 1]} : vector<8x512xf32> to vector<8x128xf32>
    %536 = arith.negf %535 : vector<8x128xf32>
    %537 = math.exp %536 : vector<8x128xf32>
    %cst_107 = arith.constant 1.000000e+00 : f32
    %538 = vector.broadcast %cst_107 : f32 to vector<8x128xf32>
    %539 = arith.addf %538, %537 : vector<8x128xf32>
    %540 = arith.divf %538, %539 : vector<8x128xf32>
    %541 = vector.extract_strided_slice %503 {offsets = [0, 256], sizes = [8, 128], strides = [1, 1]} : vector<8x512xf32> to vector<8x128xf32>
    %542 = math.tanh %541 : vector<8x128xf32>
    %543 = vector.extract_strided_slice %503 {offsets = [0, 384], sizes = [8, 128], strides = [1, 1]} : vector<8x512xf32> to vector<8x128xf32>
    %544 = arith.negf %543 : vector<8x128xf32>
    %545 = math.exp %544 : vector<8x128xf32>
    %cst_108 = arith.constant 1.000000e+00 : f32
    %546 = vector.broadcast %cst_108 : f32 to vector<8x128xf32>
    %547 = arith.addf %546, %545 : vector<8x128xf32>
    %548 = arith.divf %546, %547 : vector<8x128xf32>
    %549 = arith.mulf %540, %490 : vector<8x128xf32>
    %550 = arith.mulf %534, %542 : vector<8x128xf32>
    %551 = arith.addf %549, %550 : vector<8x128xf32>
    %552 = math.tanh %551 : vector<8x128xf32>
    %553 = arith.mulf %548, %552 : vector<8x128xf32>
    %554 = vector.broadcast %c6_i32 : i32 to vector<8x1xi32>
    %555 = arith.cmpi sgt, %13, %554 : vector<8x1xi32>
    %556 = vector.broadcast %491 : i32 to vector<8x1xi32>
    %557 = arith.cmpi sgt, %13, %556 : vector<8x1xi32>
    %558 = vector.shape_cast %555 : vector<8x1xi1> to vector<8x1xi1>
    %559 = vector.broadcast %558 : vector<8x1xi1> to vector<8x128xi1>
    %560 = arith.select %559, %528, %481 : vector<8x128xi1>, vector<8x128xf32>
    %561 = vector.shape_cast %555 : vector<8x1xi1> to vector<8x1xi1>
    %562 = vector.broadcast %561 : vector<8x1xi1> to vector<8x128xi1>
    %563 = arith.select %562, %526, %484 : vector<8x128xi1>, vector<8x128xf32>
    %564 = vector.shape_cast %557 : vector<8x1xi1> to vector<8x1xi1>
    %565 = vector.broadcast %564 : vector<8x1xi1> to vector<8x128xi1>
    %566 = arith.select %565, %553, %487 : vector<8x128xi1>, vector<8x128xf32>
    %567 = vector.shape_cast %557 : vector<8x1xi1> to vector<8x1xi1>
    %568 = vector.broadcast %567 : vector<8x1xi1> to vector<8x128xi1>
    %569 = arith.select %568, %551, %490 : vector<8x128xi1>, vector<8x128xf32>
    %c7_i32_109 = arith.constant 7 : i32
    %c7_i32_110 = arith.constant 7 : i32
    %570 = arith.subi %c7_i32_110, %c7_i32_109 : i32
    %571 = arith.index_cast %c7_i32_109 : i32 to index
    %c0_111 = arith.constant 0 : index
    %c0_112 = arith.constant 0 : index
    %572 = vector.load %arg11[%571, %c0_111, %c0_112] : memref<8x8x512xf32, #tpu.memory_space<vmem>>, vector<1x8x512xf32>
    %573 = vector.shape_cast %572 : vector<1x8x512xf32> to vector<8x512xf32>
    %574 = arith.truncf %560 : vector<8x128xf32> to vector<8x128xbf16>
    %cst_113 = arith.constant dense<0.000000e+00> : vector<8x512xf32>
    %575 = tpu.matmul %574, %14, %cst_113 {dimension_numbers = #tpu.dot_dimension_numbers<[1], [0], [0], [1], [0, 0, 1, 1], [], []>} : vector<8x128xbf16>, vector<128x512xbf16>, vector<8x512xf32> -> vector<8x512xf32>
    %576 = arith.addf %573, %575 : vector<8x512xf32>
    %577 = arith.index_cast %570 : i32 to index
    %c0_114 = arith.constant 0 : index
    %c0_115 = arith.constant 0 : index
    %578 = vector.load %arg12[%577, %c0_114, %c0_115] : memref<8x8x512xf32, #tpu.memory_space<vmem>>, vector<1x8x512xf32>
    %579 = vector.shape_cast %578 : vector<1x8x512xf32> to vector<8x512xf32>
    %580 = arith.truncf %566 : vector<8x128xf32> to vector<8x128xbf16>
    %cst_116 = arith.constant dense<0.000000e+00> : vector<8x512xf32>
    %581 = tpu.matmul %580, %15, %cst_116 {dimension_numbers = #tpu.dot_dimension_numbers<[1], [0], [0], [1], [0, 0, 1, 1], [], []>} : vector<8x128xbf16>, vector<128x512xbf16>, vector<8x512xf32> -> vector<8x512xf32>
    %582 = arith.addf %579, %581 : vector<8x512xf32>
    %583 = vector.extract_strided_slice %576 {offsets = [0, 0], sizes = [8, 128], strides = [1, 1]} : vector<8x512xf32> to vector<8x128xf32>
    %584 = arith.negf %583 : vector<8x128xf32>
    %585 = math.exp %584 : vector<8x128xf32>
    %cst_117 = arith.constant 1.000000e+00 : f32
    %586 = vector.broadcast %cst_117 : f32 to vector<8x128xf32>
    %587 = arith.addf %586, %585 : vector<8x128xf32>
    %588 = arith.divf %586, %587 : vector<8x128xf32>
    %589 = vector.extract_strided_slice %576 {offsets = [0, 128], sizes = [8, 128], strides = [1, 1]} : vector<8x512xf32> to vector<8x128xf32>
    %590 = arith.negf %589 : vector<8x128xf32>
    %591 = math.exp %590 : vector<8x128xf32>
    %cst_118 = arith.constant 1.000000e+00 : f32
    %592 = vector.broadcast %cst_118 : f32 to vector<8x128xf32>
    %593 = arith.addf %592, %591 : vector<8x128xf32>
    %594 = arith.divf %592, %593 : vector<8x128xf32>
    %595 = vector.extract_strided_slice %576 {offsets = [0, 256], sizes = [8, 128], strides = [1, 1]} : vector<8x512xf32> to vector<8x128xf32>
    %596 = math.tanh %595 : vector<8x128xf32>
    %597 = vector.extract_strided_slice %576 {offsets = [0, 384], sizes = [8, 128], strides = [1, 1]} : vector<8x512xf32> to vector<8x128xf32>
    %598 = arith.negf %597 : vector<8x128xf32>
    %599 = math.exp %598 : vector<8x128xf32>
    %cst_119 = arith.constant 1.000000e+00 : f32
    %600 = vector.broadcast %cst_119 : f32 to vector<8x128xf32>
    %601 = arith.addf %600, %599 : vector<8x128xf32>
    %602 = arith.divf %600, %601 : vector<8x128xf32>
    %603 = arith.mulf %594, %563 : vector<8x128xf32>
    %604 = arith.mulf %588, %596 : vector<8x128xf32>
    %605 = arith.addf %603, %604 : vector<8x128xf32>
    %606 = math.tanh %605 : vector<8x128xf32>
    %607 = arith.mulf %602, %606 : vector<8x128xf32>
    %608 = vector.extract_strided_slice %582 {offsets = [0, 0], sizes = [8, 128], strides = [1, 1]} : vector<8x512xf32> to vector<8x128xf32>
    %609 = arith.negf %608 : vector<8x128xf32>
    %610 = math.exp %609 : vector<8x128xf32>
    %cst_120 = arith.constant 1.000000e+00 : f32
    %611 = vector.broadcast %cst_120 : f32 to vector<8x128xf32>
    %612 = arith.addf %611, %610 : vector<8x128xf32>
    %613 = arith.divf %611, %612 : vector<8x128xf32>
    %614 = vector.extract_strided_slice %582 {offsets = [0, 128], sizes = [8, 128], strides = [1, 1]} : vector<8x512xf32> to vector<8x128xf32>
    %615 = arith.negf %614 : vector<8x128xf32>
    %616 = math.exp %615 : vector<8x128xf32>
    %cst_121 = arith.constant 1.000000e+00 : f32
    %617 = vector.broadcast %cst_121 : f32 to vector<8x128xf32>
    %618 = arith.addf %617, %616 : vector<8x128xf32>
    %619 = arith.divf %617, %618 : vector<8x128xf32>
    %620 = vector.extract_strided_slice %582 {offsets = [0, 256], sizes = [8, 128], strides = [1, 1]} : vector<8x512xf32> to vector<8x128xf32>
    %621 = math.tanh %620 : vector<8x128xf32>
    %622 = vector.extract_strided_slice %582 {offsets = [0, 384], sizes = [8, 128], strides = [1, 1]} : vector<8x512xf32> to vector<8x128xf32>
    %623 = arith.negf %622 : vector<8x128xf32>
    %624 = math.exp %623 : vector<8x128xf32>
    %cst_122 = arith.constant 1.000000e+00 : f32
    %625 = vector.broadcast %cst_122 : f32 to vector<8x128xf32>
    %626 = arith.addf %625, %624 : vector<8x128xf32>
    %627 = arith.divf %625, %626 : vector<8x128xf32>
    %628 = arith.mulf %619, %569 : vector<8x128xf32>
    %629 = arith.mulf %613, %621 : vector<8x128xf32>
    %630 = arith.addf %628, %629 : vector<8x128xf32>
    %631 = math.tanh %630 : vector<8x128xf32>
    %632 = arith.mulf %627, %631 : vector<8x128xf32>
    %633 = vector.broadcast %c7_i32_109 : i32 to vector<8x1xi32>
    %634 = arith.cmpi sgt, %13, %633 : vector<8x1xi32>
    %635 = vector.broadcast %570 : i32 to vector<8x1xi32>
    %636 = arith.cmpi sgt, %13, %635 : vector<8x1xi32>
    %637 = vector.shape_cast %634 : vector<8x1xi1> to vector<8x1xi1>
    %638 = vector.broadcast %637 : vector<8x1xi1> to vector<8x128xi1>
    %639 = arith.select %638, %607, %560 : vector<8x128xi1>, vector<8x128xf32>
    %640 = vector.shape_cast %634 : vector<8x1xi1> to vector<8x1xi1>
    %641 = vector.broadcast %640 : vector<8x1xi1> to vector<8x128xi1>
    %642 = arith.select %641, %605, %563 : vector<8x128xi1>, vector<8x128xf32>
    %643 = vector.shape_cast %636 : vector<8x1xi1> to vector<8x1xi1>
    %644 = vector.broadcast %643 : vector<8x1xi1> to vector<8x128xi1>
    %645 = arith.select %644, %632, %566 : vector<8x128xi1>, vector<8x128xf32>
    %646 = vector.shape_cast %636 : vector<8x1xi1> to vector<8x1xi1>
    %647 = vector.broadcast %646 : vector<8x1xi1> to vector<8x128xi1>
    %648 = arith.select %647, %630, %569 : vector<8x128xi1>, vector<8x128xf32>
    %c8_i32 = arith.constant 8 : i32
    %649 = arith.truncf %639 : vector<8x128xf32> to vector<8x128xbf16>
    %c0_123 = arith.constant 0 : index
    %c0_124 = arith.constant 0 : index
    %650 = vector.load %arg7[%c0_123, %c0_124] : memref<128x128xbf16, #tpu.memory_space<vmem>>, vector<128x128xbf16>
    %cst_125 = arith.constant dense<0.000000e+00> : vector<8x128xf32>
    %651 = tpu.matmul %649, %650, %cst_125 {dimension_numbers = #tpu.dot_dimension_numbers<[1], [0], [0], [1], [0, 0, 1, 1], [], []>} : vector<8x128xbf16>, vector<128x128xbf16>, vector<8x128xf32> -> vector<8x128xf32>
    %652 = arith.truncf %645 : vector<8x128xf32> to vector<8x128xbf16>
    %c0_126 = arith.constant 0 : index
    %c0_127 = arith.constant 0 : index
    %653 = vector.load %arg8[%c0_126, %c0_127] : memref<128x128xbf16, #tpu.memory_space<vmem>>, vector<128x128xbf16>
    %cst_128 = arith.constant dense<0.000000e+00> : vector<8x128xf32>
    %654 = tpu.matmul %652, %653, %cst_128 {dimension_numbers = #tpu.dot_dimension_numbers<[1], [0], [0], [1], [0, 0, 1, 1], [], []>} : vector<8x128xbf16>, vector<128x128xbf16>, vector<8x128xf32> -> vector<8x128xf32>
    %655 = arith.addf %651, %654 : vector<8x128xf32>
    %c0_129 = arith.constant 0 : index
    %c0_130 = arith.constant 0 : index
    %656 = vector.load %arg9[%c0_129, %c0_130] : memref<1x128xf32, #tpu.memory_space<vmem>>, vector<1x128xf32>
    %657 = vector.broadcast %656 : vector<1x128xf32> to vector<8x128xf32>
    %658 = arith.addf %655, %657 : vector<8x128xf32>
    %c0_131 = arith.constant 0 : index
    %c0_132 = arith.constant 0 : index
    %659 = vector.load %arg10[%c0_131, %c0_132] : memref<8x128xf32, #tpu.memory_space<vmem>>, vector<8x128xf32>
    tpu.vector_store %arg10[%c0_131, %c0_132], %658 {strides = array<i32>} : memref<8x128xf32, #tpu.memory_space<vmem>>, vector<8x128xf32>,
    return
  }
  func.func @transform_0(%arg0: i32) -> (i32, i32, i32) {
    %c0_i32 = arith.constant 0 : i32
    %c0_i32_0 = arith.constant 0 : i32
    %c0_i32_1 = arith.constant 0 : i32
    return %c0_i32, %arg0, %c0_i32_0 : i32, i32, i32
  }
  func.func @transform_1(%arg0: i32) -> (i32, i32) {
    %c0_i32 = arith.constant 0 : i32
    %c0_i32_0 = arith.constant 0 : i32
    return %arg0, %c0_i32 : i32, i32
  }
  func.func @transform_2(%arg0: i32) -> (i32, i32) {
    %c0_i32 = arith.constant 0 : i32
    %c0_i32_0 = arith.constant 0 : i32
    %c0_i32_1 = arith.constant 0 : i32
    return %c0_i32, %c0_i32_0 : i32, i32
  }
  func.func @transform_3(%arg0: i32) -> (i32, i32) {
    %c0_i32 = arith.constant 0 : i32
    %c0_i32_0 = arith.constant 0 : i32
    %c0_i32_1 = arith.constant 0 : i32
    return %c0_i32, %c0_i32_0 : i32, i32
  }
  func.func @transform_4(%arg0: i32) -> (i32, i32) {
    %c0_i32 = arith.constant 0 : i32
    %c0_i32_0 = arith.constant 0 : i32
    %c0_i32_1 = arith.constant 0 : i32
    return %c0_i32, %c0_i32_0 : i32, i32
  }
  func.func @transform_5(%arg0: i32) -> (i32, i32) {
    %c0_i32 = arith.constant 0 : i32
    %c0_i32_0 = arith.constant 0 : i32
    %c0_i32_1 = arith.constant 0 : i32
    return %c0_i32, %c0_i32_0 : i32, i32
  }
  func.func @transform_6(%arg0: i32) -> (i32, i32) {
    %c0_i32 = arith.constant 0 : i32
    %c0_i32_0 = arith.constant 0 : i32
    %c0_i32_1 = arith.constant 0 : i32
    return %c0_i32, %c0_i32_0 : i32, i32
  }
  func.func @transform_7(%arg0: i32) -> (i32, i32) {
    %c0_i32 = arith.constant 0 : i32
    %c0_i32_0 = arith.constant 0 : i32
    %c0_i32_1 = arith.constant 0 : i32
    return %c0_i32, %c0_i32_0 : i32, i32
  }
  func.func @transform_8(%arg0: i32) -> (i32, i32) {
    %c0_i32 = arith.constant 0 : i32
    %c0_i32_0 = arith.constant 0 : i32
    %c0_i32_1 = arith.constant 0 : i32
    return %c0_i32, %c0_i32_0 : i32, i32
  }
  func.func @transform_9(%arg0: i32) -> (i32, i32) {
    %c0_i32 = arith.constant 0 : i32
    %c0_i32_0 = arith.constant 0 : i32
    return %arg0, %c0_i32 : i32, i32
  }
}

</mosaic_0001>

<llo_original>
// kernel: bilstm_forward.1
$region0: #{bilstm_forward.1}
  #allocation0 [shape = 'u32[]', space=smem, size = 0x4, offset = 0x4, fixed_abs, tag = 'smem constant byte address 0x4 - core index']
  #allocation1 [shape = 'u32[72,128]{1,0:T(1,128)}', space=vmem, size = 0x9000, scoped, tag = 'internal scratch']
  #allocation2 [shape = 'f32[8,8,512]{2,1,0:T(8,128)}', space=vmem, size = 0x20000, scoped, tag = 'scratch operand']
  #allocation3 [shape = 'f32[8,8,512]{2,1,0:T(8,128)}', space=vmem, size = 0x20000, scoped, tag = 'scratch operand']
  %s0 = inlined_call_operand.vmem [shape: bf16[8,8,300], index: 0, kind: input, shape index: {}]
  %s1 = inlined_call_operand.vmem [shape: s32[8,1], index: 1, kind: input, shape index: {}]
  %s2 = inlined_call_operand.hbm [shape: bf16[300,1024], index: 2, kind: input, shape index: {}]
  %s3 = inlined_call_operand.vmem [shape: f32[1,1024], index: 3, kind: input, shape index: {}]
  %s4 = inlined_call_operand.vmem [shape: bf16[128,512], index: 4, kind: input, shape index: {}]
  %s5 = inlined_call_operand.hbm [shape: bf16[128,512], index: 5, kind: input, shape index: {}]
  %s6 = inlined_call_operand.vmem [shape: bf16[128,128], index: 6, kind: input, shape index: {}]
  %s7 = inlined_call_operand.vmem [shape: bf16[128,128], index: 7, kind: input, shape index: {}]
  %s8 = inlined_call_operand.vmem [shape: f32[1,128], index: 8, kind: input, shape index: {}]
  %s9 = inlined_call_operand.vmem [shape: f32[8,128], index: 9, kind: output, shape index: {}]
  %s10 = sld [smem:[#allocation0]]
  $region54: #{bilstm_forward.1} parent=0
    _
  %s12 = ssub.s32 1, %s10
  %s13 = scalar_select 0, %s12, %s10
  $region1: #{bilstm_forward.1} parent=0
    #allocation4 [shape = 'u8[622592]{0}', space=vmem, size = 0x98000, scoped, tag = 'input window, operand 2, single buffered']
    #allocation5 [shape = 's32[1]{0}', space=sflag, size = 0x4, scoped, tag = 'scoped memory for bilstm_forward.1']
    #allocation6 [shape = 'u8[131072]{0}', space=vmem, size = 0x20000, scoped, tag = 'input window, operand 5, single buffered']
    #allocation7 [shape = 's32[1]{0}', space=sflag, size = 0x4, scoped, tag = 'scoped memory for bilstm_forward.1']
    %14 = vsyncpa [#allocation5], 0
    %15 = vsyncpa [#allocation7], 0
    // Predicated region
    $region2: #{bilstm_forward.1} parent=1 // pred_check
      _
    $region3: #{bilstm_forward.1} parent=1 // pred_check_branch
      %17 = sbr.rel (0) target = $region5
    $region4: #{bilstm_forward.1} parent=1 // pred_region
      _
    $region5: #{bilstm_forward.1} parent=1 // pred_fallthru
      _
    // Predicated region
    $region6: #{bilstm_forward.1} parent=1 // pred_check
      _
    $region7: #{bilstm_forward.1} parent=1 // pred_check_branch
      %19 = sbr.rel (0) target = $region9
    $region8: #{bilstm_forward.1} parent=1 // pred_region
      _
    $region9: #{bilstm_forward.1} parent=1 // pred_fallthru
      _
    // Predicated region
    $region10: #{bilstm_forward.1} parent=1 // pred_check
      _
    $region11: #{bilstm_forward.1} parent=1 // pred_check_branch
      %21 = sbr.rel (0) target = $region13
    $region12: #{bilstm_forward.1} parent=1 // pred_region
      %23 = vsyncadd [#allocation5], 0
      %s24 = sshll.u32 %s2, 4
      %s25 = int_to_ptr.hbm [resolvable:$true] %s24
      %s26 = sshll.u32 [#allocation4], 4
      %s27 = int_to_ptr.vmem [resolvable:$true] %s26
      %32 = dma.hbm_to_vmem [thread:$0]  %s25, 19456, %s27, [#allocation5], 512, 512, 32
    $region13: #{bilstm_forward.1} parent=1 // pred_fallthru
      _
    // Predicated region
    $region14: #{bilstm_forward.1} parent=1 // pred_check
      _
    $region15: #{bilstm_forward.1} parent=1 // pred_check_branch
      %34 = sbr.rel (0) target = $region17
    $region16: #{bilstm_forward.1} parent=1 // pred_region
      _
    $region17: #{bilstm_forward.1} parent=1 // pred_fallthru
      _
    // Predicated region
    $region18: #{bilstm_forward.1} parent=1 // pred_check
      _
    $region19: #{bilstm_forward.1} parent=1 // pred_check_branch
      %36 = sbr.rel (0) target = $region21
    $region20: #{bilstm_forward.1} parent=1 // pred_region
      _
    $region21: #{bilstm_forward.1} parent=1 // pred_fallthru
      _
    // Predicated region
    $region22: #{bilstm_forward.1} parent=1 // pred_check
      _
    $region23: #{bilstm_forward.1} parent=1 // pred_check_branch
      %38 = sbr.rel (0) target = $region25
    $region24: #{bilstm_forward.1} parent=1 // pred_region
      %40 = vsyncadd [#allocation7], 0
      %s41 = sshll.u32 %s5, 4
      %s42 = int_to_ptr.hbm [resolvable:$true] %s41
      %s43 = sshll.u32 [#allocation6], 4
      %s44 = int_to_ptr.vmem [resolvable:$true] %s43
      %49 = dma.hbm_to_vmem [thread:$0]  %s42, 4096, %s44, [#allocation7], 256, 256, 16
    $region25: #{bilstm_forward.1} parent=1 // pred_fallthru
      _
    // Predicated region
    $region26: #{bilstm_forward.1} parent=1 // pred_check
      _
    $region27: #{bilstm_forward.1} parent=1 // pred_check_branch
      %51 = sbr.rel (0) target = $region29
    $region28: #{bilstm_forward.1} parent=1 // pred_region
      _
    $region29: #{bilstm_forward.1} parent=1 // pred_fallthru
      _
    // Predicated region
    $region30: #{bilstm_forward.1} parent=1 // pred_check
      _
    $region31: #{bilstm_forward.1} parent=1 // pred_check_branch
      %53 = sbr.rel (0) target = $region33
    $region32: #{bilstm_forward.1} parent=1 // pred_region
      _
    $region33: #{bilstm_forward.1} parent=1 // pred_fallthru
      _
    // Predicated region
    $region34: #{bilstm_forward.1} parent=1 // pred_check
      _
    $region35: #{bilstm_forward.1} parent=1 // pred_check_branch
      %55 = sbr.rel (0) target = $region37
    $region36: #{bilstm_forward.1} parent=1 // pred_region
      _
    $region37: #{bilstm_forward.1} parent=1 // pred_fallthru
      _
    // Predicated region
    $region38: #{bilstm_forward.1} parent=1 // pred_check
      _
    $region39: #{bilstm_forward.1} parent=1 // pred_check_branch
      %57 = sbr.rel (0) target = $region41
    $region40: #{bilstm_forward.1} parent=1 // pred_region
      %59 = dma.done [#allocation5], 19456
    $region41: #{bilstm_forward.1} parent=1 // pred_fallthru
      _
    // Predicated region
    $region42: #{bilstm_forward.1} parent=1 // pred_check
      _
    $region43: #{bilstm_forward.1} parent=1 // pred_check_branch
      %61 = sbr.rel (0) target = $region45
    $region44: #{bilstm_forward.1} parent=1 // pred_region
      %63 = dma.done [#allocation7], 4096
    $region45: #{bilstm_forward.1} parent=1 // pred_fallthru
      _
    %v65 = vld [vmem:[%s0] sm:$0xff]
    %v66 = vld [vmem:[%s0 + $0x8] sm:$0xf]
    %v67 = vld [vmem:[%s0 + $0xc] sm:$0xff]
    %v68 = vld [vmem:[%s0 + $0x14] sm:$0xf]
    %v69 = vld [vmem:[%s0 + $0x18] sm:$0xff]
    %v70 = vld [vmem:[%s0 + $0x20] sm:$0xf]
    %v71 = vld [vmem:[%s0 + $0x24] sm:$0xff]
    %v72 = vld [vmem:[%s0 + $0x2c] sm:$0xf]
    %v73 = vld [vmem:[%s0 + $0x30] sm:$0xff]
    %v74 = vld [vmem:[%s0 + $0x38] sm:$0xf]
    %v75 = vld [vmem:[%s0 + $0x3c] sm:$0xff]
    %v76 = vld [vmem:[%s0 + $0x44] sm:$0xf]
    %v77 = vld [vmem:[%s0 + $0x48] sm:$0xff]
    %v78 = vld [vmem:[%s0 + $0x50] sm:$0xf]
    %v79 = vld [vmem:[%s0 + $0x54] sm:$0xff]
    %v80 = vld [vmem:[%s0 + $0x5c] sm:$0xf]
    %v81 = vld [vmem:[#allocation4] sm:$0xff]
    %v82 = vld [vmem:[#allocation4 + $0x8] sm:$0xff]
    %v83 = vld [vmem:[#allocation4 + $0x10] sm:$0xff]
    %v84 = vld [vmem:[#allocation4 + $0x18] sm:$0xff]
    %v85 = vld [vmem:[#allocation4 + $0x20] sm:$0xff]
    %v86 = vld [vmem:[#allocation4 + $0x28] sm:$0xff]
    %v87 = vld [vmem:[#allocation4 + $0x30] sm:$0xff]
    %v88 = vld [vmem:[#allocation4 + $0x38] sm:$0xff]
    %v89 = vld [vmem:[#allocation4 + $0x40] sm:$0xff]
    %v90 = vld [vmem:[#allocation4 + $0x48] sm:$0xff]
    %v91 = vld [vmem:[#allocation4 + $0x50] sm:$0xff]
    %v92 = vld [vmem:[#allocation4 + $0x58] sm:$0xff]
    %v93 = vld [vmem:[#allocation4 + $0x60] sm:$0xff]
    %v94 = vld [vmem:[#allocation4 + $0x68] sm:$0xff]
    %v95 = vld [vmem:[#allocation4 + $0x70] sm:$0xff]
    %v96 = vld [vmem:[#allocation4 + $0x78] sm:$0xff]
    %v97 = vld [vmem:[#allocation4 + $0x80] sm:$0xff]
    %v98 = vld [vmem:[#allocation4 + $0x88] sm:$0xff]
    %v99 = vld [vmem:[#allocation4 + $0x90] sm:$0xff]
    %v100 = vld [vmem:[#allocation4 + $0x98] sm:$0xff]
    %v101 = vld [vmem:[#allocation4 + $0xa0] sm:$0xff]
    %v102 = vld [vmem:[#allocation4 + $0xa8] sm:$0xff]
    %v103 = vld [vmem:[#allocation4 + $0xb0] sm:$0xff]
    %v104 = vld [vmem:[#allocation4 + $0xb8] sm:$0xff]
    %v105 = vld [vmem:[#allocation4 + $0xc0] sm:$0xff]
    %v106 = vld [vmem:[#allocation4 + $0xc8] sm:$0xff]
    %v107 = vld [vmem:[#allocation4 + $0xd0] sm:$0xff]
    %v108 = vld [vmem:[#allocation4 + $0xd8] sm:$0xff]
    %v109 = vld [vmem:[#allocation4 + $0xe0] sm:$0xff]
    %v110 = vld [vmem:[#allocation4 + $0xe8] sm:$0xff]
    %v111 = vld [vmem:[#allocation4 + $0xf0] sm:$0xff]
    %v112 = vld [vmem:[#allocation4 + $0xf8] sm:$0xff]
    %v113 = vld [vmem:[#allocation4 + $0x100] sm:$0xff]
    %v114 = vld [vmem:[#allocation4 + $0x108] sm:$0xff]
    %v115 = vld [vmem:[#allocation4 + $0x110] sm:$0xff]
    %v116 = vld [vmem:[#allocation4 + $0x118] sm:$0xff]
    %v117 = vld [vmem:[#allocation4 + $0x120] sm:$0xff]
    %v118 = vld [vmem:[#allocation4 + $0x128] sm:$0xff]
    %v119 = vld [vmem:[#allocation4 + $0x130] sm:$0xff]
    %v120 = vld [vmem:[#allocation4 + $0x138] sm:$0xff]
    %v121 = vld [vmem:[#allocation4 + $0x140] sm:$0xff]
    %v122 = vld [vmem:[#allocation4 + $0x148] sm:$0xff]
    %v123 = vld [vmem:[#allocation4 + $0x150] sm:$0xff]
    %v124 = vld [vmem:[#allocation4 + $0x158] sm:$0xff]
    %v125 = vld [vmem:[#allocation4 + $0x160] sm:$0xff]
    %v126 = vld [vmem:[#allocation4 + $0x168] sm:$0xff]
    %v127 = vld [vmem:[#allocation4 + $0x170] sm:$0xff]
    %v128 = vld [vmem:[#allocation4 + $0x178] sm:$0xff]
    %v129 = vld [vmem:[#allocation4 + $0x180] sm:$0xff]
    %v130 = vld [vmem:[#allocation4 + $0x188] sm:$0xff]
    %v131 = vld [vmem:[#allocation4 + $0x190] sm:$0xff]
    %v132 = vld [vmem:[#allocation4 + $0x198] sm:$0xff]
    %v133 = vld [vmem:[#allocation4 + $0x1a0] sm:$0xff]
    %v134 = vld [vmem:[#allocation4 + $0x1a8] sm:$0xff]
    %v135 = vld [vmem:[#allocation4 + $0x1b0] sm:$0xff]
    %v136 = vld [vmem:[#allocation4 + $0x1b8] sm:$0xff]
    %v137 = vld [vmem:[#allocation4 + $0x1c0] sm:$0xff]
    %v138 = vld [vmem:[#allocation4 + $0x1c8] sm:$0xff]
    %v139 = vld [vmem:[#allocation4 + $0x1d0] sm:$0xff]
    %v140 = vld [vmem:[#allocation4 + $0x1d8] sm:$0xff]
    %v141 = vld [vmem:[#allocation4 + $0x1e0] sm:$0xff]
    %v142 = vld [vmem:[#allocation4 + $0x1e8] sm:$0xff]
    %v143 = vld [vmem:[#allocation4 + $0x1f0] sm:$0xff]
    %v144 = vld [vmem:[#allocation4 + $0x1f8] sm:$0xff]
    %v145 = vld [vmem:[#allocation4 + $0x200] sm:$0xff]
    %v146 = vld [vmem:[#allocation4 + $0x208] sm:$0xff]
    %v147 = vld [vmem:[#allocation4 + $0x210] sm:$0xff]
    %v148 = vld [vmem:[#allocation4 + $0x218] sm:$0xff]
    %v149 = vld [vmem:[#allocation4 + $0x220] sm:$0xff]
    %v150 = vld [vmem:[#allocation4 + $0x228] sm:$0xff]
    %v151 = vld [vmem:[#allocation4 + $0x230] sm:$0xff]
    %v152 = vld [vmem:[#allocation4 + $0x238] sm:$0xff]
    %v153 = vld [vmem:[#allocation4 + $0x240] sm:$0xff]
    %v154 = vld [vmem:[#allocation4 + $0x248] sm:$0xff]
    %v155 = vld [vmem:[#allocation4 + $0x250] sm:$0xff]
    %v156 = vld [vmem:[#allocation4 + $0x258] sm:$0xff]
    %v157 = vld [vmem:[#allocation4 + $0x260] sm:$0xff]
    %v158 = vld [vmem:[#allocation4 + $0x268] sm:$0xff]
    %v159 = vld [vmem:[#allocation4 + $0x270] sm:$0xff]
    %v160 = vld [vmem:[#allocation4 + $0x278] sm:$0xff]
    %v161 = vld [vmem:[#allocation4 + $0x280] sm:$0xff]
    %v162 = vld [vmem:[#allocation4 + $0x288] sm:$0xff]
    %v163 = vld [vmem:[#allocation4 + $0x290] sm:$0xff]
    %v164 = vld [vmem:[#allocation4 + $0x298] sm:$0xff]
    %v165 = vld [vmem:[#allocation4 + $0x2a0] sm:$0xff]
    %v166 = vld [vmem:[#allocation4 + $0x2a8] sm:$0xff]
    %v167 = vld [vmem:[#allocation4 + $0x2b0] sm:$0xff]
    %v168 = vld [vmem:[#allocation4 + $0x2b8] sm:$0xff]
    %v169 = vld [vmem:[#allocation4 + $0x2c0] sm:$0xff]
    %v170 = vld [vmem:[#allocation4 + $0x2c8] sm:$0xff]
    %v171 = vld [vmem:[#allocation4 + $0x2d0] sm:$0xff]
    %v172 = vld [vmem:[#allocation4 + $0x2d8] sm:$0xff]
    %v173 = vld [vmem:[#allocation4 + $0x2e0] sm:$0xff]
    %v174 = vld [vmem:[#allocation4 + $0x2e8] sm:$0xff]
    %v175 = vld [vmem:[#allocation4 + $0x2f0] sm:$0xff]
    %v176 = vld [vmem:[#allocation4 + $0x2f8] sm:$0xff]
    %v177 = vld [vmem:[#allocation4 + $0x300] sm:$0xff]
    %v178 = vld [vmem:[#allocation4 + $0x308] sm:$0xff]
    %v179 = vld [vmem:[#allocation4 + $0x310] sm:$0xff]
    %v180 = vld [vmem:[#allocation4 + $0x318] sm:$0xff]
    %v181 = vld [vmem:[#allocation4 + $0x320] sm:$0xff]
    %v182 = vld [vmem:[#allocation4 + $0x328] sm:$0xff]
    %v183 = vld [vmem:[#allocation4 + $0x330] sm:$0xff]
    %v184 = vld [vmem:[#allocation4 + $0x338] sm:$0xff]
    %v185 = vld [vmem:[#allocation4 + $0x340] sm:$0xff]
    %v186 = vld [vmem:[#allocation4 + $0x348] sm:$0xff]
    %v187 = vld [vmem:[#allocation4 + $0x350] sm:$0xff]
    %v188 = vld [vmem:[#allocation4 + $0x358] sm:$0xff]
    %v189 = vld [vmem:[#allocation4 + $0x360] sm:$0xff]
    %v190 = vld [vmem:[#allocation4 + $0x368] sm:$0xff]
    %v191 = vld [vmem:[#allocation4 + $0x370] sm:$0xff]
    %v192 = vld [vmem:[#allocation4 + $0x378] sm:$0xff]
    %v193 = vld [vmem:[#allocation4 + $0x380] sm:$0xff]
    %v194 = vld [vmem:[#allocation4 + $0x388] sm:$0xff]
    %v195 = vld [vmem:[#allocation4 + $0x390] sm:$0xff]
    %v196 = vld [vmem:[#allocation4 + $0x398] sm:$0xff]
    %v197 = vld [vmem:[#allocation4 + $0x3a0] sm:$0xff]
    %v198 = vld [vmem:[#allocation4 + $0x3a8] sm:$0xff]
    %v199 = vld [vmem:[#allocation4 + $0x3b0] sm:$0xff]
    %v200 = vld [vmem:[#allocation4 + $0x3b8] sm:$0xff]
    %v201 = vld [vmem:[#allocation4 + $0x3c0] sm:$0xff]
    %v202 = vld [vmem:[#allocation4 + $0x3c8] sm:$0xff]
    %v203 = vld [vmem:[#allocation4 + $0x3d0] sm:$0xff]
    %v204 = vld [vmem:[#allocation4 + $0x3d8] sm:$0xff]
    %v205 = vld [vmem:[#allocation4 + $0x3e0] sm:$0xff]
    %v206 = vld [vmem:[#allocation4 + $0x3e8] sm:$0xff]
    %v207 = vld [vmem:[#allocation4 + $0x3f0] sm:$0xff]
    %v208 = vld [vmem:[#allocation4 + $0x3f8] sm:$0xff]
    %v209 = vld [vmem:[#allocation4 + $0x400] sm:$0xff]
    %v210 = vld [vmem:[#allocation4 + $0x408] sm:$0xff]
    %v211 = vld [vmem:[#allocation4 + $0x410] sm:$0xff]
    %v212 = vld [vmem:[#allocation4 + $0x418] sm:$0xff]
    %v213 = vld [vmem:[#allocation4 + $0x420] sm:$0xff]
    %v214 = vld [vmem:[#allocation4 + $0x428] sm:$0xff]
    %v215 = vld [vmem:[#allocation4 + $0x430] sm:$0xff]
    %v216 = vld [vmem:[#allocation4 + $0x438] sm:$0xff]
    %v217 = vld [vmem:[#allocation4 + $0x440] sm:$0xff]
    %v218 = vld [vmem:[#allocation4 + $0x448] sm:$0xff]
    %v219 = vld [vmem:[#allocation4 + $0x450] sm:$0xff]
    %v220 = vld [vmem:[#allocation4 + $0x458] sm:$0xff]
    %v221 = vld [vmem:[#allocation4 + $0x460] sm:$0xff]
    %v222 = vld [vmem:[#allocation4 + $0x468] sm:$0xff]
    %v223 = vld [vmem:[#allocation4 + $0x470] sm:$0xff]
    %v224 = vld [vmem:[#allocation4 + $0x478] sm:$0xff]
    %v225 = vld [vmem:[#allocation4 + $0x480] sm:$0xff]
    %v226 = vld [vmem:[#allocation4 + $0x488] sm:$0xff]
    %v227 = vld [vmem:[#allocation4 + $0x490] sm:$0xff]
    %v228 = vld [vmem:[#allocation4 + $0x498] sm:$0xff]
    %v229 = vld [vmem:[#allocation4 + $0x4a0] sm:$0x33]
    %v230 = vld [vmem:[#allocation4 + $0x4a8] sm:$0x33]
    %v231 = vld [vmem:[#allocation4 + $0x4b0] sm:$0x33]
    %v232 = vld [vmem:[#allocation4 + $0x4b8] sm:$0x33]
    %v233 = vld [vmem:[%s3] sm:$0xff]
    %v235 = vperm.slane %v233, 0
    %v236 = vperm.slane %v233, 1
    %v237 = vperm.slane %v233, 2
    %v238 = vperm.slane %v233, 3
    %v239 = vperm.slane %v233, 4
    %v240 = vperm.slane %v233, 5
    %v241 = vperm.slane %v233, 6
    %v242 = vperm.slane %v233, 7
    %v267 = vunpack.c.l.b16 %v65
    %v268 = vunpack.c.h.b16 %v65
    %v269 = vunpack.c.l.b16 %v66
    %v270 = vunpack.c.l.b16 %v67
    %v271 = vunpack.c.h.b16 %v67
    %v272 = vunpack.c.l.b16 %v68
    %v273 = vunpack.c.l.b16 %v69
    %v274 = vunpack.c.h.b16 %v69
    %v275 = vunpack.c.l.b16 %v70
    %v276 = vunpack.c.l.b16 %v71
    %v277 = vunpack.c.h.b16 %v71
    %v278 = vunpack.c.l.b16 %v72
    %v279 = vunpack.c.l.b16 %v73
    %v280 = vunpack.c.h.b16 %v73
    %v281 = vunpack.c.l.b16 %v74
    %v282 = vunpack.c.l.b16 %v75
    %v283 = vunpack.c.h.b16 %v75
    %v284 = vunpack.c.l.b16 %v76
    %v285 = vunpack.c.l.b16 %v77
    %v286 = vunpack.c.h.b16 %v77
    %v287 = vunpack.c.l.b16 %v78
    %v288 = vunpack.c.l.b16 %v79
    %v289 = vunpack.c.h.b16 %v79
    %v290 = vunpack.c.l.b16 %v80
    %v291 = vpack.c.b16 %v270, %v267
    %v292 = vpack.c.b16 %v271, %v268
    %v293 = vpack.c.b16 %v272, %v269
    %v294 = vpack.c.b16 %v276, %v273
    %v295 = vpack.c.b16 %v277, %v274
    %v296 = vpack.c.b16 %v278, %v275
    %v297 = vpack.c.b16 %v282, %v279
    %v298 = vpack.c.b16 %v283, %v280
    %v299 = vpack.c.b16 %v284, %v281
    %v300 = vpack.c.b16 %v288, %v285
    %v301 = vpack.c.b16 %v289, %v286
    %v302 = vpack.c.b16 %v290, %v287
    %v463 = vunpack.c.l.b16 %v81
    %v464 = vunpack.c.h.b16 %v81
    %v465 = vunpack.c.l.b16 %v82
    %v466 = vunpack.c.h.b16 %v82
    %v467 = vunpack.c.l.b16 %v83
    %v468 = vunpack.c.h.b16 %v83
    %v469 = vunpack.c.l.b16 %v84
    %v470 = vunpack.c.h.b16 %v84
    %v471 = vunpack.c.l.b16 %v85
    %v472 = vunpack.c.h.b16 %v85
    %v473 = vunpack.c.l.b16 %v86
    %v474 = vunpack.c.h.b16 %v86
    %v475 = vunpack.c.l.b16 %v87
    %v476 = vunpack.c.h.b16 %v87
    %v477 = vunpack.c.l.b16 %v88
    %v478 = vunpack.c.h.b16 %v88
    %v479 = vunpack.c.l.b16 %v89
    %v480 = vunpack.c.h.b16 %v89
    %v481 = vunpack.c.l.b16 %v90
    %v482 = vunpack.c.h.b16 %v90
    %v483 = vunpack.c.l.b16 %v91
    %v484 = vunpack.c.h.b16 %v91
    %v485 = vunpack.c.l.b16 %v92
    %v486 = vunpack.c.h.b16 %v92
    %v487 = vunpack.c.l.b16 %v93
    %v488 = vunpack.c.h.b16 %v93
    %v489 = vunpack.c.l.b16 %v94
    %v490 = vunpack.c.h.b16 %v94
    %v491 = vunpack.c.l.b16 %v95
    %v492 = vunpack.c.h.b16 %v95
    %v493 = vunpack.c.l.b16 %v96
    %v494 = vunpack.c.h.b16 %v96
    %v495 = vunpack.c.l.b16 %v97
    %v496 = vunpack.c.h.b16 %v97
    %v497 = vunpack.c.l.b16 %v98
    %v498 = vunpack.c.h.b16 %v98
    %v499 = vunpack.c.l.b16 %v99
    %v500 = vunpack.c.h.b16 %v99
    %v501 = vunpack.c.l.b16 %v100
    %v502 = vunpack.c.h.b16 %v100
    %v503 = vunpack.c.l.b16 %v101
    %v504 = vunpack.c.h.b16 %v101
    %v505 = vunpack.c.l.b16 %v102
    %v506 = vunpack.c.h.b16 %v102
    %v507 = vunpack.c.l.b16 %v103
    %v508 = vunpack.c.h.b16 %v103
    %v509 = vunpack.c.l.b16 %v104
    %v510 = vunpack.c.h.b16 %v104
    %v511 = vunpack.c.l.b16 %v105
    %v512 = vunpack.c.h.b16 %v105
    %v513 = vunpack.c.l.b16 %v106
    %v514 = vunpack.c.h.b16 %v106
    %v515 = vunpack.c.l.b16 %v107
    %v516 = vunpack.c.h.b16 %v107
    %v517 = vunpack.c.l.b16 %v108
    %v518 = vunpack.c.h.b16 %v108
    %v519 = vunpack.c.l.b16 %v109
    %v520 = vunpack.c.h.b16 %v109
    %v521 = vunpack.c.l.b16 %v110
    %v522 = vunpack.c.h.b16 %v110
    %v523 = vunpack.c.l.b16 %v111
    %v524 = vunpack.c.h.b16 %v111
    %v525 = vunpack.c.l.b16 %v112
    %v526 = vunpack.c.h.b16 %v112
    %v527 = vunpack.c.l.b16 %v113
    %v528 = vunpack.c.h.b16 %v113
    %v529 = vunpack.c.l.b16 %v114
    %v530 = vunpack.c.h.b16 %v114
    %v531 = vunpack.c.l.b16 %v115
    %v532 = vunpack.c.h.b16 %v115
    %v533 = vunpack.c.l.b16 %v116
    %v534 = vunpack.c.h.b16 %v116
    %v535 = vunpack.c.l.b16 %v117
    %v536 = vunpack.c.h.b16 %v117
    %v537 = vunpack.c.l.b16 %v118
    %v538 = vunpack.c.h.b16 %v118
    %v539 = vunpack.c.l.b16 %v119
    %v540 = vunpack.c.h.b16 %v119
    %v541 = vunpack.c.l.b16 %v120
    %v542 = vunpack.c.h.b16 %v120
    %v543 = vunpack.c.l.b16 %v121
    %v544 = vunpack.c.h.b16 %v121
    %v545 = vunpack.c.l.b16 %v122
    %v546 = vunpack.c.h.b16 %v122
    %v547 = vunpack.c.l.b16 %v123
    %v548 = vunpack.c.h.b16 %v123
    %v549 = vunpack.c.l.b16 %v124
    %v550 = vunpack.c.h.b16 %v124
    %v551 = vunpack.c.l.b16 %v125
    %v552 = vunpack.c.h.b16 %v125
    %v553 = vunpack.c.l.b16 %v126
    %v554 = vunpack.c.h.b16 %v126
    %v555 = vunpack.c.l.b16 %v127
    %v556 = vunpack.c.h.b16 %v127
    %v557 = vunpack.c.l.b16 %v128
    %v558 = vunpack.c.h.b16 %v128
    %v559 = vunpack.c.l.b16 %v129
    %v560 = vunpack.c.h.b16 %v129
    %v561 = vunpack.c.l.b16 %v130
    %v562 = vunpack.c.h.b16 %v130
    %v563 = vunpack.c.l.b16 %v131
    %v564 = vunpack.c.h.b16 %v131
    %v565 = vunpack.c.l.b16 %v132
    %v566 = vunpack.c.h.b16 %v132
    %v567 = vunpack.c.l.b16 %v133
    %v568 = vunpack.c.h.b16 %v133
    %v569 = vunpack.c.l.b16 %v134
    %v570 = vunpack.c.h.b16 %v134
    %v571 = vunpack.c.l.b16 %v135
    %v572 = vunpack.c.h.b16 %v135
    %v573 = vunpack.c.l.b16 %v136
    %v574 = vunpack.c.h.b16 %v136
    %v575 = vunpack.c.l.b16 %v137
    %v576 = vunpack.c.h.b16 %v137
    %v577 = vunpack.c.l.b16 %v138
    %v578 = vunpack.c.h.b16 %v138
    %v579 = vunpack.c.l.b16 %v139
    %v580 = vunpack.c.h.b16 %v139
    %v581 = vunpack.c.l.b16 %v140
    %v582 = vunpack.c.h.b16 %v140
    %v583 = vunpack.c.l.b16 %v141
    %v584 = vunpack.c.h.b16 %v141
    %v585 = vunpack.c.l.b16 %v142
    %v586 = vunpack.c.h.b16 %v142
    %v587 = vunpack.c.l.b16 %v143
    %v588 = vunpack.c.h.b16 %v143
    %v589 = vunpack.c.l.b16 %v144
    %v590 = vunpack.c.h.b16 %v144
    %v591 = vunpack.c.l.b16 %v145
    %v592 = vunpack.c.h.b16 %v145
    %v593 = vunpack.c.l.b16 %v146
    %v594 = vunpack.c.h.b16 %v146
    %v595 = vunpack.c.l.b16 %v147
    %v596 = vunpack.c.h.b16 %v147
    %v597 = vunpack.c.l.b16 %v148
    %v598 = vunpack.c.h.b16 %v148
    %v599 = vunpack.c.l.b16 %v149
    %v600 = vunpack.c.h.b16 %v149
    %v601 = vunpack.c.l.b16 %v150
    %v602 = vunpack.c.h.b16 %v150
    %v603 = vunpack.c.l.b16 %v151
    %v604 = vunpack.c.h.b16 %v151
    %v605 = vunpack.c.l.b16 %v152
    %v606 = vunpack.c.h.b16 %v152
    %v607 = vunpack.c.l.b16 %v153
    %v608 = vunpack.c.h.b16 %v153
    %v609 = vunpack.c.l.b16 %v154
    %v610 = vunpack.c.h.b16 %v154
    %v611 = vunpack.c.l.b16 %v155
    %v612 = vunpack.c.h.b16 %v155
    %v613 = vunpack.c.l.b16 %v156
    %v614 = vunpack.c.h.b16 %v156
    %v615 = vunpack.c.l.b16 %v157
    %v616 = vunpack.c.h.b16 %v157
    %v617 = vunpack.c.l.b16 %v158
    %v618 = vunpack.c.h.b16 %v158
    %v619 = vunpack.c.l.b16 %v159
    %v620 = vunpack.c.h.b16 %v159
    %v621 = vunpack.c.l.b16 %v160
    %v622 = vunpack.c.h.b16 %v160
    %v623 = vunpack.c.l.b16 %v161
    %v624 = vunpack.c.h.b16 %v161
    %v625 = vunpack.c.l.b16 %v162
    %v626 = vunpack.c.h.b16 %v162
    %v627 = vunpack.c.l.b16 %v163
    %v628 = vunpack.c.h.b16 %v163
    %v629 = vunpack.c.l.b16 %v164
    %v630 = vunpack.c.h.b16 %v164
    %v631 = vunpack.c.l.b16 %v165
    %v632 = vunpack.c.h.b16 %v165
    %v633 = vunpack.c.l.b16 %v166
    %v634 = vunpack.c.h.b16 %v166
    %v635 = vunpack.c.l.b16 %v167
    %v636 = vunpack.c.h.b16 %v167
    %v637 = vunpack.c.l.b16 %v168
    %v638 = vunpack.c.h.b16 %v168
    %v639 = vunpack.c.l.b16 %v169
    %v640 = vunpack.c.h.b16 %v169
    %v641 = vunpack.c.l.b16 %v170
    %v642 = vunpack.c.h.b16 %v170
    %v643 = vunpack.c.l.b16 %v171
    %v644 = vunpack.c.h.b16 %v171
    %v645 = vunpack.c.l.b16 %v172
    %v646 = vunpack.c.h.b16 %v172
    %v647 = vunpack.c.l.b16 %v173
    %v648 = vunpack.c.h.b16 %v173
    %v649 = vunpack.c.l.b16 %v174
    %v650 = vunpack.c.h.b16 %v174
    %v651 = vunpack.c.l.b16 %v175
    %v652 = vunpack.c.h.b16 %v175
    %v653 = vunpack.c.l.b16 %v176
    %v654 = vunpack.c.h.b16 %v176
    %v655 = vunpack.c.l.b16 %v177
    %v656 = vunpack.c.h.b16 %v177
    %v657 = vunpack.c.l.b16 %v178
    %v658 = vunpack.c.h.b16 %v178
    %v659 = vunpack.c.l.b16 %v179
    %v660 = vunpack.c.h.b16 %v179
    %v661 = vunpack.c.l.b16 %v180
    %v662 = vunpack.c.h.b16 %v180
    %v663 = vunpack.c.l.b16 %v181
    %v664 = vunpack.c.h.b16 %v181
    %v665 = vunpack.c.l.b16 %v182
    %v666 = vunpack.c.h.b16 %v182
    %v667 = vunpack.c.l.b16 %v183
    %v668 = vunpack.c.h.b16 %v183
    %v669 = vunpack.c.l.b16 %v184
    %v670 = vunpack.c.h.b16 %v184
    %v671 = vunpack.c.l.b16 %v185
    %v672 = vunpack.c.h.b16 %v185
    %v673 = vunpack.c.l.b16 %v186
    %v674 = vunpack.c.h.b16 %v186
    %v675 = vunpack.c.l.b16 %v187
    %v676 = vunpack.c.h.b16 %v187
    %v677 = vunpack.c.l.b16 %v188
    %v678 = vunpack.c.h.b16 %v188
    %v679 = vunpack.c.l.b16 %v189
    %v680 = vunpack.c.h.b16 %v189
    %v681 = vunpack.c.l.b16 %v190
    %v682 = vunpack.c.h.b16 %v190
    %v683 = vunpack.c.l.b16 %v191
    %v684 = vunpack.c.h.b16 %v191
    %v685 = vunpack.c.l.b16 %v192
    %v686 = vunpack.c.h.b16 %v192
    %v687 = vunpack.c.l.b16 %v193
    %v688 = vunpack.c.h.b16 %v193
    %v689 = vunpack.c.l.b16 %v194
    %v690 = vunpack.c.h.b16 %v194
    %v691 = vunpack.c.l.b16 %v195
    %v692 = vunpack.c.h.b16 %v195
    %v693 = vunpack.c.l.b16 %v196
    %v694 = vunpack.c.h.b16 %v196
    %v695 = vunpack.c.l.b16 %v197
    %v696 = vunpack.c.h.b16 %v197
    %v697 = vunpack.c.l.b16 %v198
    %v698 = vunpack.c.h.b16 %v198
    %v699 = vunpack.c.l.b16 %v199
    %v700 = vunpack.c.h.b16 %v199
    %v701 = vunpack.c.l.b16 %v200
    %v702 = vunpack.c.h.b16 %v200
    %v703 = vunpack.c.l.b16 %v201
    %v704 = vunpack.c.h.b16 %v201
    %v705 = vunpack.c.l.b16 %v202
    %v706 = vunpack.c.h.b16 %v202
    %v707 = vunpack.c.l.b16 %v203
    %v708 = vunpack.c.h.b16 %v203
    %v709 = vunpack.c.l.b16 %v204
    %v710 = vunpack.c.h.b16 %v204
    %v711 = vunpack.c.l.b16 %v205
    %v712 = vunpack.c.h.b16 %v205
    %v713 = vunpack.c.l.b16 %v206
    %v714 = vunpack.c.h.b16 %v206
    %v715 = vunpack.c.l.b16 %v207
    %v716 = vunpack.c.h.b16 %v207
    %v717 = vunpack.c.l.b16 %v208
    %v718 = vunpack.c.h.b16 %v208
    %v719 = vunpack.c.l.b16 %v209
    %v720 = vunpack.c.h.b16 %v209
    %v721 = vunpack.c.l.b16 %v210
    %v722 = vunpack.c.h.b16 %v210
    %v723 = vunpack.c.l.b16 %v211
    %v724 = vunpack.c.h.b16 %v211
    %v725 = vunpack.c.l.b16 %v212
    %v726 = vunpack.c.h.b16 %v212
    %v727 = vunpack.c.l.b16 %v213
    %v728 = vunpack.c.h.b16 %v213
    %v729 = vunpack.c.l.b16 %v214
    %v730 = vunpack.c.h.b16 %v214
    %v731 = vunpack.c.l.b16 %v215
    %v732 = vunpack.c.h.b16 %v215
    %v733 = vunpack.c.l.b16 %v216
    %v734 = vunpack.c.h.b16 %v216
    %v735 = vunpack.c.l.b16 %v217
    %v736 = vunpack.c.h.b16 %v217
    %v737 = vunpack.c.l.b16 %v218
    %v738 = vunpack.c.h.b16 %v218
    %v739 = vunpack.c.l.b16 %v219
    %v740 = vunpack.c.h.b16 %v219
    %v741 = vunpack.c.l.b16 %v220
    %v742 = vunpack.c.h.b16 %v220
    %v743 = vunpack.c.l.b16 %v221
    %v744 = vunpack.c.h.b16 %v221
    %v745 = vunpack.c.l.b16 %v222
    %v746 = vunpack.c.h.b16 %v222
    %v747 = vunpack.c.l.b16 %v223
    %v748 = vunpack.c.h.b16 %v223
    %v749 = vunpack.c.l.b16 %v224
    %v750 = vunpack.c.h.b16 %v224
    %v751 = vunpack.c.l.b16 %v225
    %v752 = vunpack.c.h.b16 %v225
    %v753 = vunpack.c.l.b16 %v226
    %v754 = vunpack.c.h.b16 %v226
    %v755 = vunpack.c.l.b16 %v227
    %v756 = vunpack.c.h.b16 %v227
    %v757 = vunpack.c.l.b16 %v228
    %v758 = vunpack.c.h.b16 %v228
    %v759 = vunpack.c.l.b16 %v229
    %v760 = vunpack.c.h.b16 %v229
    %v761 = vunpack.c.l.b16 %v230
    %v762 = vunpack.c.h.b16 %v230
    %v763 = vunpack.c.l.b16 %v231
    %v764 = vunpack.c.h.b16 %v231
    %v765 = vunpack.c.l.b16 %v232
    %v766 = vunpack.c.h.b16 %v232
    %v767 = vpack.c.b16 %v471, %v463
    %v768 = vpack.c.b16 %v472, %v464
    %v769 = vpack.c.b16 %v473, %v465
    %v770 = vpack.c.b16 %v474, %v466
    %v771 = vpack.c.b16 %v475, %v467
    %v772 = vpack.c.b16 %v476, %v468
    %v773 = vpack.c.b16 %v477, %v469
    %v774 = vpack.c.b16 %v478, %v470
    %v775 = vpack.c.b16 %v487, %v479
    %v776 = vpack.c.b16 %v488, %v480
    %v777 = vpack.c.b16 %v489, %v481
    %v778 = vpack.c.b16 %v490, %v482
    %v779 = vpack.c.b16 %v491, %v483
    %v780 = vpack.c.b16 %v492, %v484
    %v781 = vpack.c.b16 %v493, %v485
    %v782 = vpack.c.b16 %v494, %v486
    %v783 = vpack.c.b16 %v503, %v495
    %v784 = vpack.c.b16 %v504, %v496
    %v785 = vpack.c.b16 %v505, %v497
    %v786 = vpack.c.b16 %v506, %v498
    %v787 = vpack.c.b16 %v507, %v499
    %v788 = vpack.c.b16 %v508, %v500
    %v789 = vpack.c.b16 %v509, %v501
    %v790 = vpack.c.b16 %v510, %v502
    %v791 = vpack.c.b16 %v519, %v511
    %v792 = vpack.c.b16 %v520, %v512
    %v793 = vpack.c.b16 %v521, %v513
    %v794 = vpack.c.b16 %v522, %v514
    %v795 = vpack.c.b16 %v523, %v515
    %v796 = vpack.c.b16 %v524, %v516
    %v797 = vpack.c.b16 %v525, %v517
    %v798 = vpack.c.b16 %v526, %v518
    %v799 = vpack.c.b16 %v535, %v527
    %v800 = vpack.c.b16 %v536, %v528
    %v801 = vpack.c.b16 %v537, %v529
    %v802 = vpack.c.b16 %v538, %v530
    %v803 = vpack.c.b16 %v539, %v531
    %v804 = vpack.c.b16 %v540, %v532
    %v805 = vpack.c.b16 %v541, %v533
    %v806 = vpack.c.b16 %v542, %v534
    %v807 = vpack.c.b16 %v551, %v543
    %v808 = vpack.c.b16 %v552, %v544
    %v809 = vpack.c.b16 %v553, %v545
    %v810 = vpack.c.b16 %v554, %v546
    %v811 = vpack.c.b16 %v555, %v547
    %v812 = vpack.c.b16 %v556, %v548
    %v813 = vpack.c.b16 %v557, %v549
    %v814 = vpack.c.b16 %v558, %v550
    %v815 = vpack.c.b16 %v567, %v559
    %v816 = vpack.c.b16 %v568, %v560
    %v817 = vpack.c.b16 %v569, %v561
    %v818 = vpack.c.b16 %v570, %v562
    %v819 = vpack.c.b16 %v571, %v563
    %v820 = vpack.c.b16 %v572, %v564
    %v821 = vpack.c.b16 %v573, %v565
    %v822 = vpack.c.b16 %v574, %v566
    %v823 = vpack.c.b16 %v583, %v575
    %v824 = vpack.c.b16 %v584, %v576
    %v825 = vpack.c.b16 %v585, %v577
    %v826 = vpack.c.b16 %v586, %v578
    %v827 = vpack.c.b16 %v587, %v579
    %v828 = vpack.c.b16 %v588, %v580
    %v829 = vpack.c.b16 %v589, %v581
    %v830 = vpack.c.b16 %v590, %v582
    %v831 = vpack.c.b16 %v599, %v591
    %v832 = vpack.c.b16 %v600, %v592
    %v833 = vpack.c.b16 %v601, %v593
    %v834 = vpack.c.b16 %v602, %v594
    %v835 = vpack.c.b16 %v603, %v595
    %v836 = vpack.c.b16 %v604, %v596
    %v837 = vpack.c.b16 %v605, %v597
    %v838 = vpack.c.b16 %v606, %v598
    %v839 = vpack.c.b16 %v615, %v607
    %v840 = vpack.c.b16 %v616, %v608
    %v841 = vpack.c.b16 %v617, %v609
    %v842 = vpack.c.b16 %v618, %v610
    %v843 = vpack.c.b16 %v619, %v611
    %v844 = vpack.c.b16 %v620, %v612
    %v845 = vpack.c.b16 %v621, %v613
    %v846 = vpack.c.b16 %v622, %v614
    %v847 = vpack.c.b16 %v631, %v623
    %v848 = vpack.c.b16 %v632, %v624
    %v849 = vpack.c.b16 %v633, %v625
    %v850 = vpack.c.b16 %v634, %v626
    %v851 = vpack.c.b16 %v635, %v627
    %v852 = vpack.c.b16 %v636, %v628
    %v853 = vpack.c.b16 %v637, %v629
    %v854 = vpack.c.b16 %v638, %v630
    %v855 = vpack.c.b16 %v647, %v639
    %v856 = vpack.c.b16 %v648, %v640
    %v857 = vpack.c.b16 %v649, %v641
    %v858 = vpack.c.b16 %v650, %v642
    %v859 = vpack.c.b16 %v651, %v643
    %v860 = vpack.c.b16 %v652, %v644
    %v861 = vpack.c.b16 %v653, %v645
    %v862 = vpack.c.b16 %v654, %v646
    %v863 = vpack.c.b16 %v663, %v655
    %v864 = vpack.c.b16 %v664, %v656
    %v865 = vpack.c.b16 %v665, %v657
    %v866 = vpack.c.b16 %v666, %v658
    %v867 = vpack.c.b16 %v667, %v659
    %v868 = vpack.c.b16 %v668, %v660
    %v869 = vpack.c.b16 %v669, %v661
    %v870 = vpack.c.b16 %v670, %v662
    %v871 = vpack.c.b16 %v679, %v671
    %v872 = vpack.c.b16 %v680, %v672
    %v873 = vpack.c.b16 %v681, %v673
    %v874 = vpack.c.b16 %v682, %v674
    %v875 = vpack.c.b16 %v683, %v675
    %v876 = vpack.c.b16 %v684, %v676
    %v877 = vpack.c.b16 %v685, %v677
    %v878 = vpack.c.b16 %v686, %v678
    %v879 = vpack.c.b16 %v695, %v687
    %v880 = vpack.c.b16 %v696, %v688
    %v881 = vpack.c.b16 %v697, %v689
    %v882 = vpack.c.b16 %v698, %v690
    %v883 = vpack.c.b16 %v699, %v691
    %v884 = vpack.c.b16 %v700, %v692
    %v885 = vpack.c.b16 %v701, %v693
    %v886 = vpack.c.b16 %v702, %v694
    %v887 = vpack.c.b16 %v711, %v703
    %v888 = vpack.c.b16 %v712, %v704
    %v889 = vpack.c.b16 %v713, %v705
    %v890 = vpack.c.b16 %v714, %v706
    %v891 = vpack.c.b16 %v715, %v707
    %v892 = vpack.c.b16 %v716, %v708
    %v893 = vpack.c.b16 %v717, %v709
    %v894 = vpack.c.b16 %v718, %v710
    %v895 = vpack.c.b16 %v727, %v719
    %v896 = vpack.c.b16 %v728, %v720
    %v897 = vpack.c.b16 %v729, %v721
    %v898 = vpack.c.b16 %v730, %v722
    %v899 = vpack.c.b16 %v731, %v723
    %v900 = vpack.c.b16 %v732, %v724
    %v901 = vpack.c.b16 %v733, %v725
    %v902 = vpack.c.b16 %v734, %v726
    %v903 = vpack.c.b16 %v743, %v735
    %v904 = vpack.c.b16 %v744, %v736
    %v905 = vpack.c.b16 %v745, %v737
    %v906 = vpack.c.b16 %v746, %v738
    %v907 = vpack.c.b16 %v747, %v739
    %v908 = vpack.c.b16 %v748, %v740
    %v909 = vpack.c.b16 %v749, %v741
    %v910 = vpack.c.b16 %v750, %v742
    %v911 = vpack.c.b16 %v759, %v751
    %v912 = vpack.c.b16 %v760, %v752
    %v913 = vpack.c.b16 %v761, %v753
    %v914 = vpack.c.b16 %v762, %v754
    %v915 = vpack.c.b16 %v763, %v755
    %v916 = vpack.c.b16 %v764, %v756
    %v917 = vpack.c.b16 %v765, %v757
    %v918 = vpack.c.b16 %v766, %v758
    %vm1063 = vcmask 359424
    %v1065 = vsel %vm1063, %v293, 0
    %v1068 = vsel %vm1063, %v296, 0
    %v1071 = vsel %vm1063, %v299, 0
    %v1074 = vsel %vm1063, %v302, 0
    %vm1076 = vcmask 1045504
    %v1078 = vsel %vm1076, %v911, 0
    %v1081 = vsel %vm1076, %v912, 0
    %v1084 = vsel %vm1076, %v913, 0
    %v1087 = vsel %vm1076, %v914, 0
    %v1090 = vsel %vm1076, %v915, 0
    %v1093 = vsel %vm1076, %v916, 0
    %v1096 = vsel %vm1076, %v917, 0
    %v1099 = vsel %vm1076, %v918, 0
    %1101 = vmatpush.bf16.msra.mxu0 %v823
    %1102 = vmatpush.bf16.msra.mxu0 %v815
    %1103 = vmatpush.bf16.msra.mxu0 %v807
    %1104 = vmatpush.bf16.msra.mxu0 %v799
    %1105 = vmatpush.bf16.msra.mxu0 %v791
    %1106 = vmatpush.bf16.msra.mxu0 %v783
    %1107 = vmatpush.bf16.msra.mxu0 %v775
    %1108 = vmatpush.bf16.msra.mxu0 %v767
    %1109 = vmatmul.bf16.gmra.mxu0 %v291
    %v1110 = vpop.f32.mrf.mxu0
    %v1111 = vadd.f32 %v235, %v1110
    %v1112 = vpop.f32.mrf.mxu0
    %v1113 = vadd.f32 %v235, %v1112
    %1114 = vmatmul.bf16.gmra.mxu0 %v294
    %v1115 = vpop.f32.mrf.mxu0
    %v1116 = vadd.f32 %v235, %v1115
    %v1117 = vpop.f32.mrf.mxu0
    %v1118 = vadd.f32 %v235, %v1117
    %1119 = vmatmul.bf16.gmra.mxu0 %v297
    %v1120 = vpop.f32.mrf.mxu0
    %v1121 = vadd.f32 %v235, %v1120
    %v1122 = vpop.f32.mrf.mxu0
    %v1123 = vadd.f32 %v235, %v1122
    %1124 = vmatmul.bf16.gmra.mxu0 %v300
    %v1125 = vpop.f32.mrf.mxu0
    %v1126 = vadd.f32 %v235, %v1125
    %v1127 = vpop.f32.mrf.mxu0
    %v1128 = vadd.f32 %v235, %v1127
    %1129 = vdwg.mxu0
    %1130 = vmatpush.bf16.msra.mxu0 %v887
    %1131 = vmatpush.bf16.msra.mxu0 %v879
    %1132 = vmatpush.bf16.msra.mxu0 %v871
    %1133 = vmatpush.bf16.msra.mxu0 %v863
    %1134 = vmatpush.bf16.msra.mxu0 %v855
    %1135 = vmatpush.bf16.msra.mxu0 %v847
    %1136 = vmatpush.bf16.msra.mxu0 %v839
    %1137 = vmatpush.bf16.msra.mxu0 %v831
    %1138 = vmatmul.bf16.gmra.mxu0 %v292
    %v1139 = vpop.f32.mrf.mxu0
    %v1140 = vadd.f32 %v1111, %v1139
    %v1141 = vpop.f32.mrf.mxu0
    %v1142 = vadd.f32 %v1113, %v1141
    %1143 = vmatmul.bf16.gmra.mxu0 %v295
    %v1144 = vpop.f32.mrf.mxu0
    %v1145 = vadd.f32 %v1116, %v1144
    %v1146 = vpop.f32.mrf.mxu0
    %v1147 = vadd.f32 %v1118, %v1146
    %1148 = vmatmul.bf16.gmra.mxu0 %v298
    %v1149 = vpop.f32.mrf.mxu0
    %v1150 = vadd.f32 %v1121, %v1149
    %v1151 = vpop.f32.mrf.mxu0
    %v1152 = vadd.f32 %v1123, %v1151
    %1153 = vmatmul.bf16.gmra.mxu0 %v301
    %v1154 = vpop.f32.mrf.mxu0
    %v1155 = vadd.f32 %v1126, %v1154
    %v1156 = vpop.f32.mrf.mxu0
    %v1157 = vadd.f32 %v1128, %v1156
    %1158 = vdwg.mxu0
    %1159 = vmatpush.bf16.msra.mxu0 0
    %1160 = vmatpush.bf16.msra.mxu0 0
    %1161 = vmatpush.bf16.msra.mxu0 0
    %1162 = vmatpush.bf16.msra.mxu0 0
    %1163 = vmatpush.bf16.msra.mxu0 0
    %1164 = vmatpush.bf16.msra.mxu0 %v1078
    %1165 = vmatpush.bf16.msra.mxu0 %v903
    %1166 = vmatpush.bf16.msra.mxu0 %v895
    %1167 = vmatmul.bf16.gmra.mxu0 %v1065
    %v1168 = vpop.f32.mrf.mxu0
    %v1169 = vadd.f32 %v1140, %v1168
    %v1170 = vpop.f32.mrf.mxu0
    %v1171 = vadd.f32 %v1142, %v1170
    %1172 = vmatmul.bf16.gmra.mxu0 %v1068
    %v1173 = vpop.f32.mrf.mxu0
    %v1174 = vadd.f32 %v1145, %v1173
    %v1175 = vpop.f32.mrf.mxu0
    %v1176 = vadd.f32 %v1147, %v1175
    %1177 = vmatmul.bf16.gmra.mxu0 %v1071
    %v1178 = vpop.f32.mrf.mxu0
    %v1179 = vadd.f32 %v1150, %v1178
    %v1180 = vpop.f32.mrf.mxu0
    %v1181 = vadd.f32 %v1152, %v1180
    %1182 = vmatmul.bf16.gmra.mxu0 %v1074
    %v1183 = vpop.f32.mrf.mxu0
    %v1184 = vadd.f32 %v1155, %v1183
    %v1185 = vpop.f32.mrf.mxu0
    %v1186 = vadd.f32 %v1157, %v1185
    %1187 = vdwg.mxu0
    %1188 = vmatpush.bf16.msra.mxu0 %v824
    %1189 = vmatpush.bf16.msra.mxu0 %v816
    %1190 = vmatpush.bf16.msra.mxu0 %v808
    %1191 = vmatpush.bf16.msra.mxu0 %v800
    %1192 = vmatpush.bf16.msra.mxu0 %v792
    %1193 = vmatpush.bf16.msra.mxu0 %v784
    %1194 = vmatpush.bf16.msra.mxu0 %v776
    %1195 = vmatpush.bf16.msra.mxu0 %v768
    %1196 = vmatmul.bf16.gmra.mxu0 %v291
    %v1197 = vpop.f32.mrf.mxu0
    %v1198 = vadd.f32 %v236, %v1197
    %v1199 = vpop.f32.mrf.mxu0
    %v1200 = vadd.f32 %v236, %v1199
    %1201 = vmatmul.bf16.gmra.mxu0 %v294
    %v1202 = vpop.f32.mrf.mxu0
    %v1203 = vadd.f32 %v236, %v1202
    %v1204 = vpop.f32.mrf.mxu0
    %v1205 = vadd.f32 %v236, %v1204
    %1206 = vmatmul.bf16.gmra.mxu0 %v297
    %v1207 = vpop.f32.mrf.mxu0
    %v1208 = vadd.f32 %v236, %v1207
    %v1209 = vpop.f32.mrf.mxu0
    %v1210 = vadd.f32 %v236, %v1209
    %1211 = vmatmul.bf16.gmra.mxu0 %v300
    %v1212 = vpop.f32.mrf.mxu0
    %v1213 = vadd.f32 %v236, %v1212
    %v1214 = vpop.f32.mrf.mxu0
    %v1215 = vadd.f32 %v236, %v1214
    %1216 = vdwg.mxu0
    %1217 = vmatpush.bf16.msra.mxu0 %v888
    %1218 = vmatpush.bf16.msra.mxu0 %v880
    %1219 = vmatpush.bf16.msra.mxu0 %v872
    %1220 = vmatpush.bf16.msra.mxu0 %v864
    %1221 = vmatpush.bf16.msra.mxu0 %v856
    %1222 = vmatpush.bf16.msra.mxu0 %v848
    %1223 = vmatpush.bf16.msra.mxu0 %v840
    %1224 = vmatpush.bf16.msra.mxu0 %v832
    %1225 = vmatmul.bf16.gmra.mxu0 %v292
    %v1226 = vpop.f32.mrf.mxu0
    %v1227 = vadd.f32 %v1198, %v1226
    %v1228 = vpop.f32.mrf.mxu0
    %v1229 = vadd.f32 %v1200, %v1228
    %1230 = vmatmul.bf16.gmra.mxu0 %v295
    %v1231 = vpop.f32.mrf.mxu0
    %v1232 = vadd.f32 %v1203, %v1231
    %v1233 = vpop.f32.mrf.mxu0
    %v1234 = vadd.f32 %v1205, %v1233
    %1235 = vmatmul.bf16.gmra.mxu0 %v298
    %v1236 = vpop.f32.mrf.mxu0
    %v1237 = vadd.f32 %v1208, %v1236
    %v1238 = vpop.f32.mrf.mxu0
    %v1239 = vadd.f32 %v1210, %v1238
    %1240 = vmatmul.bf16.gmra.mxu0 %v301
    %v1241 = vpop.f32.mrf.mxu0
    %v1242 = vadd.f32 %v1213, %v1241
    %v1243 = vpop.f32.mrf.mxu0
    %v1244 = vadd.f32 %v1215, %v1243
    %1245 = vdwg.mxu0
    %1246 = vmatpush.bf16.msra.mxu0 0
    %1247 = vmatpush.bf16.msra.mxu0 0
    %1248 = vmatpush.bf16.msra.mxu0 0
    %1249 = vmatpush.bf16.msra.mxu0 0
    %1250 = vmatpush.bf16.msra.mxu0 0
    %1251 = vmatpush.bf16.msra.mxu0 %v1081
    %1252 = vmatpush.bf16.msra.mxu0 %v904
    %1253 = vmatpush.bf16.msra.mxu0 %v896
    %1254 = vmatmul.bf16.gmra.mxu0 %v1065
    %v1255 = vpop.f32.mrf.mxu0
    %v1256 = vadd.f32 %v1227, %v1255
    %v1257 = vpop.f32.mrf.mxu0
    %v1258 = vadd.f32 %v1229, %v1257
    %1259 = vmatmul.bf16.gmra.mxu0 %v1068
    %v1260 = vpop.f32.mrf.mxu0
    %v1261 = vadd.f32 %v1232, %v1260
    %v1262 = vpop.f32.mrf.mxu0
    %v1263 = vadd.f32 %v1234, %v1262
    %1264 = vmatmul.bf16.gmra.mxu0 %v1071
    %v1265 = vpop.f32.mrf.mxu0
    %v1266 = vadd.f32 %v1237, %v1265
    %v1267 = vpop.f32.mrf.mxu0
    %v1268 = vadd.f32 %v1239, %v1267
    %1269 = vmatmul.bf16.gmra.mxu0 %v1074
    %v1270 = vpop.f32.mrf.mxu0
    %v1271 = vadd.f32 %v1242, %v1270
    %v1272 = vpop.f32.mrf.mxu0
    %v1273 = vadd.f32 %v1244, %v1272
    %1274 = vdwg.mxu0
    %1275 = vmatpush.bf16.msra.mxu0 %v825
    %1276 = vmatpush.bf16.msra.mxu0 %v817
    %1277 = vmatpush.bf16.msra.mxu0 %v809
    %1278 = vmatpush.bf16.msra.mxu0 %v801
    %1279 = vmatpush.bf16.msra.mxu0 %v793
    %1280 = vmatpush.bf16.msra.mxu0 %v785
    %1281 = vmatpush.bf16.msra.mxu0 %v777
    %1282 = vmatpush.bf16.msra.mxu0 %v769
    %1283 = vmatmul.bf16.gmra.mxu0 %v291
    %v1284 = vpop.f32.mrf.mxu0
    %v1285 = vadd.f32 %v237, %v1284
    %v1286 = vpop.f32.mrf.mxu0
    %v1287 = vadd.f32 %v237, %v1286
    %1288 = vmatmul.bf16.gmra.mxu0 %v294
    %v1289 = vpop.f32.mrf.mxu0
    %v1290 = vadd.f32 %v237, %v1289
    %v1291 = vpop.f32.mrf.mxu0
    %v1292 = vadd.f32 %v237, %v1291
    %1293 = vmatmul.bf16.gmra.mxu0 %v297
    %v1294 = vpop.f32.mrf.mxu0
    %v1295 = vadd.f32 %v237, %v1294
    %v1296 = vpop.f32.mrf.mxu0
    %v1297 = vadd.f32 %v237, %v1296
    %1298 = vmatmul.bf16.gmra.mxu0 %v300
    %v1299 = vpop.f32.mrf.mxu0
    %v1300 = vadd.f32 %v237, %v1299
    %v1301 = vpop.f32.mrf.mxu0
    %v1302 = vadd.f32 %v237, %v1301
    %1303 = vdwg.mxu0
    %1304 = vmatpush.bf16.msra.mxu0 %v889
    %1305 = vmatpush.bf16.msra.mxu0 %v881
    %1306 = vmatpush.bf16.msra.mxu0 %v873
    %1307 = vmatpush.bf16.msra.mxu0 %v865
    %1308 = vmatpush.bf16.msra.mxu0 %v857
    %1309 = vmatpush.bf16.msra.mxu0 %v849
    %1310 = vmatpush.bf16.msra.mxu0 %v841
    %1311 = vmatpush.bf16.msra.mxu0 %v833
    %1312 = vmatmul.bf16.gmra.mxu0 %v292
    %v1313 = vpop.f32.mrf.mxu0
    %v1314 = vadd.f32 %v1285, %v1313
    %v1315 = vpop.f32.mrf.mxu0
    %v1316 = vadd.f32 %v1287, %v1315
    %1317 = vmatmul.bf16.gmra.mxu0 %v295
    %v1318 = vpop.f32.mrf.mxu0
    %v1319 = vadd.f32 %v1290, %v1318
    %v1320 = vpop.f32.mrf.mxu0
    %v1321 = vadd.f32 %v1292, %v1320
    %1322 = vmatmul.bf16.gmra.mxu0 %v298
    %v1323 = vpop.f32.mrf.mxu0
    %v1324 = vadd.f32 %v1295, %v1323
    %v1325 = vpop.f32.mrf.mxu0
    %v1326 = vadd.f32 %v1297, %v1325
    %1327 = vmatmul.bf16.gmra.mxu0 %v301
    %v1328 = vpop.f32.mrf.mxu0
    %v1329 = vadd.f32 %v1300, %v1328
    %v1330 = vpop.f32.mrf.mxu0
    %v1331 = vadd.f32 %v1302, %v1330
    %1332 = vdwg.mxu0
    %1333 = vmatpush.bf16.msra.mxu0 0
    %1334 = vmatpush.bf16.msra.mxu0 0
    %1335 = vmatpush.bf16.msra.mxu0 0
    %1336 = vmatpush.bf16.msra.mxu0 0
    %1337 = vmatpush.bf16.msra.mxu0 0
    %1338 = vmatpush.bf16.msra.mxu0 %v1084
    %1339 = vmatpush.bf16.msra.mxu0 %v905
    %1340 = vmatpush.bf16.msra.mxu0 %v897
    %1341 = vmatmul.bf16.gmra.mxu0 %v1065
    %v1342 = vpop.f32.mrf.mxu0
    %v1343 = vadd.f32 %v1314, %v1342
    %v1344 = vpop.f32.mrf.mxu0
    %v1345 = vadd.f32 %v1316, %v1344
    %1346 = vmatmul.bf16.gmra.mxu0 %v1068
    %v1347 = vpop.f32.mrf.mxu0
    %v1348 = vadd.f32 %v1319, %v1347
    %v1349 = vpop.f32.mrf.mxu0
    %v1350 = vadd.f32 %v1321, %v1349
    %1351 = vmatmul.bf16.gmra.mxu0 %v1071
    %v1352 = vpop.f32.mrf.mxu0
    %v1353 = vadd.f32 %v1324, %v1352
    %v1354 = vpop.f32.mrf.mxu0
    %v1355 = vadd.f32 %v1326, %v1354
    %1356 = vmatmul.bf16.gmra.mxu0 %v1074
    %v1357 = vpop.f32.mrf.mxu0
    %v1358 = vadd.f32 %v1329, %v1357
    %v1359 = vpop.f32.mrf.mxu0
    %v1360 = vadd.f32 %v1331, %v1359
    %1361 = vdwg.mxu0
    %1362 = vmatpush.bf16.msra.mxu0 %v826
    %1363 = vmatpush.bf16.msra.mxu0 %v818
    %1364 = vmatpush.bf16.msra.mxu0 %v810
    %1365 = vmatpush.bf16.msra.mxu0 %v802
    %1366 = vmatpush.bf16.msra.mxu0 %v794
    %1367 = vmatpush.bf16.msra.mxu0 %v786
    %1368 = vmatpush.bf16.msra.mxu0 %v778
    %1369 = vmatpush.bf16.msra.mxu0 %v770
    %1370 = vmatmul.bf16.gmra.mxu0 %v291
    %v1371 = vpop.f32.mrf.mxu0
    %v1372 = vadd.f32 %v238, %v1371
    %v1373 = vpop.f32.mrf.mxu0
    %v1374 = vadd.f32 %v238, %v1373
    %1375 = vmatmul.bf16.gmra.mxu0 %v294
    %v1376 = vpop.f32.mrf.mxu0
    %v1377 = vadd.f32 %v238, %v1376
    %v1378 = vpop.f32.mrf.mxu0
    %v1379 = vadd.f32 %v238, %v1378
    %1380 = vmatmul.bf16.gmra.mxu0 %v297
    %v1381 = vpop.f32.mrf.mxu0
    %v1382 = vadd.f32 %v238, %v1381
    %v1383 = vpop.f32.mrf.mxu0
    %v1384 = vadd.f32 %v238, %v1383
    %1385 = vmatmul.bf16.gmra.mxu0 %v300
    %v1386 = vpop.f32.mrf.mxu0
    %v1387 = vadd.f32 %v238, %v1386
    %v1388 = vpop.f32.mrf.mxu0
    %v1389 = vadd.f32 %v238, %v1388
    %1390 = vdwg.mxu0
    %1391 = vmatpush.bf16.msra.mxu0 %v890
    %1392 = vmatpush.bf16.msra.mxu0 %v882
    %1393 = vmatpush.bf16.msra.mxu0 %v874
    %1394 = vmatpush.bf16.msra.mxu0 %v866
    %1395 = vmatpush.bf16.msra.mxu0 %v858
    %1396 = vmatpush.bf16.msra.mxu0 %v850
    %1397 = vmatpush.bf16.msra.mxu0 %v842
    %1398 = vmatpush.bf16.msra.mxu0 %v834
    %1399 = vmatmul.bf16.gmra.mxu0 %v292
    %v1400 = vpop.f32.mrf.mxu0
    %v1401 = vadd.f32 %v1372, %v1400
    %v1402 = vpop.f32.mrf.mxu0
    %v1403 = vadd.f32 %v1374, %v1402
    %1404 = vmatmul.bf16.gmra.mxu0 %v295
    %v1405 = vpop.f32.mrf.mxu0
    %v1406 = vadd.f32 %v1377, %v1405
    %v1407 = vpop.f32.mrf.mxu0
    %v1408 = vadd.f32 %v1379, %v1407
    %1409 = vmatmul.bf16.gmra.mxu0 %v298
    %v1410 = vpop.f32.mrf.mxu0
    %v1411 = vadd.f32 %v1382, %v1410
    %v1412 = vpop.f32.mrf.mxu0
    %v1413 = vadd.f32 %v1384, %v1412
    %1414 = vmatmul.bf16.gmra.mxu0 %v301
    %v1415 = vpop.f32.mrf.mxu0
    %v1416 = vadd.f32 %v1387, %v1415
    %v1417 = vpop.f32.mrf.mxu0
    %v1418 = vadd.f32 %v1389, %v1417
    %1419 = vdwg.mxu0
    %1420 = vmatpush.bf16.msra.mxu0 0
    %1421 = vmatpush.bf16.msra.mxu0 0
    %1422 = vmatpush.bf16.msra.mxu0 0
    %1423 = vmatpush.bf16.msra.mxu0 0
    %1424 = vmatpush.bf16.msra.mxu0 0
    %1425 = vmatpush.bf16.msra.mxu0 %v1087
    %1426 = vmatpush.bf16.msra.mxu0 %v906
    %1427 = vmatpush.bf16.msra.mxu0 %v898
    %1428 = vmatmul.bf16.gmra.mxu0 %v1065
    %v1429 = vpop.f32.mrf.mxu0
    %v1430 = vadd.f32 %v1401, %v1429
    %v1431 = vpop.f32.mrf.mxu0
    %v1432 = vadd.f32 %v1403, %v1431
    %1433 = vmatmul.bf16.gmra.mxu0 %v1068
    %v1434 = vpop.f32.mrf.mxu0
    %v1435 = vadd.f32 %v1406, %v1434
    %v1436 = vpop.f32.mrf.mxu0
    %v1437 = vadd.f32 %v1408, %v1436
    %1438 = vmatmul.bf16.gmra.mxu0 %v1071
    %v1439 = vpop.f32.mrf.mxu0
    %v1440 = vadd.f32 %v1411, %v1439
    %v1441 = vpop.f32.mrf.mxu0
    %v1442 = vadd.f32 %v1413, %v1441
    %1443 = vmatmul.bf16.gmra.mxu0 %v1074
    %v1444 = vpop.f32.mrf.mxu0
    %v1445 = vadd.f32 %v1416, %v1444
    %v1446 = vpop.f32.mrf.mxu0
    %v1447 = vadd.f32 %v1418, %v1446
    %1448 = vdwg.mxu0
    %1449 = vmatpush.bf16.msra.mxu0 %v827
    %1450 = vmatpush.bf16.msra.mxu0 %v819
    %1451 = vmatpush.bf16.msra.mxu0 %v811
    %1452 = vmatpush.bf16.msra.mxu0 %v803
    %1453 = vmatpush.bf16.msra.mxu0 %v795
    %1454 = vmatpush.bf16.msra.mxu0 %v787
    %1455 = vmatpush.bf16.msra.mxu0 %v779
    %1456 = vmatpush.bf16.msra.mxu0 %v771
    %1457 = vmatmul.bf16.gmra.mxu0 %v291
    %v1458 = vpop.f32.mrf.mxu0
    %v1459 = vadd.f32 %v239, %v1458
    %v1460 = vpop.f32.mrf.mxu0
    %v1461 = vadd.f32 %v239, %v1460
    %1462 = vmatmul.bf16.gmra.mxu0 %v294
    %v1463 = vpop.f32.mrf.mxu0
    %v1464 = vadd.f32 %v239, %v1463
    %v1465 = vpop.f32.mrf.mxu0
    %v1466 = vadd.f32 %v239, %v1465
    %1467 = vmatmul.bf16.gmra.mxu0 %v297
    %v1468 = vpop.f32.mrf.mxu0
    %v1469 = vadd.f32 %v239, %v1468
    %v1470 = vpop.f32.mrf.mxu0
    %v1471 = vadd.f32 %v239, %v1470
    %1472 = vmatmul.bf16.gmra.mxu0 %v300
    %v1473 = vpop.f32.mrf.mxu0
    %v1474 = vadd.f32 %v239, %v1473
    %v1475 = vpop.f32.mrf.mxu0
    %v1476 = vadd.f32 %v239, %v1475
    %1477 = vdwg.mxu0
    %1478 = vmatpush.bf16.msra.mxu0 %v891
    %1479 = vmatpush.bf16.msra.mxu0 %v883
    %1480 = vmatpush.bf16.msra.mxu0 %v875
    %1481 = vmatpush.bf16.msra.mxu0 %v867
    %1482 = vmatpush.bf16.msra.mxu0 %v859
    %1483 = vmatpush.bf16.msra.mxu0 %v851
    %1484 = vmatpush.bf16.msra.mxu0 %v843
    %1485 = vmatpush.bf16.msra.mxu0 %v835
    %1486 = vmatmul.bf16.gmra.mxu0 %v292
    %v1487 = vpop.f32.mrf.mxu0
    %v1488 = vadd.f32 %v1459, %v1487
    %v1489 = vpop.f32.mrf.mxu0
    %v1490 = vadd.f32 %v1461, %v1489
    %1491 = vmatmul.bf16.gmra.mxu0 %v295
    %v1492 = vpop.f32.mrf.mxu0
    %v1493 = vadd.f32 %v1464, %v1492
    %v1494 = vpop.f32.mrf.mxu0
    %v1495 = vadd.f32 %v1466, %v1494
    %1496 = vmatmul.bf16.gmra.mxu0 %v298
    %v1497 = vpop.f32.mrf.mxu0
    %v1498 = vadd.f32 %v1469, %v1497
    %v1499 = vpop.f32.mrf.mxu0
    %v1500 = vadd.f32 %v1471, %v1499
    %1501 = vmatmul.bf16.gmra.mxu0 %v301
    %v1502 = vpop.f32.mrf.mxu0
    %v1503 = vadd.f32 %v1474, %v1502
    %v1504 = vpop.f32.mrf.mxu0
    %v1505 = vadd.f32 %v1476, %v1504
    %1506 = vdwg.mxu0
    %1507 = vmatpush.bf16.msra.mxu0 0
    %1508 = vmatpush.bf16.msra.mxu0 0
    %1509 = vmatpush.bf16.msra.mxu0 0
    %1510 = vmatpush.bf16.msra.mxu0 0
    %1511 = vmatpush.bf16.msra.mxu0 0
    %1512 = vmatpush.bf16.msra.mxu0 %v1090
    %1513 = vmatpush.bf16.msra.mxu0 %v907
    %1514 = vmatpush.bf16.msra.mxu0 %v899
    %1515 = vmatmul.bf16.gmra.mxu0 %v1065
    %v1516 = vpop.f32.mrf.mxu0
    %v1517 = vadd.f32 %v1488, %v1516
    %v1518 = vpop.f32.mrf.mxu0
    %v1519 = vadd.f32 %v1490, %v1518
    %1520 = vmatmul.bf16.gmra.mxu0 %v1068
    %v1521 = vpop.f32.mrf.mxu0
    %v1522 = vadd.f32 %v1493, %v1521
    %v1523 = vpop.f32.mrf.mxu0
    %v1524 = vadd.f32 %v1495, %v1523
    %1525 = vmatmul.bf16.gmra.mxu0 %v1071
    %v1526 = vpop.f32.mrf.mxu0
    %v1527 = vadd.f32 %v1498, %v1526
    %v1528 = vpop.f32.mrf.mxu0
    %v1529 = vadd.f32 %v1500, %v1528
    %1530 = vmatmul.bf16.gmra.mxu0 %v1074
    %v1531 = vpop.f32.mrf.mxu0
    %v1532 = vadd.f32 %v1503, %v1531
    %v1533 = vpop.f32.mrf.mxu0
    %v1534 = vadd.f32 %v1505, %v1533
    %1535 = vdwg.mxu0
    %1536 = vmatpush.bf16.msra.mxu0 %v828
    %1537 = vmatpush.bf16.msra.mxu0 %v820
    %1538 = vmatpush.bf16.msra.mxu0 %v812
    %1539 = vmatpush.bf16.msra.mxu0 %v804
    %1540 = vmatpush.bf16.msra.mxu0 %v796
    %1541 = vmatpush.bf16.msra.mxu0 %v788
    %1542 = vmatpush.bf16.msra.mxu0 %v780
    %1543 = vmatpush.bf16.msra.mxu0 %v772
    %1544 = vmatmul.bf16.gmra.mxu0 %v291
    %v1545 = vpop.f32.mrf.mxu0
    %v1546 = vadd.f32 %v240, %v1545
    %v1547 = vpop.f32.mrf.mxu0
    %v1548 = vadd.f32 %v240, %v1547
    %1549 = vmatmul.bf16.gmra.mxu0 %v294
    %v1550 = vpop.f32.mrf.mxu0
    %v1551 = vadd.f32 %v240, %v1550
    %v1552 = vpop.f32.mrf.mxu0
    %v1553 = vadd.f32 %v240, %v1552
    %1554 = vmatmul.bf16.gmra.mxu0 %v297
    %v1555 = vpop.f32.mrf.mxu0
    %v1556 = vadd.f32 %v240, %v1555
    %v1557 = vpop.f32.mrf.mxu0
    %v1558 = vadd.f32 %v240, %v1557
    %1559 = vmatmul.bf16.gmra.mxu0 %v300
    %v1560 = vpop.f32.mrf.mxu0
    %v1561 = vadd.f32 %v240, %v1560
    %v1562 = vpop.f32.mrf.mxu0
    %v1563 = vadd.f32 %v240, %v1562
    %1564 = vdwg.mxu0
    %1565 = vmatpush.bf16.msra.mxu0 %v892
    %1566 = vmatpush.bf16.msra.mxu0 %v884
    %1567 = vmatpush.bf16.msra.mxu0 %v876
    %1568 = vmatpush.bf16.msra.mxu0 %v868
    %1569 = vmatpush.bf16.msra.mxu0 %v860
    %1570 = vmatpush.bf16.msra.mxu0 %v852
    %1571 = vmatpush.bf16.msra.mxu0 %v844
    %1572 = vmatpush.bf16.msra.mxu0 %v836
    %1573 = vmatmul.bf16.gmra.mxu0 %v292
    %v1574 = vpop.f32.mrf.mxu0
    %v1575 = vadd.f32 %v1546, %v1574
    %v1576 = vpop.f32.mrf.mxu0
    %v1577 = vadd.f32 %v1548, %v1576
    %1578 = vmatmul.bf16.gmra.mxu0 %v295
    %v1579 = vpop.f32.mrf.mxu0
    %v1580 = vadd.f32 %v1551, %v1579
    %v1581 = vpop.f32.mrf.mxu0
    %v1582 = vadd.f32 %v1553, %v1581
    %1583 = vmatmul.bf16.gmra.mxu0 %v298
    %v1584 = vpop.f32.mrf.mxu0
    %v1585 = vadd.f32 %v1556, %v1584
    %v1586 = vpop.f32.mrf.mxu0
    %v1587 = vadd.f32 %v1558, %v1586
    %1588 = vmatmul.bf16.gmra.mxu0 %v301
    %v1589 = vpop.f32.mrf.mxu0
    %v1590 = vadd.f32 %v1561, %v1589
    %v1591 = vpop.f32.mrf.mxu0
    %v1592 = vadd.f32 %v1563, %v1591
    %1593 = vdwg.mxu0
    %1594 = vmatpush.bf16.msra.mxu0 0
    %1595 = vmatpush.bf16.msra.mxu0 0
    %1596 = vmatpush.bf16.msra.mxu0 0
    %1597 = vmatpush.bf16.msra.mxu0 0
    %1598 = vmatpush.bf16.msra.mxu0 0
    %1599 = vmatpush.bf16.msra.mxu0 %v1093
    %1600 = vmatpush.bf16.msra.mxu0 %v908
    %1601 = vmatpush.bf16.msra.mxu0 %v900
    %1602 = vmatmul.bf16.gmra.mxu0 %v1065
    %v1603 = vpop.f32.mrf.mxu0
    %v1604 = vadd.f32 %v1575, %v1603
    %v1605 = vpop.f32.mrf.mxu0
    %v1606 = vadd.f32 %v1577, %v1605
    %1607 = vmatmul.bf16.gmra.mxu0 %v1068
    %v1608 = vpop.f32.mrf.mxu0
    %v1609 = vadd.f32 %v1580, %v1608
    %v1610 = vpop.f32.mrf.mxu0
    %v1611 = vadd.f32 %v1582, %v1610
    %1612 = vmatmul.bf16.gmra.mxu0 %v1071
    %v1613 = vpop.f32.mrf.mxu0
    %v1614 = vadd.f32 %v1585, %v1613
    %v1615 = vpop.f32.mrf.mxu0
    %v1616 = vadd.f32 %v1587, %v1615
    %1617 = vmatmul.bf16.gmra.mxu0 %v1074
    %v1618 = vpop.f32.mrf.mxu0
    %v1619 = vadd.f32 %v1590, %v1618
    %v1620 = vpop.f32.mrf.mxu0
    %v1621 = vadd.f32 %v1592, %v1620
    %1622 = vdwg.mxu0
    %1623 = vmatpush.bf16.msra.mxu0 %v829
    %1624 = vmatpush.bf16.msra.mxu0 %v821
    %1625 = vmatpush.bf16.msra.mxu0 %v813
    %1626 = vmatpush.bf16.msra.mxu0 %v805
    %1627 = vmatpush.bf16.msra.mxu0 %v797
    %1628 = vmatpush.bf16.msra.mxu0 %v789
    %1629 = vmatpush.bf16.msra.mxu0 %v781
    %1630 = vmatpush.bf16.msra.mxu0 %v773
    %1631 = vmatmul.bf16.gmra.mxu0 %v291
    %v1632 = vpop.f32.mrf.mxu0
    %v1633 = vadd.f32 %v241, %v1632
    %v1634 = vpop.f32.mrf.mxu0
    %v1635 = vadd.f32 %v241, %v1634
    %1636 = vmatmul.bf16.gmra.mxu0 %v294
    %v1637 = vpop.f32.mrf.mxu0
    %v1638 = vadd.f32 %v241, %v1637
    %v1639 = vpop.f32.mrf.mxu0
    %v1640 = vadd.f32 %v241, %v1639
    %1641 = vmatmul.bf16.gmra.mxu0 %v297
    %v1642 = vpop.f32.mrf.mxu0
    %v1643 = vadd.f32 %v241, %v1642
    %v1644 = vpop.f32.mrf.mxu0
    %v1645 = vadd.f32 %v241, %v1644
    %1646 = vmatmul.bf16.gmra.mxu0 %v300
    %v1647 = vpop.f32.mrf.mxu0
    %v1648 = vadd.f32 %v241, %v1647
    %v1649 = vpop.f32.mrf.mxu0
    %v1650 = vadd.f32 %v241, %v1649
    %1651 = vdwg.mxu0
    %1652 = vmatpush.bf16.msra.mxu0 %v893
    %1653 = vmatpush.bf16.msra.mxu0 %v885
    %1654 = vmatpush.bf16.msra.mxu0 %v877
    %1655 = vmatpush.bf16.msra.mxu0 %v869
    %1656 = vmatpush.bf16.msra.mxu0 %v861
    %1657 = vmatpush.bf16.msra.mxu0 %v853
    %1658 = vmatpush.bf16.msra.mxu0 %v845
    %1659 = vmatpush.bf16.msra.mxu0 %v837
    %1660 = vmatmul.bf16.gmra.mxu0 %v292
    %v1661 = vpop.f32.mrf.mxu0
    %v1662 = vadd.f32 %v1633, %v1661
    %v1663 = vpop.f32.mrf.mxu0
    %v1664 = vadd.f32 %v1635, %v1663
    %1665 = vmatmul.bf16.gmra.mxu0 %v295
    %v1666 = vpop.f32.mrf.mxu0
    %v1667 = vadd.f32 %v1638, %v1666
    %v1668 = vpop.f32.mrf.mxu0
    %v1669 = vadd.f32 %v1640, %v1668
    %1670 = vmatmul.bf16.gmra.mxu0 %v298
    %v1671 = vpop.f32.mrf.mxu0
    %v1672 = vadd.f32 %v1643, %v1671
    %v1673 = vpop.f32.mrf.mxu0
    %v1674 = vadd.f32 %v1645, %v1673
    %1675 = vmatmul.bf16.gmra.mxu0 %v301
    %v1676 = vpop.f32.mrf.mxu0
    %v1677 = vadd.f32 %v1648, %v1676
    %v1678 = vpop.f32.mrf.mxu0
    %v1679 = vadd.f32 %v1650, %v1678
    %1680 = vdwg.mxu0
    %1681 = vmatpush.bf16.msra.mxu0 0
    %1682 = vmatpush.bf16.msra.mxu0 0
    %1683 = vmatpush.bf16.msra.mxu0 0
    %1684 = vmatpush.bf16.msra.mxu0 0
    %1685 = vmatpush.bf16.msra.mxu0 0
    %1686 = vmatpush.bf16.msra.mxu0 %v1096
    %1687 = vmatpush.bf16.msra.mxu0 %v909
    %1688 = vmatpush.bf16.msra.mxu0 %v901
    %1689 = vmatmul.bf16.gmra.mxu0 %v1065
    %v1690 = vpop.f32.mrf.mxu0
    %v1691 = vadd.f32 %v1662, %v1690
    %v1692 = vpop.f32.mrf.mxu0
    %v1693 = vadd.f32 %v1664, %v1692
    %1694 = vmatmul.bf16.gmra.mxu0 %v1068
    %v1695 = vpop.f32.mrf.mxu0
    %v1696 = vadd.f32 %v1667, %v1695
    %v1697 = vpop.f32.mrf.mxu0
    %v1698 = vadd.f32 %v1669, %v1697
    %1699 = vmatmul.bf16.gmra.mxu0 %v1071
    %v1700 = vpop.f32.mrf.mxu0
    %v1701 = vadd.f32 %v1672, %v1700
    %v1702 = vpop.f32.mrf.mxu0
    %v1703 = vadd.f32 %v1674, %v1702
    %1704 = vmatmul.bf16.gmra.mxu0 %v1074
    %v1705 = vpop.f32.mrf.mxu0
    %v1706 = vadd.f32 %v1677, %v1705
    %v1707 = vpop.f32.mrf.mxu0
    %v1708 = vadd.f32 %v1679, %v1707
    %1709 = vdwg.mxu0
    %1710 = vmatpush.bf16.msra.mxu0 %v830
    %1711 = vmatpush.bf16.msra.mxu0 %v822
    %1712 = vmatpush.bf16.msra.mxu0 %v814
    %1713 = vmatpush.bf16.msra.mxu0 %v806
    %1714 = vmatpush.bf16.msra.mxu0 %v798
    %1715 = vmatpush.bf16.msra.mxu0 %v790
    %1716 = vmatpush.bf16.msra.mxu0 %v782
    %1717 = vmatpush.bf16.msra.mxu0 %v774
    %1718 = vmatmul.bf16.gmra.mxu0 %v291
    %v1719 = vpop.f32.mrf.mxu0
    %v1720 = vadd.f32 %v242, %v1719
    %v1721 = vpop.f32.mrf.mxu0
    %v1722 = vadd.f32 %v242, %v1721
    %1723 = vmatmul.bf16.gmra.mxu0 %v294
    %v1724 = vpop.f32.mrf.mxu0
    %v1725 = vadd.f32 %v242, %v1724
    %v1726 = vpop.f32.mrf.mxu0
    %v1727 = vadd.f32 %v242, %v1726
    %1728 = vmatmul.bf16.gmra.mxu0 %v297
    %v1729 = vpop.f32.mrf.mxu0
    %v1730 = vadd.f32 %v242, %v1729
    %v1731 = vpop.f32.mrf.mxu0
    %v1732 = vadd.f32 %v242, %v1731
    %1733 = vmatmul.bf16.gmra.mxu0 %v300
    %v1734 = vpop.f32.mrf.mxu0
    %v1735 = vadd.f32 %v242, %v1734
    %v1736 = vpop.f32.mrf.mxu0
    %v1737 = vadd.f32 %v242, %v1736
    %1738 = vdwg.mxu0
    %1739 = vmatpush.bf16.msra.mxu0 %v894
    %1740 = vmatpush.bf16.msra.mxu0 %v886
    %1741 = vmatpush.bf16.msra.mxu0 %v878
    %1742 = vmatpush.bf16.msra.mxu0 %v870
    %1743 = vmatpush.bf16.msra.mxu0 %v862
    %1744 = vmatpush.bf16.msra.mxu0 %v854
    %1745 = vmatpush.bf16.msra.mxu0 %v846
    %1746 = vmatpush.bf16.msra.mxu0 %v838
    %1747 = vmatmul.bf16.gmra.mxu0 %v292
    %v1748 = vpop.f32.mrf.mxu0
    %v1749 = vadd.f32 %v1720, %v1748
    %v1750 = vpop.f32.mrf.mxu0
    %v1751 = vadd.f32 %v1722, %v1750
    %1752 = vmatmul.bf16.gmra.mxu0 %v295
    %v1753 = vpop.f32.mrf.mxu0
    %v1754 = vadd.f32 %v1725, %v1753
    %v1755 = vpop.f32.mrf.mxu0
    %v1756 = vadd.f32 %v1727, %v1755
    %1757 = vmatmul.bf16.gmra.mxu0 %v298
    %v1758 = vpop.f32.mrf.mxu0
    %v1759 = vadd.f32 %v1730, %v1758
    %v1760 = vpop.f32.mrf.mxu0
    %v1761 = vadd.f32 %v1732, %v1760
    %1762 = vmatmul.bf16.gmra.mxu0 %v301
    %v1763 = vpop.f32.mrf.mxu0
    %v1764 = vadd.f32 %v1735, %v1763
    %v1765 = vpop.f32.mrf.mxu0
    %v1766 = vadd.f32 %v1737, %v1765
    %1767 = vdwg.mxu0
    %1768 = vmatpush.bf16.msra.mxu0 0
    %1769 = vmatpush.bf16.msra.mxu0 0
    %1770 = vmatpush.bf16.msra.mxu0 0
    %1771 = vmatpush.bf16.msra.mxu0 0
    %1772 = vmatpush.bf16.msra.mxu0 0
    %1773 = vmatpush.bf16.msra.mxu0 %v1099
    %1774 = vmatpush.bf16.msra.mxu0 %v910
    %1775 = vmatpush.bf16.msra.mxu0 %v902
    %1776 = vmatmul.bf16.gmra.mxu0 %v1065
    %v1777 = vpop.f32.mrf.mxu0
    %v1778 = vadd.f32 %v1749, %v1777
    %v1779 = vpop.f32.mrf.mxu0
    %v1780 = vadd.f32 %v1751, %v1779
    %1781 = vmatmul.bf16.gmra.mxu0 %v1068
    %v1782 = vpop.f32.mrf.mxu0
    %v1783 = vadd.f32 %v1754, %v1782
    %v1784 = vpop.f32.mrf.mxu0
    %v1785 = vadd.f32 %v1756, %v1784
    %1786 = vmatmul.bf16.gmra.mxu0 %v1071
    %v1787 = vpop.f32.mrf.mxu0
    %v1788 = vadd.f32 %v1759, %v1787
    %v1789 = vpop.f32.mrf.mxu0
    %v1790 = vadd.f32 %v1761, %v1789
    %1791 = vmatmul.bf16.gmra.mxu0 %v1074
    %v1792 = vpop.f32.mrf.mxu0
    %v1793 = vadd.f32 %v1764, %v1792
    %v1794 = vpop.f32.mrf.mxu0
    %v1795 = vadd.f32 %v1766, %v1794
    %1796 = vdwg.mxu0
    %1797 = vst [vmem:[#allocation2] sm:$0xff] %v1169
    %1798 = vst [vmem:[#allocation2 + $0x8] sm:$0xff] %v1256
    %1799 = vst [vmem:[#allocation2 + $0x10] sm:$0xff] %v1343
    %1800 = vst [vmem:[#allocation2 + $0x18] sm:$0xff] %v1430
    %1801 = vst [vmem:[#allocation2 + $0x20] sm:$0xff] %v1171
    %1802 = vst [vmem:[#allocation2 + $0x28] sm:$0xff] %v1258
    %1803 = vst [vmem:[#allocation2 + $0x30] sm:$0xff] %v1345
    %1804 = vst [vmem:[#allocation2 + $0x38] sm:$0xff] %v1432
    %1805 = vst [vmem:[#allocation2 + $0x40] sm:$0xff] %v1174
    %1806 = vst [vmem:[#allocation2 + $0x48] sm:$0xff] %v1261
    %1807 = vst [vmem:[#allocation2 + $0x50] sm:$0xff] %v1348
    %1808 = vst [vmem:[#allocation2 + $0x58] sm:$0xff] %v1435
    %1809 = vst [vmem:[#allocation2 + $0x60] sm:$0xff] %v1176
    %1810 = vst [vmem:[#allocation2 + $0x68] sm:$0xff] %v1263
    %1811 = vst [vmem:[#allocation2 + $0x70] sm:$0xff] %v1350
    %1812 = vst [vmem:[#allocation2 + $0x78] sm:$0xff] %v1437
    %1813 = vst [vmem:[#allocation2 + $0x80] sm:$0xff] %v1179
    %1814 = vst [vmem:[#allocation2 + $0x88] sm:$0xff] %v1266
    %1815 = vst [vmem:[#allocation2 + $0x90] sm:$0xff] %v1353
    %1816 = vst [vmem:[#allocation2 + $0x98] sm:$0xff] %v1440
    %1817 = vst [vmem:[#allocation2 + $0xa0] sm:$0xff] %v1181
    %1818 = vst [vmem:[#allocation2 + $0xa8] sm:$0xff] %v1268
    %1819 = vst [vmem:[#allocation2 + $0xb0] sm:$0xff] %v1355
    %1820 = vst [vmem:[#allocation2 + $0xb8] sm:$0xff] %v1442
    %1821 = vst [vmem:[#allocation2 + $0xc0] sm:$0xff] %v1184
    %1822 = vst [vmem:[#allocation2 + $0xc8] sm:$0xff] %v1271
    %1823 = vst [vmem:[#allocation2 + $0xd0] sm:$0xff] %v1358
    %1824 = vst [vmem:[#allocation2 + $0xd8] sm:$0xff] %v1445
    %1825 = vst [vmem:[#allocation2 + $0xe0] sm:$0xff] %v1186
    %1826 = vst [vmem:[#allocation2 + $0xe8] sm:$0xff] %v1273
    %1827 = vst [vmem:[#allocation2 + $0xf0] sm:$0xff] %v1360
    %1828 = vst [vmem:[#allocation2 + $0xf8] sm:$0xff] %v1447
    %1829 = vst [vmem:[#allocation3] sm:$0xff] %v1517
    %1830 = vst [vmem:[#allocation3 + $0x8] sm:$0xff] %v1604
    %1831 = vst [vmem:[#allocation3 + $0x10] sm:$0xff] %v1691
    %1832 = vst [vmem:[#allocation3 + $0x18] sm:$0xff] %v1778
    %1833 = vst [vmem:[#allocation3 + $0x20] sm:$0xff] %v1519
    %1834 = vst [vmem:[#allocation3 + $0x28] sm:$0xff] %v1606
    %1835 = vst [vmem:[#allocation3 + $0x30] sm:$0xff] %v1693
    %1836 = vst [vmem:[#allocation3 + $0x38] sm:$0xff] %v1780
    %1837 = vst [vmem:[#allocation3 + $0x40] sm:$0xff] %v1522
    %1838 = vst [vmem:[#allocation3 + $0x48] sm:$0xff] %v1609
    %1839 = vst [vmem:[#allocation3 + $0x50] sm:$0xff] %v1696
    %1840 = vst [vmem:[#allocation3 + $0x58] sm:$0xff] %v1783
    %1841 = vst [vmem:[#allocation3 + $0x60] sm:$0xff] %v1524
    %1842 = vst [vmem:[#allocation3 + $0x68] sm:$0xff] %v1611
    %1843 = vst [vmem:[#allocation3 + $0x70] sm:$0xff] %v1698
    %1844 = vst [vmem:[#allocation3 + $0x78] sm:$0xff] %v1785
    %1845 = vst [vmem:[#allocation3 + $0x80] sm:$0xff] %v1527
    %1846 = vst [vmem:[#allocation3 + $0x88] sm:$0xff] %v1614
    %1847 = vst [vmem:[#allocation3 + $0x90] sm:$0xff] %v1701
    %1848 = vst [vmem:[#allocation3 + $0x98] sm:$0xff] %v1788
    %1849 = vst [vmem:[#allocation3 + $0xa0] sm:$0xff] %v1529
    %1850 = vst [vmem:[#allocation3 + $0xa8] sm:$0xff] %v1616
    %1851 = vst [vmem:[#allocation3 + $0xb0] sm:$0xff] %v1703
    %1852 = vst [vmem:[#allocation3 + $0xb8] sm:$0xff] %v1790
    %1853 = vst [vmem:[#allocation3 + $0xc0] sm:$0xff] %v1532
    %1854 = vst [vmem:[#allocation3 + $0xc8] sm:$0xff] %v1619
    %1855 = vst [vmem:[#allocation3 + $0xd0] sm:$0xff] %v1706
    %1856 = vst [vmem:[#allocation3 + $0xd8] sm:$0xff] %v1793
    %1857 = vst [vmem:[#allocation3 + $0xe0] sm:$0xff] %v1534
    %1858 = vst [vmem:[#allocation3 + $0xe8] sm:$0xff] %v1621
    %1859 = vst [vmem:[#allocation3 + $0xf0] sm:$0xff] %v1708
    %1860 = vst [vmem:[#allocation3 + $0xf8] sm:$0xff] %v1795
    %v1861 = vld [vmem:[%s1] sm:$0xff]
    %v1862 = vld [vmem:[%s4] sm:$0xff]
    %v1863 = vld [vmem:[%s4 + $0x8] sm:$0xff]
    %v1864 = vld [vmem:[%s4 + $0x10] sm:$0xff]
    %v1865 = vld [vmem:[%s4 + $0x18] sm:$0xff]
    %v1866 = vld [vmem:[%s4 + $0x20] sm:$0xff]
    %v1867 = vld [vmem:[%s4 + $0x28] sm:$0xff]
    %v1868 = vld [vmem:[%s4 + $0x30] sm:$0xff]
    %v1869 = vld [vmem:[%s4 + $0x38] sm:$0xff]
    %v1870 = vld [vmem:[%s4 + $0x40] sm:$0xff]
    %v1871 = vld [vmem:[%s4 + $0x48] sm:$0xff]
    %v1872 = vld [vmem:[%s4 + $0x50] sm:$0xff]
    %v1873 = vld [vmem:[%s4 + $0x58] sm:$0xff]
    %v1874 = vld [vmem:[%s4 + $0x60] sm:$0xff]
    %v1875 = vld [vmem:[%s4 + $0x68] sm:$0xff]
    %v1876 = vld [vmem:[%s4 + $0x70] sm:$0xff]
    %v1877 = vld [vmem:[%s4 + $0x78] sm:$0xff]
    %v1878 = vld [vmem:[%s4 + $0x80] sm:$0xff]
    %v1879 = vld [vmem:[%s4 + $0x88] sm:$0xff]
    %v1880 = vld [vmem:[%s4 + $0x90] sm:$0xff]
    %v1881 = vld [vmem:[%s4 + $0x98] sm:$0xff]
    %v1882 = vld [vmem:[%s4 + $0xa0] sm:$0xff]
    %v1883 = vld [vmem:[%s4 + $0xa8] sm:$0xff]
    %v1884 = vld [vmem:[%s4 + $0xb0] sm:$0xff]
    %v1885 = vld [vmem:[%s4 + $0xb8] sm:$0xff]
    %v1886 = vld [vmem:[%s4 + $0xc0] sm:$0xff]
    %v1887 = vld [vmem:[%s4 + $0xc8] sm:$0xff]
    %v1888 = vld [vmem:[%s4 + $0xd0] sm:$0xff]
    %v1889 = vld [vmem:[%s4 + $0xd8] sm:$0xff]
    %v1890 = vld [vmem:[%s4 + $0xe0] sm:$0xff]
    %v1891 = vld [vmem:[%s4 + $0xe8] sm:$0xff]
    %v1892 = vld [vmem:[%s4 + $0xf0] sm:$0xff]
    %v1893 = vld [vmem:[%s4 + $0xf8] sm:$0xff]
    %v1894 = vld [vmem:[#allocation6] sm:$0xff]
    %v1895 = vld [vmem:[#allocation6 + $0x8] sm:$0xff]
    %v1896 = vld [vmem:[#allocation6 + $0x10] sm:$0xff]
    %v1897 = vld [vmem:[#allocation6 + $0x18] sm:$0xff]
    %v1898 = vld [vmem:[#allocation6 + $0x20] sm:$0xff]
    %v1899 = vld [vmem:[#allocation6 + $0x28] sm:$0xff]
    %v1900 = vld [vmem:[#allocation6 + $0x30] sm:$0xff]
    %v1901 = vld [vmem:[#allocation6 + $0x38] sm:$0xff]
    %v1902 = vld [vmem:[#allocation6 + $0x40] sm:$0xff]
    %v1903 = vld [vmem:[#allocation6 + $0x48] sm:$0xff]
    %v1904 = vld [vmem:[#allocation6 + $0x50] sm:$0xff]
    %v1905 = vld [vmem:[#allocation6 + $0x58] sm:$0xff]
    %v1906 = vld [vmem:[#allocation6 + $0x60] sm:$0xff]
    %v1907 = vld [vmem:[#allocation6 + $0x68] sm:$0xff]
    %v1908 = vld [vmem:[#allocation6 + $0x70] sm:$0xff]
    %v1909 = vld [vmem:[#allocation6 + $0x78] sm:$0xff]
    %v1910 = vld [vmem:[#allocation6 + $0x80] sm:$0xff]
    %v1911 = vld [vmem:[#allocation6 + $0x88] sm:$0xff]
    %v1912 = vld [vmem:[#allocation6 + $0x90] sm:$0xff]
    %v1913 = vld [vmem:[#allocation6 + $0x98] sm:$0xff]
    %v1914 = vld [vmem:[#allocation6 + $0xa0] sm:$0xff]
    %v1915 = vld [vmem:[#allocation6 + $0xa8] sm:$0xff]
    %v1916 = vld [vmem:[#allocation6 + $0xb0] sm:$0xff]
    %v1917 = vld [vmem:[#allocation6 + $0xb8] sm:$0xff]
    %v1918 = vld [vmem:[#allocation6 + $0xc0] sm:$0xff]
    %v1919 = vld [vmem:[#allocation6 + $0xc8] sm:$0xff]
    %v1920 = vld [vmem:[#allocation6 + $0xd0] sm:$0xff]
    %v1921 = vld [vmem:[#allocation6 + $0xd8] sm:$0xff]
    %v1922 = vld [vmem:[#allocation6 + $0xe0] sm:$0xff]
    %v1923 = vld [vmem:[#allocation6 + $0xe8] sm:$0xff]
    %v1924 = vld [vmem:[#allocation6 + $0xf0] sm:$0xff]
    %v1925 = vld [vmem:[#allocation6 + $0xf8] sm:$0xff]
    %v1926 = vld [vmem:[#allocation2] sm:$0xff]
    %v1927 = vld [vmem:[#allocation2 + $0x8] sm:$0xff]
    %v1928 = vld [vmem:[#allocation2 + $0x10] sm:$0xff]
    %v1929 = vld [vmem:[#allocation2 + $0x18] sm:$0xff]
    %v1962 = vunpack.c.l.b16 %v1862
    %v1963 = vunpack.c.h.b16 %v1862
    %v1964 = vunpack.c.l.b16 %v1863
    %v1965 = vunpack.c.h.b16 %v1863
    %v1966 = vunpack.c.l.b16 %v1864
    %v1967 = vunpack.c.h.b16 %v1864
    %v1968 = vunpack.c.l.b16 %v1865
    %v1969 = vunpack.c.h.b16 %v1865
    %v1970 = vunpack.c.l.b16 %v1866
    %v1971 = vunpack.c.h.b16 %v1866
    %v1972 = vunpack.c.l.b16 %v1867
    %v1973 = vunpack.c.h.b16 %v1867
    %v1974 = vunpack.c.l.b16 %v1868
    %v1975 = vunpack.c.h.b16 %v1868
    %v1976 = vunpack.c.l.b16 %v1869
    %v1977 = vunpack.c.h.b16 %v1869
    %v1978 = vunpack.c.l.b16 %v1870
    %v1979 = vunpack.c.h.b16 %v1870
    %v1980 = vunpack.c.l.b16 %v1871
    %v1981 = vunpack.c.h.b16 %v1871
    %v1982 = vunpack.c.l.b16 %v1872
    %v1983 = vunpack.c.h.b16 %v1872
    %v1984 = vunpack.c.l.b16 %v1873
    %v1985 = vunpack.c.h.b16 %v1873
    %v1986 = vunpack.c.l.b16 %v1874
    %v1987 = vunpack.c.h.b16 %v1874
    %v1988 = vunpack.c.l.b16 %v1875
    %v1989 = vunpack.c.h.b16 %v1875
    %v1990 = vunpack.c.l.b16 %v1876
    %v1991 = vunpack.c.h.b16 %v1876
    %v1992 = vunpack.c.l.b16 %v1877
    %v1993 = vunpack.c.h.b16 %v1877
    %v1994 = vunpack.c.l.b16 %v1878
    %v1995 = vunpack.c.h.b16 %v1878
    %v1996 = vunpack.c.l.b16 %v1879
    %v1997 = vunpack.c.h.b16 %v1879
    %v1998 = vunpack.c.l.b16 %v1880
    %v1999 = vunpack.c.h.b16 %v1880
    %v2000 = vunpack.c.l.b16 %v1881
    %v2001 = vunpack.c.h.b16 %v1881
    %v2002 = vunpack.c.l.b16 %v1882
    %v2003 = vunpack.c.h.b16 %v1882
    %v2004 = vunpack.c.l.b16 %v1883
    %v2005 = vunpack.c.h.b16 %v1883
    %v2006 = vunpack.c.l.b16 %v1884
    %v2007 = vunpack.c.h.b16 %v1884
    %v2008 = vunpack.c.l.b16 %v1885
    %v2009 = vunpack.c.h.b16 %v1885
    %v2010 = vunpack.c.l.b16 %v1886
    %v2011 = vunpack.c.h.b16 %v1886
    %v2012 = vunpack.c.l.b16 %v1887
    %v2013 = vunpack.c.h.b16 %v1887
    %v2014 = vunpack.c.l.b16 %v1888
    %v2015 = vunpack.c.h.b16 %v1888
    %v2016 = vunpack.c.l.b16 %v1889
    %v2017 = vunpack.c.h.b16 %v1889
    %v2018 = vunpack.c.l.b16 %v1890
    %v2019 = vunpack.c.h.b16 %v1890
    %v2020 = vunpack.c.l.b16 %v1891
    %v2021 = vunpack.c.h.b16 %v1891
    %v2022 = vunpack.c.l.b16 %v1892
    %v2023 = vunpack.c.h.b16 %v1892
    %v2024 = vunpack.c.l.b16 %v1893
    %v2025 = vunpack.c.h.b16 %v1893
    %v2026 = vpack.c.b16 %v1966, %v1962
    %v2027 = vpack.c.b16 %v1967, %v1963
    %v2028 = vpack.c.b16 %v1968, %v1964
    %v2029 = vpack.c.b16 %v1969, %v1965
    %v2030 = vpack.c.b16 %v1974, %v1970
    %v2031 = vpack.c.b16 %v1975, %v1971
    %v2032 = vpack.c.b16 %v1976, %v1972
    %v2033 = vpack.c.b16 %v1977, %v1973
    %v2034 = vpack.c.b16 %v1982, %v1978
    %v2035 = vpack.c.b16 %v1983, %v1979
    %v2036 = vpack.c.b16 %v1984, %v1980
    %v2037 = vpack.c.b16 %v1985, %v1981
    %v2038 = vpack.c.b16 %v1990, %v1986
    %v2039 = vpack.c.b16 %v1991, %v1987
    %v2040 = vpack.c.b16 %v1992, %v1988
    %v2041 = vpack.c.b16 %v1993, %v1989
    %v2042 = vpack.c.b16 %v1998, %v1994
    %v2043 = vpack.c.b16 %v1999, %v1995
    %v2044 = vpack.c.b16 %v2000, %v1996
    %v2045 = vpack.c.b16 %v2001, %v1997
    %v2046 = vpack.c.b16 %v2006, %v2002
    %v2047 = vpack.c.b16 %v2007, %v2003
    %v2048 = vpack.c.b16 %v2008, %v2004
    %v2049 = vpack.c.b16 %v2009, %v2005
    %v2050 = vpack.c.b16 %v2014, %v2010
    %v2051 = vpack.c.b16 %v2015, %v2011
    %v2052 = vpack.c.b16 %v2016, %v2012
    %v2053 = vpack.c.b16 %v2017, %v2013
    %v2054 = vpack.c.b16 %v2022, %v2018
    %v2055 = vpack.c.b16 %v2023, %v2019
    %v2056 = vpack.c.b16 %v2024, %v2020
    %v2057 = vpack.c.b16 %v2025, %v2021
    %2090 = vmatpush.bf16.msra.mxu0 %v2054
    %2091 = vmatpush.bf16.msra.mxu0 %v2050
    %2092 = vmatpush.bf16.msra.mxu0 %v2046
    %2093 = vmatpush.bf16.msra.mxu0 %v2042
    %2094 = vmatpush.bf16.msra.mxu0 %v2038
    %2095 = vmatpush.bf16.msra.mxu0 %v2034
    %2096 = vmatpush.bf16.msra.mxu0 %v2030
    %2097 = vmatpush.bf16.msra.mxu0 %v2026
    %2098 = vmatmul.bf16.gmra.mxu0 0
    %v2099 = vpop.f32.mrf.mxu0
    %v2100 = vadd.f32 0.0, %v2099
    %v2101 = vpop.f32.mrf.mxu0
    %2102 = vdwg.mxu0
    %2103 = vmatpush.bf16.msra.mxu0 %v2055
    %2104 = vmatpush.bf16.msra.mxu0 %v2051
    %2105 = vmatpush.bf16.msra.mxu0 %v2047
    %2106 = vmatpush.bf16.msra.mxu0 %v2043
    %2107 = vmatpush.bf16.msra.mxu0 %v2039
    %2108 = vmatpush.bf16.msra.mxu0 %v2035
    %2109 = vmatpush.bf16.msra.mxu0 %v2031
    %2110 = vmatpush.bf16.msra.mxu0 %v2027
    %2111 = vmatmul.bf16.gmra.mxu0 0
    %v2112 = vpop.f32.mrf.mxu0
    %v2113 = vadd.f32 0.0, %v2112
    %v2114 = vpop.f32.mrf.mxu0
    %2115 = vdwg.mxu0
    %2116 = vmatpush.bf16.msra.mxu0 %v2056
    %2117 = vmatpush.bf16.msra.mxu0 %v2052
    %2118 = vmatpush.bf16.msra.mxu0 %v2048
    %2119 = vmatpush.bf16.msra.mxu0 %v2044
    %2120 = vmatpush.bf16.msra.mxu0 %v2040
    %2121 = vmatpush.bf16.msra.mxu0 %v2036
    %2122 = vmatpush.bf16.msra.mxu0 %v2032
    %2123 = vmatpush.bf16.msra.mxu0 %v2028
    %2124 = vmatmul.bf16.gmra.mxu0 0
    %v2125 = vpop.f32.mrf.mxu0
    %v2126 = vadd.f32 0.0, %v2125
    %v2127 = vpop.f32.mrf.mxu0
    %2128 = vdwg.mxu0
    %2129 = vmatpush.bf16.msra.mxu0 %v2057
    %2130 = vmatpush.bf16.msra.mxu0 %v2053
    %2131 = vmatpush.bf16.msra.mxu0 %v2049
    %2132 = vmatpush.bf16.msra.mxu0 %v2045
    %2133 = vmatpush.bf16.msra.mxu0 %v2041
    %2134 = vmatpush.bf16.msra.mxu0 %v2037
    %2135 = vmatpush.bf16.msra.mxu0 %v2033
    %2136 = vmatpush.bf16.msra.mxu0 %v2029
    %2137 = vmatmul.bf16.gmra.mxu0 0
    %v2138 = vpop.f32.mrf.mxu0
    %v2139 = vadd.f32 0.0, %v2138
    %v2140 = vpop.f32.mrf.mxu0
    %2141 = vdwg.mxu0
    %v2142 = vadd.f32 %v1926, %v2100
    %v2143 = vadd.f32 %v1927, %v2113
    %v2144 = vadd.f32 %v1928, %v2126
    %v2145 = vadd.f32 %v1929, %v2139
    %s2146 = scalar_lea.vmem [#allocation3], 224
    %v2147 = vld [vmem:[%s2146] sm:$0xff]
    %v2148 = vld [vmem:[%s2146 + $0x8] sm:$0xff]
    %v2149 = vld [vmem:[%s2146 + $0x10] sm:$0xff]
    %v2150 = vld [vmem:[%s2146 + $0x18] sm:$0xff]
    %v2183 = vunpack.c.l.b16 %v1894
    %v2184 = vunpack.c.h.b16 %v1894
    %v2185 = vunpack.c.l.b16 %v1895
    %v2186 = vunpack.c.h.b16 %v1895
    %v2187 = vunpack.c.l.b16 %v1896
    %v2188 = vunpack.c.h.b16 %v1896
    %v2189 = vunpack.c.l.b16 %v1897
    %v2190 = vunpack.c.h.b16 %v1897
    %v2191 = vunpack.c.l.b16 %v1898
    %v2192 = vunpack.c.h.b16 %v1898
    %v2193 = vunpack.c.l.b16 %v1899
    %v2194 = vunpack.c.h.b16 %v1899
    %v2195 = vunpack.c.l.b16 %v1900
    %v2196 = vunpack.c.h.b16 %v1900
    %v2197 = vunpack.c.l.b16 %v1901
    %v2198 = vunpack.c.h.b16 %v1901
    %v2199 = vunpack.c.l.b16 %v1902
    %v2200 = vunpack.c.h.b16 %v1902
    %v2201 = vunpack.c.l.b16 %v1903
    %v2202 = vunpack.c.h.b16 %v1903
    %v2203 = vunpack.c.l.b16 %v1904
    %v2204 = vunpack.c.h.b16 %v1904
    %v2205 = vunpack.c.l.b16 %v1905
    %v2206 = vunpack.c.h.b16 %v1905
    %v2207 = vunpack.c.l.b16 %v1906
    %v2208 = vunpack.c.h.b16 %v1906
    %v2209 = vunpack.c.l.b16 %v1907
    %v2210 = vunpack.c.h.b16 %v1907
    %v2211 = vunpack.c.l.b16 %v1908
    %v2212 = vunpack.c.h.b16 %v1908
    %v2213 = vunpack.c.l.b16 %v1909
    %v2214 = vunpack.c.h.b16 %v1909
    %v2215 = vunpack.c.l.b16 %v1910
    %v2216 = vunpack.c.h.b16 %v1910
    %v2217 = vunpack.c.l.b16 %v1911
    %v2218 = vunpack.c.h.b16 %v1911
    %v2219 = vunpack.c.l.b16 %v1912
    %v2220 = vunpack.c.h.b16 %v1912
    %v2221 = vunpack.c.l.b16 %v1913
    %v2222 = vunpack.c.h.b16 %v1913
    %v2223 = vunpack.c.l.b16 %v1914
    %v2224 = vunpack.c.h.b16 %v1914
    %v2225 = vunpack.c.l.b16 %v1915
    %v2226 = vunpack.c.h.b16 %v1915
    %v2227 = vunpack.c.l.b16 %v1916
    %v2228 = vunpack.c.h.b16 %v1916
    %v2229 = vunpack.c.l.b16 %v1917
    %v2230 = vunpack.c.h.b16 %v1917
    %v2231 = vunpack.c.l.b16 %v1918
    %v2232 = vunpack.c.h.b16 %v1918
    %v2233 = vunpack.c.l.b16 %v1919
    %v2234 = vunpack.c.h.b16 %v1919
    %v2235 = vunpack.c.l.b16 %v1920
    %v2236 = vunpack.c.h.b16 %v1920
    %v2237 = vunpack.c.l.b16 %v1921
    %v2238 = vunpack.c.h.b16 %v1921
    %v2239 = vunpack.c.l.b16 %v1922
    %v2240 = vunpack.c.h.b16 %v1922
    %v2241 = vunpack.c.l.b16 %v1923
    %v2242 = vunpack.c.h.b16 %v1923
    %v2243 = vunpack.c.l.b16 %v1924
    %v2244 = vunpack.c.h.b16 %v1924
    %v2245 = vunpack.c.l.b16 %v1925
    %v2246 = vunpack.c.h.b16 %v1925
    %v2247 = vpack.c.b16 %v2187, %v2183
    %v2248 = vpack.c.b16 %v2188, %v2184
    %v2249 = vpack.c.b16 %v2189, %v2185
    %v2250 = vpack.c.b16 %v2190, %v2186
    %v2251 = vpack.c.b16 %v2195, %v2191
    %v2252 = vpack.c.b16 %v2196, %v2192
    %v2253 = vpack.c.b16 %v2197, %v2193
    %v2254 = vpack.c.b16 %v2198, %v2194
    %v2255 = vpack.c.b16 %v2203, %v2199
    %v2256 = vpack.c.b16 %v2204, %v2200
    %v2257 = vpack.c.b16 %v2205, %v2201
    %v2258 = vpack.c.b16 %v2206, %v2202
    %v2259 = vpack.c.b16 %v2211, %v2207
    %v2260 = vpack.c.b16 %v2212, %v2208
    %v2261 = vpack.c.b16 %v2213, %v2209
    %v2262 = vpack.c.b16 %v2214, %v2210
    %v2263 = vpack.c.b16 %v2219, %v2215
    %v2264 = vpack.c.b16 %v2220, %v2216
    %v2265 = vpack.c.b16 %v2221, %v2217
    %v2266 = vpack.c.b16 %v2222, %v2218
    %v2267 = vpack.c.b16 %v2227, %v2223
    %v2268 = vpack.c.b16 %v2228, %v2224
    %v2269 = vpack.c.b16 %v2229, %v2225
    %v2270 = vpack.c.b16 %v2230, %v2226
    %v2271 = vpack.c.b16 %v2235, %v2231
    %v2272 = vpack.c.b16 %v2236, %v2232
    %v2273 = vpack.c.b16 %v2237, %v2233
    %v2274 = vpack.c.b16 %v2238, %v2234
    %v2275 = vpack.c.b16 %v2243, %v2239
    %v2276 = vpack.c.b16 %v2244, %v2240
    %v2277 = vpack.c.b16 %v2245, %v2241
    %v2278 = vpack.c.b16 %v2246, %v2242
    %2311 = vmatpush.bf16.msra.mxu0 %v2275
    %2312 = vmatpush.bf16.msra.mxu0 %v2271
    %2313 = vmatpush.bf16.msra.mxu0 %v2267
    %2314 = vmatpush.bf16.msra.mxu0 %v2263
    %2315 = vmatpush.bf16.msra.mxu0 %v2259
    %2316 = vmatpush.bf16.msra.mxu0 %v2255
    %2317 = vmatpush.bf16.msra.mxu0 %v2251
    %2318 = vmatpush.bf16.msra.mxu0 %v2247
    %2319 = vmatmul.bf16.gmra.mxu0 0
    %v2320 = vpop.f32.mrf.mxu0
    %v2321 = vadd.f32 0.0, %v2320
    %v2322 = vpop.f32.mrf.mxu0
    %2323 = vdwg.mxu0
    %2324 = vmatpush.bf16.msra.mxu0 %v2276
    %2325 = vmatpush.bf16.msra.mxu0 %v2272
    %2326 = vmatpush.bf16.msra.mxu0 %v2268
    %2327 = vmatpush.bf16.msra.mxu0 %v2264
    %2328 = vmatpush.bf16.msra.mxu0 %v2260
    %2329 = vmatpush.bf16.msra.mxu0 %v2256
    %2330 = vmatpush.bf16.msra.mxu0 %v2252
    %2331 = vmatpush.bf16.msra.mxu0 %v2248
    %2332 = vmatmul.bf16.gmra.mxu0 0
    %v2333 = vpop.f32.mrf.mxu0
    %v2334 = vadd.f32 0.0, %v2333
    %v2335 = vpop.f32.mrf.mxu0
    %2336 = vdwg.mxu0
    %2337 = vmatpush.bf16.msra.mxu0 %v2277
    %2338 = vmatpush.bf16.msra.mxu0 %v2273
    %2339 = vmatpush.bf16.msra.mxu0 %v2269
    %2340 = vmatpush.bf16.msra.mxu0 %v2265
    %2341 = vmatpush.bf16.msra.mxu0 %v2261
    %2342 = vmatpush.bf16.msra.mxu0 %v2257
    %2343 = vmatpush.bf16.msra.mxu0 %v2253
    %2344 = vmatpush.bf16.msra.mxu0 %v2249
    %2345 = vmatmul.bf16.gmra.mxu0 0
    %v2346 = vpop.f32.mrf.mxu0
    %v2347 = vadd.f32 0.0, %v2346
    %v2348 = vpop.f32.mrf.mxu0
    %2349 = vdwg.mxu0
    %2350 = vmatpush.bf16.msra.mxu0 %v2278
    %2351 = vmatpush.bf16.msra.mxu0 %v2274
    %2352 = vmatpush.bf16.msra.mxu0 %v2270
    %2353 = vmatpush.bf16.msra.mxu0 %v2266
    %2354 = vmatpush.bf16.msra.mxu0 %v2262
    %2355 = vmatpush.bf16.msra.mxu0 %v2258
    %2356 = vmatpush.bf16.msra.mxu0 %v2254
    %2357 = vmatpush.bf16.msra.mxu0 %v2250
    %2358 = vmatmul.bf16.gmra.mxu0 0
    %v2359 = vpop.f32.mrf.mxu0
    %v2360 = vadd.f32 0.0, %v2359
    %v2361 = vpop.f32.mrf.mxu0
    %2362 = vdwg.mxu0
    %v2363 = vadd.f32 %v2147, %v2321
    %v2364 = vadd.f32 %v2148, %v2334
    %v2365 = vadd.f32 %v2149, %v2347
    %v2366 = vadd.f32 %v2150, %v2360
    %v2367 = vxor.u32 %v2142, 2147483648
    %v2368 = vmul.f32 %v2367, 1.442695
    %v2369 = vpow.pop %v2368
    %v2370 = vadd.f32 %v2369, 1.0
    %v2371 = vrcp.pop %v2370
    %v2372 = vmul.f32 %v2370, %v2371
    %v2373 = vsub.f32 1.0, %v2372
    %v2374 = vmul.f32 %v2371, %v2373
    %v2375 = vadd.f32 %v2371, %v2374
    %vm2376 = vweird.f32 %v2370
    %vm2377 = vweird.f32 %v2371
    %vm2378 = vmor %vm2376, %vm2377
    %v2379 = vsel %vm2378, %v2371, %v2375
    %v2380 = vand.u32 2147483647, %v2370
    %vm2381 = vcmp.eq.f32.partialorder %v2380, 8.507059e+37
    %v2382 = vand.u32 %v2370, 2147483648
    %v2383 = vor.u32 1.1754944e-38, %v2382
    %v2384 = vsel %vm2381, %v2383, %v2379
    %v2385 = vmul.f32 1.0, %v2384
    %v2386 = vxor.u32 %v2143, 2147483648
    %v2387 = vmul.f32 %v2386, 1.442695
    %v2388 = vpow.pop %v2387
    %v2389 = vadd.f32 %v2388, 1.0
    %v2390 = vrcp.pop %v2389
    %v2391 = vmul.f32 %v2389, %v2390
    %v2392 = vsub.f32 1.0, %v2391
    %v2393 = vmul.f32 %v2390, %v2392
    %v2394 = vadd.f32 %v2390, %v2393
    %vm2395 = vweird.f32 %v2389
    %vm2396 = vweird.f32 %v2390
    %vm2397 = vmor %vm2395, %vm2396
    %v2398 = vsel %vm2397, %v2390, %v2394
    %v2399 = vand.u32 2147483647, %v2389
    %vm2400 = vcmp.eq.f32.partialorder %v2399, 8.507059e+37
    %v2401 = vand.u32 %v2389, 2147483648
    %v2402 = vor.u32 1.1754944e-38, %v2401
    %v2403 = vsel %vm2400, %v2402, %v2398
    %v2404 = vmul.f32 1.0, %v2403
    %v2405 = vtanh.pop %v2144
    %v2406 = vxor.u32 %v2145, 2147483648
    %v2407 = vmul.f32 %v2406, 1.442695
    %v2408 = vpow.pop %v2407
    %v2409 = vadd.f32 %v2408, 1.0
    %v2410 = vrcp.pop %v2409
    %v2411 = vmul.f32 %v2409, %v2410
    %v2412 = vsub.f32 1.0, %v2411
    %v2413 = vmul.f32 %v2410, %v2412
    %v2414 = vadd.f32 %v2410, %v2413
    %vm2415 = vweird.f32 %v2409
    %vm2416 = vweird.f32 %v2410
    %vm2417 = vmor %vm2415, %vm2416
    %v2418 = vsel %vm2417, %v2410, %v2414
    %v2419 = vand.u32 2147483647, %v2409
    %vm2420 = vcmp.eq.f32.partialorder %v2419, 8.507059e+37
    %v2421 = vand.u32 %v2409, 2147483648
    %v2422 = vor.u32 1.1754944e-38, %v2421
    %v2423 = vsel %vm2420, %v2422, %v2418
    %v2424 = vmul.f32 1.0, %v2423
    %v2425 = vmul.f32 %v2404, 0.0
    %v2426 = vmul.f32 %v2385, %v2405
    %v2427 = vadd.f32 %v2425, %v2426
    %v2428 = vtanh.pop %v2427
    %v2429 = vmul.f32 %v2424, %v2428
    %v2430 = vxor.u32 %v2363, 2147483648
    %v2431 = vmul.f32 %v2430, 1.442695
    %v2432 = vpow.pop %v2431
    %v2433 = vadd.f32 %v2432, 1.0
    %v2434 = vrcp.pop %v2433
    %v2435 = vmul.f32 %v2433, %v2434
    %v2436 = vsub.f32 1.0, %v2435
    %v2437 = vmul.f32 %v2434, %v2436
    %v2438 = vadd.f32 %v2434, %v2437
    %vm2439 = vweird.f32 %v2433
    %vm2440 = vweird.f32 %v2434
    %vm2441 = vmor %vm2439, %vm2440
    %v2442 = vsel %vm2441, %v2434, %v2438
    %v2443 = vand.u32 2147483647, %v2433
    %vm2444 = vcmp.eq.f32.partialorder %v2443, 8.507059e+37
    %v2445 = vand.u32 %v2433, 2147483648
    %v2446 = vor.u32 1.1754944e-38, %v2445
    %v2447 = vsel %vm2444, %v2446, %v2442
    %v2448 = vmul.f32 1.0, %v2447
    %v2449 = vxor.u32 %v2364, 2147483648
    %v2450 = vmul.f32 %v2449, 1.442695
    %v2451 = vpow.pop %v2450
    %v2452 = vadd.f32 %v2451, 1.0
    %v2453 = vrcp.pop %v2452
    %v2454 = vmul.f32 %v2452, %v2453
    %v2455 = vsub.f32 1.0, %v2454
    %v2456 = vmul.f32 %v2453, %v2455
    %v2457 = vadd.f32 %v2453, %v2456
    %vm2458 = vweird.f32 %v2452
    %vm2459 = vweird.f32 %v2453
    %vm2460 = vmor %vm2458, %vm2459
    %v2461 = vsel %vm2460, %v2453, %v2457
    %v2462 = vand.u32 2147483647, %v2452
    %vm2463 = vcmp.eq.f32.partialorder %v2462, 8.507059e+37
    %v2464 = vand.u32 %v2452, 2147483648
    %v2465 = vor.u32 1.1754944e-38, %v2464
    %v2466 = vsel %vm2463, %v2465, %v2461
    %v2467 = vmul.f32 1.0, %v2466
    %v2468 = vtanh.pop %v2365
    %v2469 = vxor.u32 %v2366, 2147483648
    %v2470 = vmul.f32 %v2469, 1.442695
    %v2471 = vpow.pop %v2470
    %v2472 = vadd.f32 %v2471, 1.0
    %v2473 = vrcp.pop %v2472
    %v2474 = vmul.f32 %v2472, %v2473
    %v2475 = vsub.f32 1.0, %v2474
    %v2476 = vmul.f32 %v2473, %v2475
    %v2477 = vadd.f32 %v2473, %v2476
    %vm2478 = vweird.f32 %v2472
    %vm2479 = vweird.f32 %v2473
    %vm2480 = vmor %vm2478, %vm2479
    %v2481 = vsel %vm2480, %v2473, %v2477
    %v2482 = vand.u32 2147483647, %v2472
    %vm2483 = vcmp.eq.f32.partialorder %v2482, 8.507059e+37
    %v2484 = vand.u32 %v2472, 2147483648
    %v2485 = vor.u32 1.1754944e-38, %v2484
    %v2486 = vsel %vm2483, %v2485, %v2481
    %v2487 = vmul.f32 1.0, %v2486
    %v2488 = vmul.f32 %v2467, 0.0
    %v2489 = vmul.f32 %v2448, %v2468
    %v2490 = vadd.f32 %v2488, %v2489
    %v2491 = vtanh.pop %v2490
    %v2492 = vmul.f32 %v2487, %v2491
    %vm2493 = vcmp.gt.s32.totalorder %v1861, 0
    %vm2494 = vcmp.gt.s32.totalorder %v1861, 7
    %v2495 = vsel %vm2493, 1, 0
    %2496 = vset.pattern.permute.xlu0 0
    %2497 = vperm.xlu0 %2496, %v2495
    %v2498 = vpop.permute.xlu0 %2497
    %vm2499 = vcmp.eq.s32.totalorder %v2498, 1
    %v2500 = vsel %vm2499, %v2429, 0.0
    %v2501 = vsel %vm2499, %v2427, 0.0
    %v2502 = vsel %vm2494, 1, 0
    %2503 = vset.pattern.permute.xlu0 0
    %2504 = vperm.xlu0 %2503, %v2502
    %v2505 = vpop.permute.xlu0 %2504
    %vm2506 = vcmp.eq.s32.totalorder %v2505, 1
    %v2507 = vsel %vm2506, %v2492, 0.0
    %v2508 = vsel %vm2506, %v2490, 0.0
    %s2509 = scalar_lea.vmem [#allocation2], 32
    %v2510 = vld [vmem:[%s2509] sm:$0xff]
    %v2511 = vld [vmem:[%s2509 + $0x8] sm:$0xff]
    %v2512 = vld [vmem:[%s2509 + $0x10] sm:$0xff]
    %v2513 = vld [vmem:[%s2509 + $0x18] sm:$0xff]
    %v2514 = vpack.c.bf16 %v2500, %v2500
    %2515 = vmatpush.bf16.msra.mxu0 %v2054
    %2516 = vmatpush.bf16.msra.mxu0 %v2050
    %2517 = vmatpush.bf16.msra.mxu0 %v2046
    %2518 = vmatpush.bf16.msra.mxu0 %v2042
    %2519 = vmatpush.bf16.msra.mxu0 %v2038
    %2520 = vmatpush.bf16.msra.mxu0 %v2034
    %2521 = vmatpush.bf16.msra.mxu0 %v2030
    %2522 = vmatpush.bf16.msra.mxu0 %v2026
    %2523 = vmatmul.bf16.gmra.mxu0 %v2514
    %v2524 = vpop.f32.mrf.mxu0
    %v2525 = vadd.f32 0.0, %v2524
    %v2526 = vpop.f32.mrf.mxu0
    %2527 = vdwg.mxu0
    %2528 = vmatpush.bf16.msra.mxu0 %v2055
    %2529 = vmatpush.bf16.msra.mxu0 %v2051
    %2530 = vmatpush.bf16.msra.mxu0 %v2047
    %2531 = vmatpush.bf16.msra.mxu0 %v2043
    %2532 = vmatpush.bf16.msra.mxu0 %v2039
    %2533 = vmatpush.bf16.msra.mxu0 %v2035
    %2534 = vmatpush.bf16.msra.mxu0 %v2031
    %2535 = vmatpush.bf16.msra.mxu0 %v2027
    %2536 = vmatmul.bf16.gmra.mxu0 %v2514
    %v2537 = vpop.f32.mrf.mxu0
    %v2538 = vadd.f32 0.0, %v2537
    %v2539 = vpop.f32.mrf.mxu0
    %2540 = vdwg.mxu0
    %2541 = vmatpush.bf16.msra.mxu0 %v2056
    %2542 = vmatpush.bf16.msra.mxu0 %v2052
    %2543 = vmatpush.bf16.msra.mxu0 %v2048
    %2544 = vmatpush.bf16.msra.mxu0 %v2044
    %2545 = vmatpush.bf16.msra.mxu0 %v2040
    %2546 = vmatpush.bf16.msra.mxu0 %v2036
    %2547 = vmatpush.bf16.msra.mxu0 %v2032
    %2548 = vmatpush.bf16.msra.mxu0 %v2028
    %2549 = vmatmul.bf16.gmra.mxu0 %v2514
    %v2550 = vpop.f32.mrf.mxu0
    %v2551 = vadd.f32 0.0, %v2550
    %v2552 = vpop.f32.mrf.mxu0
    %2553 = vdwg.mxu0
    %2554 = vmatpush.bf16.msra.mxu0 %v2057
    %2555 = vmatpush.bf16.msra.mxu0 %v2053
    %2556 = vmatpush.bf16.msra.mxu0 %v2049
    %2557 = vmatpush.bf16.msra.mxu0 %v2045
    %2558 = vmatpush.bf16.msra.mxu0 %v2041
    %2559 = vmatpush.bf16.msra.mxu0 %v2037
    %2560 = vmatpush.bf16.msra.mxu0 %v2033
    %2561 = vmatpush.bf16.msra.mxu0 %v2029
    %2562 = vmatmul.bf16.gmra.mxu0 %v2514
    %v2563 = vpop.f32.mrf.mxu0
    %v2564 = vadd.f32 0.0, %v2563
    %v2565 = vpop.f32.mrf.mxu0
    %2566 = vdwg.mxu0
    %v2567 = vadd.f32 %v2510, %v2525
    %v2568 = vadd.f32 %v2511, %v2538
    %v2569 = vadd.f32 %v2512, %v2551
    %v2570 = vadd.f32 %v2513, %v2564
    %s2571 = scalar_lea.vmem [#allocation3], 192
    %v2572 = vld [vmem:[%s2571] sm:$0xff]
    %v2573 = vld [vmem:[%s2571 + $0x8] sm:$0xff]
    %v2574 = vld [vmem:[%s2571 + $0x10] sm:$0xff]
    %v2575 = vld [vmem:[%s2571 + $0x18] sm:$0xff]
    %v2576 = vpack.c.bf16 %v2507, %v2507
    %2577 = vmatpush.bf16.msra.mxu0 %v2275
    %2578 = vmatpush.bf16.msra.mxu0 %v2271
    %2579 = vmatpush.bf16.msra.mxu0 %v2267
    %2580 = vmatpush.bf16.msra.mxu0 %v2263
    %2581 = vmatpush.bf16.msra.mxu0 %v2259
    %2582 = vmatpush.bf16.msra.mxu0 %v2255
    %2583 = vmatpush.bf16.msra.mxu0 %v2251
    %2584 = vmatpush.bf16.msra.mxu0 %v2247
    %2585 = vmatmul.bf16.gmra.mxu0 %v2576
    %v2586 = vpop.f32.mrf.mxu0
    %v2587 = vadd.f32 0.0, %v2586
    %v2588 = vpop.f32.mrf.mxu0
    %2589 = vdwg.mxu0
    %2590 = vmatpush.bf16.msra.mxu0 %v2276
    %2591 = vmatpush.bf16.msra.mxu0 %v2272
    %2592 = vmatpush.bf16.msra.mxu0 %v2268
    %2593 = vmatpush.bf16.msra.mxu0 %v2264
    %2594 = vmatpush.bf16.msra.mxu0 %v2260
    %2595 = vmatpush.bf16.msra.mxu0 %v2256
    %2596 = vmatpush.bf16.msra.mxu0 %v2252
    %2597 = vmatpush.bf16.msra.mxu0 %v2248
    %2598 = vmatmul.bf16.gmra.mxu0 %v2576
    %v2599 = vpop.f32.mrf.mxu0
    %v2600 = vadd.f32 0.0, %v2599
    %v2601 = vpop.f32.mrf.mxu0
    %2602 = vdwg.mxu0
    %2603 = vmatpush.bf16.msra.mxu0 %v2277
    %2604 = vmatpush.bf16.msra.mxu0 %v2273
    %2605 = vmatpush.bf16.msra.mxu0 %v2269
    %2606 = vmatpush.bf16.msra.mxu0 %v2265
    %2607 = vmatpush.bf16.msra.mxu0 %v2261
    %2608 = vmatpush.bf16.msra.mxu0 %v2257
    %2609 = vmatpush.bf16.msra.mxu0 %v2253
    %2610 = vmatpush.bf16.msra.mxu0 %v2249
    %2611 = vmatmul.bf16.gmra.mxu0 %v2576
    %v2612 = vpop.f32.mrf.mxu0
    %v2613 = vadd.f32 0.0, %v2612
    %v2614 = vpop.f32.mrf.mxu0
    %2615 = vdwg.mxu0
    %2616 = vmatpush.bf16.msra.mxu0 %v2278
    %2617 = vmatpush.bf16.msra.mxu0 %v2274
    %2618 = vmatpush.bf16.msra.mxu0 %v2270
    %2619 = vmatpush.bf16.msra.mxu0 %v2266
    %2620 = vmatpush.bf16.msra.mxu0 %v2262
    %2621 = vmatpush.bf16.msra.mxu0 %v2258
    %2622 = vmatpush.bf16.msra.mxu0 %v2254
    %2623 = vmatpush.bf16.msra.mxu0 %v2250
    %2624 = vmatmul.bf16.gmra.mxu0 %v2576
    %v2625 = vpop.f32.mrf.mxu0
    %v2626 = vadd.f32 0.0, %v2625
    %v2627 = vpop.f32.mrf.mxu0
    %2628 = vdwg.mxu0
    %v2629 = vadd.f32 %v2572, %v2587
    %v2630 = vadd.f32 %v2573, %v2600
    %v2631 = vadd.f32 %v2574, %v2613
    %v2632 = vadd.f32 %v2575, %v2626
    %v2633 = vxor.u32 %v2567, 2147483648
    %v2634 = vmul.f32 %v2633, 1.442695
    %v2635 = vpow.pop %v2634
    %v2636 = vadd.f32 %v2635, 1.0
    %v2637 = vrcp.pop %v2636
    %v2638 = vmul.f32 %v2636, %v2637
    %v2639 = vsub.f32 1.0, %v2638
    %v2640 = vmul.f32 %v2637, %v2639
    %v2641 = vadd.f32 %v2637, %v2640
    %vm2642 = vweird.f32 %v2636
    %vm2643 = vweird.f32 %v2637
    %vm2644 = vmor %vm2642, %vm2643
    %v2645 = vsel %vm2644, %v2637, %v2641
    %v2646 = vand.u32 2147483647, %v2636
    %vm2647 = vcmp.eq.f32.partialorder %v2646, 8.507059e+37
    %v2648 = vand.u32 %v2636, 2147483648
    %v2649 = vor.u32 1.1754944e-38, %v2648
    %v2650 = vsel %vm2647, %v2649, %v2645
    %v2651 = vmul.f32 1.0, %v2650
    %v2652 = vxor.u32 %v2568, 2147483648
    %v2653 = vmul.f32 %v2652, 1.442695
    %v2654 = vpow.pop %v2653
    %v2655 = vadd.f32 %v2654, 1.0
    %v2656 = vrcp.pop %v2655
    %v2657 = vmul.f32 %v2655, %v2656
    %v2658 = vsub.f32 1.0, %v2657
    %v2659 = vmul.f32 %v2656, %v2658
    %v2660 = vadd.f32 %v2656, %v2659
    %vm2661 = vweird.f32 %v2655
    %vm2662 = vweird.f32 %v2656
    %vm2663 = vmor %vm2661, %vm2662
    %v2664 = vsel %vm2663, %v2656, %v2660
    %v2665 = vand.u32 2147483647, %v2655
    %vm2666 = vcmp.eq.f32.partialorder %v2665, 8.507059e+37
    %v2667 = vand.u32 %v2655, 2147483648
    %v2668 = vor.u32 1.1754944e-38, %v2667
    %v2669 = vsel %vm2666, %v2668, %v2664
    %v2670 = vmul.f32 1.0, %v2669
    %v2671 = vtanh.pop %v2569
    %v2672 = vxor.u32 %v2570, 2147483648
    %v2673 = vmul.f32 %v2672, 1.442695
    %v2674 = vpow.pop %v2673
    %v2675 = vadd.f32 %v2674, 1.0
    %v2676 = vrcp.pop %v2675
    %v2677 = vmul.f32 %v2675, %v2676
    %v2678 = vsub.f32 1.0, %v2677
    %v2679 = vmul.f32 %v2676, %v2678
    %v2680 = vadd.f32 %v2676, %v2679
    %vm2681 = vweird.f32 %v2675
    %vm2682 = vweird.f32 %v2676
    %vm2683 = vmor %vm2681, %vm2682
    %v2684 = vsel %vm2683, %v2676, %v2680
    %v2685 = vand.u32 2147483647, %v2675
    %vm2686 = vcmp.eq.f32.partialorder %v2685, 8.507059e+37
    %v2687 = vand.u32 %v2675, 2147483648
    %v2688 = vor.u32 1.1754944e-38, %v2687
    %v2689 = vsel %vm2686, %v2688, %v2684
    %v2690 = vmul.f32 1.0, %v2689
    %v2691 = vmul.f32 %v2670, %v2501
    %v2692 = vmul.f32 %v2651, %v2671
    %v2693 = vadd.f32 %v2691, %v2692
    %v2694 = vtanh.pop %v2693
    %v2695 = vmul.f32 %v2690, %v2694
    %v2696 = vxor.u32 %v2629, 2147483648
    %v2697 = vmul.f32 %v2696, 1.442695
    %v2698 = vpow.pop %v2697
    %v2699 = vadd.f32 %v2698, 1.0
    %v2700 = vrcp.pop %v2699
    %v2701 = vmul.f32 %v2699, %v2700
    %v2702 = vsub.f32 1.0, %v2701
    %v2703 = vmul.f32 %v2700, %v2702
    %v2704 = vadd.f32 %v2700, %v2703
    %vm2705 = vweird.f32 %v2699
    %vm2706 = vweird.f32 %v2700
    %vm2707 = vmor %vm2705, %vm2706
    %v2708 = vsel %vm2707, %v2700, %v2704
    %v2709 = vand.u32 2147483647, %v2699
    %vm2710 = vcmp.eq.f32.partialorder %v2709, 8.507059e+37
    %v2711 = vand.u32 %v2699, 2147483648
    %v2712 = vor.u32 1.1754944e-38, %v2711
    %v2713 = vsel %vm2710, %v2712, %v2708
    %v2714 = vmul.f32 1.0, %v2713
    %v2715 = vxor.u32 %v2630, 2147483648
    %v2716 = vmul.f32 %v2715, 1.442695
    %v2717 = vpow.pop %v2716
    %v2718 = vadd.f32 %v2717, 1.0
    %v2719 = vrcp.pop %v2718
    %v2720 = vmul.f32 %v2718, %v2719
    %v2721 = vsub.f32 1.0, %v2720
    %v2722 = vmul.f32 %v2719, %v2721
    %v2723 = vadd.f32 %v2719, %v2722
    %vm2724 = vweird.f32 %v2718
    %vm2725 = vweird.f32 %v2719
    %vm2726 = vmor %vm2724, %vm2725
    %v2727 = vsel %vm2726, %v2719, %v2723
    %v2728 = vand.u32 2147483647, %v2718
    %vm2729 = vcmp.eq.f32.partialorder %v2728, 8.507059e+37
    %v2730 = vand.u32 %v2718, 2147483648
    %v2731 = vor.u32 1.1754944e-38, %v2730
    %v2732 = vsel %vm2729, %v2731, %v2727
    %v2733 = vmul.f32 1.0, %v2732
    %v2734 = vtanh.pop %v2631
    %v2735 = vxor.u32 %v2632, 2147483648
    %v2736 = vmul.f32 %v2735, 1.442695
    %v2737 = vpow.pop %v2736
    %v2738 = vadd.f32 %v2737, 1.0
    %v2739 = vrcp.pop %v2738
    %v2740 = vmul.f32 %v2738, %v2739
    %v2741 = vsub.f32 1.0, %v2740
    %v2742 = vmul.f32 %v2739, %v2741
    %v2743 = vadd.f32 %v2739, %v2742
    %vm2744 = vweird.f32 %v2738
    %vm2745 = vweird.f32 %v2739
    %vm2746 = vmor %vm2744, %vm2745
    %v2747 = vsel %vm2746, %v2739, %v2743
    %v2748 = vand.u32 2147483647, %v2738
    %vm2749 = vcmp.eq.f32.partialorder %v2748, 8.507059e+37
    %v2750 = vand.u32 %v2738, 2147483648
    %v2751 = vor.u32 1.1754944e-38, %v2750
    %v2752 = vsel %vm2749, %v2751, %v2747
    %v2753 = vmul.f32 1.0, %v2752
    %v2754 = vmul.f32 %v2733, %v2508
    %v2755 = vmul.f32 %v2714, %v2734
    %v2756 = vadd.f32 %v2754, %v2755
    %v2757 = vtanh.pop %v2756
    %v2758 = vmul.f32 %v2753, %v2757
    %vm2759 = vcmp.gt.s32.totalorder %v1861, 1
    %vm2760 = vcmp.gt.s32.totalorder %v1861, 6
    %v2761 = vsel %vm2759, 1, 0
    %2762 = vset.pattern.permute.xlu0 0
    %2763 = vperm.xlu0 %2762, %v2761
    %v2764 = vpop.permute.xlu0 %2763
    %vm2765 = vcmp.eq.s32.totalorder %v2764, 1
    %v2766 = vsel %vm2765, %v2695, %v2500
    %v2767 = vsel %vm2765, %v2693, %v2501
    %v2768 = vsel %vm2760, 1, 0
    %2769 = vset.pattern.permute.xlu0 0
    %2770 = vperm.xlu0 %2769, %v2768
    %v2771 = vpop.permute.xlu0 %2770
    %vm2772 = vcmp.eq.s32.totalorder %v2771, 1
    %v2773 = vsel %vm2772, %v2758, %v2507
    %v2774 = vsel %vm2772, %v2756, %v2508
    %s2775 = scalar_lea.vmem [#allocation2], 64
    %v2776 = vld [vmem:[%s2775] sm:$0xff]
    %v2777 = vld [vmem:[%s2775 + $0x8] sm:$0xff]
    %v2778 = vld [vmem:[%s2775 + $0x10] sm:$0xff]
    %v2779 = vld [vmem:[%s2775 + $0x18] sm:$0xff]
    %v2780 = vpack.c.bf16 %v2766, %v2766
    %2781 = vmatpush.bf16.msra.mxu0 %v2054
    %2782 = vmatpush.bf16.msra.mxu0 %v2050
    %2783 = vmatpush.bf16.msra.mxu0 %v2046
    %2784 = vmatpush.bf16.msra.mxu0 %v2042
    %2785 = vmatpush.bf16.msra.mxu0 %v2038
    %2786 = vmatpush.bf16.msra.mxu0 %v2034
    %2787 = vmatpush.bf16.msra.mxu0 %v2030
    %2788 = vmatpush.bf16.msra.mxu0 %v2026
    %2789 = vmatmul.bf16.gmra.mxu0 %v2780
    %v2790 = vpop.f32.mrf.mxu0
    %v2791 = vadd.f32 0.0, %v2790
    %v2792 = vpop.f32.mrf.mxu0
    %2793 = vdwg.mxu0
    %2794 = vmatpush.bf16.msra.mxu0 %v2055
    %2795 = vmatpush.bf16.msra.mxu0 %v2051
    %2796 = vmatpush.bf16.msra.mxu0 %v2047
    %2797 = vmatpush.bf16.msra.mxu0 %v2043
    %2798 = vmatpush.bf16.msra.mxu0 %v2039
    %2799 = vmatpush.bf16.msra.mxu0 %v2035
    %2800 = vmatpush.bf16.msra.mxu0 %v2031
    %2801 = vmatpush.bf16.msra.mxu0 %v2027
    %2802 = vmatmul.bf16.gmra.mxu0 %v2780
    %v2803 = vpop.f32.mrf.mxu0
    %v2804 = vadd.f32 0.0, %v2803
    %v2805 = vpop.f32.mrf.mxu0
    %2806 = vdwg.mxu0
    %2807 = vmatpush.bf16.msra.mxu0 %v2056
    %2808 = vmatpush.bf16.msra.mxu0 %v2052
    %2809 = vmatpush.bf16.msra.mxu0 %v2048
    %2810 = vmatpush.bf16.msra.mxu0 %v2044
    %2811 = vmatpush.bf16.msra.mxu0 %v2040
    %2812 = vmatpush.bf16.msra.mxu0 %v2036
    %2813 = vmatpush.bf16.msra.mxu0 %v2032
    %2814 = vmatpush.bf16.msra.mxu0 %v2028
    %2815 = vmatmul.bf16.gmra.mxu0 %v2780
    %v2816 = vpop.f32.mrf.mxu0
    %v2817 = vadd.f32 0.0, %v2816
    %v2818 = vpop.f32.mrf.mxu0
    %2819 = vdwg.mxu0
    %2820 = vmatpush.bf16.msra.mxu0 %v2057
    %2821 = vmatpush.bf16.msra.mxu0 %v2053
    %2822 = vmatpush.bf16.msra.mxu0 %v2049
    %2823 = vmatpush.bf16.msra.mxu0 %v2045
    %2824 = vmatpush.bf16.msra.mxu0 %v2041
    %2825 = vmatpush.bf16.msra.mxu0 %v2037
    %2826 = vmatpush.bf16.msra.mxu0 %v2033
    %2827 = vmatpush.bf16.msra.mxu0 %v2029
    %2828 = vmatmul.bf16.gmra.mxu0 %v2780
    %v2829 = vpop.f32.mrf.mxu0
    %v2830 = vadd.f32 0.0, %v2829
    %v2831 = vpop.f32.mrf.mxu0
    %2832 = vdwg.mxu0
    %v2833 = vadd.f32 %v2776, %v2791
    %v2834 = vadd.f32 %v2777, %v2804
    %v2835 = vadd.f32 %v2778, %v2817
    %v2836 = vadd.f32 %v2779, %v2830
    %s2837 = scalar_lea.vmem [#allocation3], 160
    %v2838 = vld [vmem:[%s2837] sm:$0xff]
    %v2839 = vld [vmem:[%s2837 + $0x8] sm:$0xff]
    %v2840 = vld [vmem:[%s2837 + $0x10] sm:$0xff]
    %v2841 = vld [vmem:[%s2837 + $0x18] sm:$0xff]
    %v2842 = vpack.c.bf16 %v2773, %v2773
    %2843 = vmatpush.bf16.msra.mxu0 %v2275
    %2844 = vmatpush.bf16.msra.mxu0 %v2271
    %2845 = vmatpush.bf16.msra.mxu0 %v2267
    %2846 = vmatpush.bf16.msra.mxu0 %v2263
    %2847 = vmatpush.bf16.msra.mxu0 %v2259
    %2848 = vmatpush.bf16.msra.mxu0 %v2255
    %2849 = vmatpush.bf16.msra.mxu0 %v2251
    %2850 = vmatpush.bf16.msra.mxu0 %v2247
    %2851 = vmatmul.bf16.gmra.mxu0 %v2842
    %v2852 = vpop.f32.mrf.mxu0
    %v2853 = vadd.f32 0.0, %v2852
    %v2854 = vpop.f32.mrf.mxu0
    %2855 = vdwg.mxu0
    %2856 = vmatpush.bf16.msra.mxu0 %v2276
    %2857 = vmatpush.bf16.msra.mxu0 %v2272
    %2858 = vmatpush.bf16.msra.mxu0 %v2268
    %2859 = vmatpush.bf16.msra.mxu0 %v2264
    %2860 = vmatpush.bf16.msra.mxu0 %v2260
    %2861 = vmatpush.bf16.msra.mxu0 %v2256
    %2862 = vmatpush.bf16.msra.mxu0 %v2252
    %2863 = vmatpush.bf16.msra.mxu0 %v2248
    %2864 = vmatmul.bf16.gmra.mxu0 %v2842
    %v2865 = vpop.f32.mrf.mxu0
    %v2866 = vadd.f32 0.0, %v2865
    %v2867 = vpop.f32.mrf.mxu0
    %2868 = vdwg.mxu0
    %2869 = vmatpush.bf16.msra.mxu0 %v2277
    %2870 = vmatpush.bf16.msra.mxu0 %v2273
    %2871 = vmatpush.bf16.msra.mxu0 %v2269
    %2872 = vmatpush.bf16.msra.mxu0 %v2265
    %2873 = vmatpush.bf16.msra.mxu0 %v2261
    %2874 = vmatpush.bf16.msra.mxu0 %v2257
    %2875 = vmatpush.bf16.msra.mxu0 %v2253
    %2876 = vmatpush.bf16.msra.mxu0 %v2249
    %2877 = vmatmul.bf16.gmra.mxu0 %v2842
    %v2878 = vpop.f32.mrf.mxu0
    %v2879 = vadd.f32 0.0, %v2878
    %v2880 = vpop.f32.mrf.mxu0
    %2881 = vdwg.mxu0
    %2882 = vmatpush.bf16.msra.mxu0 %v2278
    %2883 = vmatpush.bf16.msra.mxu0 %v2274
    %2884 = vmatpush.bf16.msra.mxu0 %v2270
    %2885 = vmatpush.bf16.msra.mxu0 %v2266
    %2886 = vmatpush.bf16.msra.mxu0 %v2262
    %2887 = vmatpush.bf16.msra.mxu0 %v2258
    %2888 = vmatpush.bf16.msra.mxu0 %v2254
    %2889 = vmatpush.bf16.msra.mxu0 %v2250
    %2890 = vmatmul.bf16.gmra.mxu0 %v2842
    %v2891 = vpop.f32.mrf.mxu0
    %v2892 = vadd.f32 0.0, %v2891
    %v2893 = vpop.f32.mrf.mxu0
    %2894 = vdwg.mxu0
    %v2895 = vadd.f32 %v2838, %v2853
    %v2896 = vadd.f32 %v2839, %v2866
    %v2897 = vadd.f32 %v2840, %v2879
    %v2898 = vadd.f32 %v2841, %v2892
    %v2899 = vxor.u32 %v2833, 2147483648
    %v2900 = vmul.f32 %v2899, 1.442695
    %v2901 = vpow.pop %v2900
    %v2902 = vadd.f32 %v2901, 1.0
    %v2903 = vrcp.pop %v2902
    %v2904 = vmul.f32 %v2902, %v2903
    %v2905 = vsub.f32 1.0, %v2904
    %v2906 = vmul.f32 %v2903, %v2905
    %v2907 = vadd.f32 %v2903, %v2906
    %vm2908 = vweird.f32 %v2902
    %vm2909 = vweird.f32 %v2903
    %vm2910 = vmor %vm2908, %vm2909
    %v2911 = vsel %vm2910, %v2903, %v2907
    %v2912 = vand.u32 2147483647, %v2902
    %vm2913 = vcmp.eq.f32.partialorder %v2912, 8.507059e+37
    %v2914 = vand.u32 %v2902, 2147483648
    %v2915 = vor.u32 1.1754944e-38, %v2914
    %v2916 = vsel %vm2913, %v2915, %v2911
    %v2917 = vmul.f32 1.0, %v2916
    %v2918 = vxor.u32 %v2834, 2147483648
    %v2919 = vmul.f32 %v2918, 1.442695
    %v2920 = vpow.pop %v2919
    %v2921 = vadd.f32 %v2920, 1.0
    %v2922 = vrcp.pop %v2921
    %v2923 = vmul.f32 %v2921, %v2922
    %v2924 = vsub.f32 1.0, %v2923
    %v2925 = vmul.f32 %v2922, %v2924
    %v2926 = vadd.f32 %v2922, %v2925
    %vm2927 = vweird.f32 %v2921
    %vm2928 = vweird.f32 %v2922
    %vm2929 = vmor %vm2927, %vm2928
    %v2930 = vsel %vm2929, %v2922, %v2926
    %v2931 = vand.u32 2147483647, %v2921
    %vm2932 = vcmp.eq.f32.partialorder %v2931, 8.507059e+37
    %v2933 = vand.u32 %v2921, 2147483648
    %v2934 = vor.u32 1.1754944e-38, %v2933
    %v2935 = vsel %vm2932, %v2934, %v2930
    %v2936 = vmul.f32 1.0, %v2935
    %v2937 = vtanh.pop %v2835
    %v2938 = vxor.u32 %v2836, 2147483648
    %v2939 = vmul.f32 %v2938, 1.442695
    %v2940 = vpow.pop %v2939
    %v2941 = vadd.f32 %v2940, 1.0
    %v2942 = vrcp.pop %v2941
    %v2943 = vmul.f32 %v2941, %v2942
    %v2944 = vsub.f32 1.0, %v2943
    %v2945 = vmul.f32 %v2942, %v2944
    %v2946 = vadd.f32 %v2942, %v2945
    %vm2947 = vweird.f32 %v2941
    %vm2948 = vweird.f32 %v2942
    %vm2949 = vmor %vm2947, %vm2948
    %v2950 = vsel %vm2949, %v2942, %v2946
    %v2951 = vand.u32 2147483647, %v2941
    %vm2952 = vcmp.eq.f32.partialorder %v2951, 8.507059e+37
    %v2953 = vand.u32 %v2941, 2147483648
    %v2954 = vor.u32 1.1754944e-38, %v2953
    %v2955 = vsel %vm2952, %v2954, %v2950
    %v2956 = vmul.f32 1.0, %v2955
    %v2957 = vmul.f32 %v2936, %v2767
    %v2958 = vmul.f32 %v2917, %v2937
    %v2959 = vadd.f32 %v2957, %v2958
    %v2960 = vtanh.pop %v2959
    %v2961 = vmul.f32 %v2956, %v2960
    %v2962 = vxor.u32 %v2895, 2147483648
    %v2963 = vmul.f32 %v2962, 1.442695
    %v2964 = vpow.pop %v2963
    %v2965 = vadd.f32 %v2964, 1.0
    %v2966 = vrcp.pop %v2965
    %v2967 = vmul.f32 %v2965, %v2966
    %v2968 = vsub.f32 1.0, %v2967
    %v2969 = vmul.f32 %v2966, %v2968
    %v2970 = vadd.f32 %v2966, %v2969
    %vm2971 = vweird.f32 %v2965
    %vm2972 = vweird.f32 %v2966
    %vm2973 = vmor %vm2971, %vm2972
    %v2974 = vsel %vm2973, %v2966, %v2970
    %v2975 = vand.u32 2147483647, %v2965
    %vm2976 = vcmp.eq.f32.partialorder %v2975, 8.507059e+37
    %v2977 = vand.u32 %v2965, 2147483648
    %v2978 = vor.u32 1.1754944e-38, %v2977
    %v2979 = vsel %vm2976, %v2978, %v2974
    %v2980 = vmul.f32 1.0, %v2979
    %v2981 = vxor.u32 %v2896, 2147483648
    %v2982 = vmul.f32 %v2981, 1.442695
    %v2983 = vpow.pop %v2982
    %v2984 = vadd.f32 %v2983, 1.0
    %v2985 = vrcp.pop %v2984
    %v2986 = vmul.f32 %v2984, %v2985
    %v2987 = vsub.f32 1.0, %v2986
    %v2988 = vmul.f32 %v2985, %v2987
    %v2989 = vadd.f32 %v2985, %v2988
    %vm2990 = vweird.f32 %v2984
    %vm2991 = vweird.f32 %v2985
    %vm2992 = vmor %vm2990, %vm2991
    %v2993 = vsel %vm2992, %v2985, %v2989
    %v2994 = vand.u32 2147483647, %v2984
    %vm2995 = vcmp.eq.f32.partialorder %v2994, 8.507059e+37
    %v2996 = vand.u32 %v2984, 2147483648
    %v2997 = vor.u32 1.1754944e-38, %v2996
    %v2998 = vsel %vm2995, %v2997, %v2993
    %v2999 = vmul.f32 1.0, %v2998
    %v3000 = vtanh.pop %v2897
    %v3001 = vxor.u32 %v2898, 2147483648
    %v3002 = vmul.f32 %v3001, 1.442695
    %v3003 = vpow.pop %v3002
    %v3004 = vadd.f32 %v3003, 1.0
    %v3005 = vrcp.pop %v3004
    %v3006 = vmul.f32 %v3004, %v3005
    %v3007 = vsub.f32 1.0, %v3006
    %v3008 = vmul.f32 %v3005, %v3007
    %v3009 = vadd.f32 %v3005, %v3008
    %vm3010 = vweird.f32 %v3004
    %vm3011 = vweird.f32 %v3005
    %vm3012 = vmor %vm3010, %vm3011
    %v3013 = vsel %vm3012, %v3005, %v3009
    %v3014 = vand.u32 2147483647, %v3004
    %vm3015 = vcmp.eq.f32.partialorder %v3014, 8.507059e+37
    %v3016 = vand.u32 %v3004, 2147483648
    %v3017 = vor.u32 1.1754944e-38, %v3016
    %v3018 = vsel %vm3015, %v3017, %v3013
    %v3019 = vmul.f32 1.0, %v3018
    %v3020 = vmul.f32 %v2999, %v2774
    %v3021 = vmul.f32 %v2980, %v3000
    %v3022 = vadd.f32 %v3020, %v3021
    %v3023 = vtanh.pop %v3022
    %v3024 = vmul.f32 %v3019, %v3023
    %vm3025 = vcmp.gt.s32.totalorder %v1861, 2
    %vm3026 = vcmp.gt.s32.totalorder %v1861, 5
    %v3027 = vsel %vm3025, 1, 0
    %3028 = vset.pattern.permute.xlu0 0
    %3029 = vperm.xlu0 %3028, %v3027
    %v3030 = vpop.permute.xlu0 %3029
    %vm3031 = vcmp.eq.s32.totalorder %v3030, 1
    %v3032 = vsel %vm3031, %v2961, %v2766
    %v3033 = vsel %vm3031, %v2959, %v2767
    %v3034 = vsel %vm3026, 1, 0
    %3035 = vset.pattern.permute.xlu0 0
    %3036 = vperm.xlu0 %3035, %v3034
    %v3037 = vpop.permute.xlu0 %3036
    %vm3038 = vcmp.eq.s32.totalorder %v3037, 1
    %v3039 = vsel %vm3038, %v3024, %v2773
    %v3040 = vsel %vm3038, %v3022, %v2774
    %s3041 = scalar_lea.vmem [#allocation2], 96
    %v3042 = vld [vmem:[%s3041] sm:$0xff]
    %v3043 = vld [vmem:[%s3041 + $0x8] sm:$0xff]
    %v3044 = vld [vmem:[%s3041 + $0x10] sm:$0xff]
    %v3045 = vld [vmem:[%s3041 + $0x18] sm:$0xff]
    %v3046 = vpack.c.bf16 %v3032, %v3032
    %3047 = vmatpush.bf16.msra.mxu0 %v2054
    %3048 = vmatpush.bf16.msra.mxu0 %v2050
    %3049 = vmatpush.bf16.msra.mxu0 %v2046
    %3050 = vmatpush.bf16.msra.mxu0 %v2042
    %3051 = vmatpush.bf16.msra.mxu0 %v2038
    %3052 = vmatpush.bf16.msra.mxu0 %v2034
    %3053 = vmatpush.bf16.msra.mxu0 %v2030
    %3054 = vmatpush.bf16.msra.mxu0 %v2026
    %3055 = vmatmul.bf16.gmra.mxu0 %v3046
    %v3056 = vpop.f32.mrf.mxu0
    %v3057 = vadd.f32 0.0, %v3056
    %v3058 = vpop.f32.mrf.mxu0
    %3059 = vdwg.mxu0
    %3060 = vmatpush.bf16.msra.mxu0 %v2055
    %3061 = vmatpush.bf16.msra.mxu0 %v2051
    %3062 = vmatpush.bf16.msra.mxu0 %v2047
    %3063 = vmatpush.bf16.msra.mxu0 %v2043
    %3064 = vmatpush.bf16.msra.mxu0 %v2039
    %3065 = vmatpush.bf16.msra.mxu0 %v2035
    %3066 = vmatpush.bf16.msra.mxu0 %v2031
    %3067 = vmatpush.bf16.msra.mxu0 %v2027
    %3068 = vmatmul.bf16.gmra.mxu0 %v3046
    %v3069 = vpop.f32.mrf.mxu0
    %v3070 = vadd.f32 0.0, %v3069
    %v3071 = vpop.f32.mrf.mxu0
    %3072 = vdwg.mxu0
    %3073 = vmatpush.bf16.msra.mxu0 %v2056
    %3074 = vmatpush.bf16.msra.mxu0 %v2052
    %3075 = vmatpush.bf16.msra.mxu0 %v2048
    %3076 = vmatpush.bf16.msra.mxu0 %v2044
    %3077 = vmatpush.bf16.msra.mxu0 %v2040
    %3078 = vmatpush.bf16.msra.mxu0 %v2036
    %3079 = vmatpush.bf16.msra.mxu0 %v2032
    %3080 = vmatpush.bf16.msra.mxu0 %v2028
    %3081 = vmatmul.bf16.gmra.mxu0 %v3046
    %v3082 = vpop.f32.mrf.mxu0
    %v3083 = vadd.f32 0.0, %v3082
    %v3084 = vpop.f32.mrf.mxu0
    %3085 = vdwg.mxu0
    %3086 = vmatpush.bf16.msra.mxu0 %v2057
    %3087 = vmatpush.bf16.msra.mxu0 %v2053
    %3088 = vmatpush.bf16.msra.mxu0 %v2049
    %3089 = vmatpush.bf16.msra.mxu0 %v2045
    %3090 = vmatpush.bf16.msra.mxu0 %v2041
    %3091 = vmatpush.bf16.msra.mxu0 %v2037
    %3092 = vmatpush.bf16.msra.mxu0 %v2033
    %3093 = vmatpush.bf16.msra.mxu0 %v2029
    %3094 = vmatmul.bf16.gmra.mxu0 %v3046
    %v3095 = vpop.f32.mrf.mxu0
    %v3096 = vadd.f32 0.0, %v3095
    %v3097 = vpop.f32.mrf.mxu0
    %3098 = vdwg.mxu0
    %v3099 = vadd.f32 %v3042, %v3057
    %v3100 = vadd.f32 %v3043, %v3070
    %v3101 = vadd.f32 %v3044, %v3083
    %v3102 = vadd.f32 %v3045, %v3096
    %s3103 = scalar_lea.vmem [#allocation3], 128
    %v3104 = vld [vmem:[%s3103] sm:$0xff]
    %v3105 = vld [vmem:[%s3103 + $0x8] sm:$0xff]
    %v3106 = vld [vmem:[%s3103 + $0x10] sm:$0xff]
    %v3107 = vld [vmem:[%s3103 + $0x18] sm:$0xff]
    %v3108 = vpack.c.bf16 %v3039, %v3039
    %3109 = vmatpush.bf16.msra.mxu0 %v2275
    %3110 = vmatpush.bf16.msra.mxu0 %v2271
    %3111 = vmatpush.bf16.msra.mxu0 %v2267
    %3112 = vmatpush.bf16.msra.mxu0 %v2263
    %3113 = vmatpush.bf16.msra.mxu0 %v2259
    %3114 = vmatpush.bf16.msra.mxu0 %v2255
    %3115 = vmatpush.bf16.msra.mxu0 %v2251
    %3116 = vmatpush.bf16.msra.mxu0 %v2247
    %3117 = vmatmul.bf16.gmra.mxu0 %v3108
    %v3118 = vpop.f32.mrf.mxu0
    %v3119 = vadd.f32 0.0, %v3118
    %v3120 = vpop.f32.mrf.mxu0
    %3121 = vdwg.mxu0
    %3122 = vmatpush.bf16.msra.mxu0 %v2276
    %3123 = vmatpush.bf16.msra.mxu0 %v2272
    %3124 = vmatpush.bf16.msra.mxu0 %v2268
    %3125 = vmatpush.bf16.msra.mxu0 %v2264
    %3126 = vmatpush.bf16.msra.mxu0 %v2260
    %3127 = vmatpush.bf16.msra.mxu0 %v2256
    %3128 = vmatpush.bf16.msra.mxu0 %v2252
    %3129 = vmatpush.bf16.msra.mxu0 %v2248
    %3130 = vmatmul.bf16.gmra.mxu0 %v3108
    %v3131 = vpop.f32.mrf.mxu0
    %v3132 = vadd.f32 0.0, %v3131
    %v3133 = vpop.f32.mrf.mxu0
    %3134 = vdwg.mxu0
    %3135 = vmatpush.bf16.msra.mxu0 %v2277
    %3136 = vmatpush.bf16.msra.mxu0 %v2273
    %3137 = vmatpush.bf16.msra.mxu0 %v2269
    %3138 = vmatpush.bf16.msra.mxu0 %v2265
    %3139 = vmatpush.bf16.msra.mxu0 %v2261
    %3140 = vmatpush.bf16.msra.mxu0 %v2257
    %3141 = vmatpush.bf16.msra.mxu0 %v2253
    %3142 = vmatpush.bf16.msra.mxu0 %v2249
    %3143 = vmatmul.bf16.gmra.mxu0 %v3108
    %v3144 = vpop.f32.mrf.mxu0
    %v3145 = vadd.f32 0.0, %v3144
    %v3146 = vpop.f32.mrf.mxu0
    %3147 = vdwg.mxu0
    %3148 = vmatpush.bf16.msra.mxu0 %v2278
    %3149 = vmatpush.bf16.msra.mxu0 %v2274
    %3150 = vmatpush.bf16.msra.mxu0 %v2270
    %3151 = vmatpush.bf16.msra.mxu0 %v2266
    %3152 = vmatpush.bf16.msra.mxu0 %v2262
    %3153 = vmatpush.bf16.msra.mxu0 %v2258
    %3154 = vmatpush.bf16.msra.mxu0 %v2254
    %3155 = vmatpush.bf16.msra.mxu0 %v2250
    %3156 = vmatmul.bf16.gmra.mxu0 %v3108
    %v3157 = vpop.f32.mrf.mxu0
    %v3158 = vadd.f32 0.0, %v3157
    %v3159 = vpop.f32.mrf.mxu0
    %3160 = vdwg.mxu0
    %v3161 = vadd.f32 %v3104, %v3119
    %v3162 = vadd.f32 %v3105, %v3132
    %v3163 = vadd.f32 %v3106, %v3145
    %v3164 = vadd.f32 %v3107, %v3158
    %v3165 = vxor.u32 %v3099, 2147483648
    %v3166 = vmul.f32 %v3165, 1.442695
    %v3167 = vpow.pop %v3166
    %v3168 = vadd.f32 %v3167, 1.0
    %v3169 = vrcp.pop %v3168
    %v3170 = vmul.f32 %v3168, %v3169
    %v3171 = vsub.f32 1.0, %v3170
    %v3172 = vmul.f32 %v3169, %v3171
    %v3173 = vadd.f32 %v3169, %v3172
    %vm3174 = vweird.f32 %v3168
    %vm3175 = vweird.f32 %v3169
    %vm3176 = vmor %vm3174, %vm3175
    %v3177 = vsel %vm3176, %v3169, %v3173
    %v3178 = vand.u32 2147483647, %v3168
    %vm3179 = vcmp.eq.f32.partialorder %v3178, 8.507059e+37
    %v3180 = vand.u32 %v3168, 2147483648
    %v3181 = vor.u32 1.1754944e-38, %v3180
    %v3182 = vsel %vm3179, %v3181, %v3177
    %v3183 = vmul.f32 1.0, %v3182
    %v3184 = vxor.u32 %v3100, 2147483648
    %v3185 = vmul.f32 %v3184, 1.442695
    %v3186 = vpow.pop %v3185
    %v3187 = vadd.f32 %v3186, 1.0
    %v3188 = vrcp.pop %v3187
    %v3189 = vmul.f32 %v3187, %v3188
    %v3190 = vsub.f32 1.0, %v3189
    %v3191 = vmul.f32 %v3188, %v3190
    %v3192 = vadd.f32 %v3188, %v3191
    %vm3193 = vweird.f32 %v3187
    %vm3194 = vweird.f32 %v3188
    %vm3195 = vmor %vm3193, %vm3194
    %v3196 = vsel %vm3195, %v3188, %v3192
    %v3197 = vand.u32 2147483647, %v3187
    %vm3198 = vcmp.eq.f32.partialorder %v3197, 8.507059e+37
    %v3199 = vand.u32 %v3187, 2147483648
    %v3200 = vor.u32 1.1754944e-38, %v3199
    %v3201 = vsel %vm3198, %v3200, %v3196
    %v3202 = vmul.f32 1.0, %v3201
    %v3203 = vtanh.pop %v3101
    %v3204 = vxor.u32 %v3102, 2147483648
    %v3205 = vmul.f32 %v3204, 1.442695
    %v3206 = vpow.pop %v3205
    %v3207 = vadd.f32 %v3206, 1.0
    %v3208 = vrcp.pop %v3207
    %v3209 = vmul.f32 %v3207, %v3208
    %v3210 = vsub.f32 1.0, %v3209
    %v3211 = vmul.f32 %v3208, %v3210
    %v3212 = vadd.f32 %v3208, %v3211
    %vm3213 = vweird.f32 %v3207
    %vm3214 = vweird.f32 %v3208
    %vm3215 = vmor %vm3213, %vm3214
    %v3216 = vsel %vm3215, %v3208, %v3212
    %v3217 = vand.u32 2147483647, %v3207
    %vm3218 = vcmp.eq.f32.partialorder %v3217, 8.507059e+37
    %v3219 = vand.u32 %v3207, 2147483648
    %v3220 = vor.u32 1.1754944e-38, %v3219
    %v3221 = vsel %vm3218, %v3220, %v3216
    %v3222 = vmul.f32 1.0, %v3221
    %v3223 = vmul.f32 %v3202, %v3033
    %v3224 = vmul.f32 %v3183, %v3203
    %v3225 = vadd.f32 %v3223, %v3224
    %v3226 = vtanh.pop %v3225
    %v3227 = vmul.f32 %v3222, %v3226
    %v3228 = vxor.u32 %v3161, 2147483648
    %v3229 = vmul.f32 %v3228, 1.442695
    %v3230 = vpow.pop %v3229
    %v3231 = vadd.f32 %v3230, 1.0
    %v3232 = vrcp.pop %v3231
    %v3233 = vmul.f32 %v3231, %v3232
    %v3234 = vsub.f32 1.0, %v3233
    %v3235 = vmul.f32 %v3232, %v3234
    %v3236 = vadd.f32 %v3232, %v3235
    %vm3237 = vweird.f32 %v3231
    %vm3238 = vweird.f32 %v3232
    %vm3239 = vmor %vm3237, %vm3238
    %v3240 = vsel %vm3239, %v3232, %v3236
    %v3241 = vand.u32 2147483647, %v3231
    %vm3242 = vcmp.eq.f32.partialorder %v3241, 8.507059e+37
    %v3243 = vand.u32 %v3231, 2147483648
    %v3244 = vor.u32 1.1754944e-38, %v3243
    %v3245 = vsel %vm3242, %v3244, %v3240
    %v3246 = vmul.f32 1.0, %v3245
    %v3247 = vxor.u32 %v3162, 2147483648
    %v3248 = vmul.f32 %v3247, 1.442695
    %v3249 = vpow.pop %v3248
    %v3250 = vadd.f32 %v3249, 1.0
    %v3251 = vrcp.pop %v3250
    %v3252 = vmul.f32 %v3250, %v3251
    %v3253 = vsub.f32 1.0, %v3252
    %v3254 = vmul.f32 %v3251, %v3253
    %v3255 = vadd.f32 %v3251, %v3254
    %vm3256 = vweird.f32 %v3250
    %vm3257 = vweird.f32 %v3251
    %vm3258 = vmor %vm3256, %vm3257
    %v3259 = vsel %vm3258, %v3251, %v3255
    %v3260 = vand.u32 2147483647, %v3250
    %vm3261 = vcmp.eq.f32.partialorder %v3260, 8.507059e+37
    %v3262 = vand.u32 %v3250, 2147483648
    %v3263 = vor.u32 1.1754944e-38, %v3262
    %v3264 = vsel %vm3261, %v3263, %v3259
    %v3265 = vmul.f32 1.0, %v3264
    %v3266 = vtanh.pop %v3163
    %v3267 = vxor.u32 %v3164, 2147483648
    %v3268 = vmul.f32 %v3267, 1.442695
    %v3269 = vpow.pop %v3268
    %v3270 = vadd.f32 %v3269, 1.0
    %v3271 = vrcp.pop %v3270
    %v3272 = vmul.f32 %v3270, %v3271
    %v3273 = vsub.f32 1.0, %v3272
    %v3274 = vmul.f32 %v3271, %v3273
    %v3275 = vadd.f32 %v3271, %v3274
    %vm3276 = vweird.f32 %v3270
    %vm3277 = vweird.f32 %v3271
    %vm3278 = vmor %vm3276, %vm3277
    %v3279 = vsel %vm3278, %v3271, %v3275
    %v3280 = vand.u32 2147483647, %v3270
    %vm3281 = vcmp.eq.f32.partialorder %v3280, 8.507059e+37
    %v3282 = vand.u32 %v3270, 2147483648
    %v3283 = vor.u32 1.1754944e-38, %v3282
    %v3284 = vsel %vm3281, %v3283, %v3279
    %v3285 = vmul.f32 1.0, %v3284
    %v3286 = vmul.f32 %v3265, %v3040
    %v3287 = vmul.f32 %v3246, %v3266
    %v3288 = vadd.f32 %v3286, %v3287
    %v3289 = vtanh.pop %v3288
    %v3290 = vmul.f32 %v3285, %v3289
    %vm3291 = vcmp.gt.s32.totalorder %v1861, 3
    %vm3292 = vcmp.gt.s32.totalorder %v1861, 4
    %v3293 = vsel %vm3291, 1, 0
    %3294 = vset.pattern.permute.xlu0 0
    %3295 = vperm.xlu0 %3294, %v3293
    %v3296 = vpop.permute.xlu0 %3295
    %vm3297 = vcmp.eq.s32.totalorder %v3296, 1
    %v3298 = vsel %vm3297, %v3227, %v3032
    %v3299 = vsel %vm3297, %v3225, %v3033
    %v3300 = vsel %vm3292, 1, 0
    %3301 = vset.pattern.permute.xlu0 0
    %3302 = vperm.xlu0 %3301, %v3300
    %v3303 = vpop.permute.xlu0 %3302
    %vm3304 = vcmp.eq.s32.totalorder %v3303, 1
    %v3305 = vsel %vm3304, %v3290, %v3039
    %v3306 = vsel %vm3304, %v3288, %v3040
    %s3307 = scalar_lea.vmem [#allocation2], 128
    %v3308 = vld [vmem:[%s3307] sm:$0xff]
    %v3309 = vld [vmem:[%s3307 + $0x8] sm:$0xff]
    %v3310 = vld [vmem:[%s3307 + $0x10] sm:$0xff]
    %v3311 = vld [vmem:[%s3307 + $0x18] sm:$0xff]
    %v3312 = vpack.c.bf16 %v3298, %v3298
    %3313 = vmatpush.bf16.msra.mxu0 %v2054
    %3314 = vmatpush.bf16.msra.mxu0 %v2050
    %3315 = vmatpush.bf16.msra.mxu0 %v2046
    %3316 = vmatpush.bf16.msra.mxu0 %v2042
    %3317 = vmatpush.bf16.msra.mxu0 %v2038
    %3318 = vmatpush.bf16.msra.mxu0 %v2034
    %3319 = vmatpush.bf16.msra.mxu0 %v2030
    %3320 = vmatpush.bf16.msra.mxu0 %v2026
    %3321 = vmatmul.bf16.gmra.mxu0 %v3312
    %v3322 = vpop.f32.mrf.mxu0
    %v3323 = vadd.f32 0.0, %v3322
    %v3324 = vpop.f32.mrf.mxu0
    %3325 = vdwg.mxu0
    %3326 = vmatpush.bf16.msra.mxu0 %v2055
    %3327 = vmatpush.bf16.msra.mxu0 %v2051
    %3328 = vmatpush.bf16.msra.mxu0 %v2047
    %3329 = vmatpush.bf16.msra.mxu0 %v2043
    %3330 = vmatpush.bf16.msra.mxu0 %v2039
    %3331 = vmatpush.bf16.msra.mxu0 %v2035
    %3332 = vmatpush.bf16.msra.mxu0 %v2031
    %3333 = vmatpush.bf16.msra.mxu0 %v2027
    %3334 = vmatmul.bf16.gmra.mxu0 %v3312
    %v3335 = vpop.f32.mrf.mxu0
    %v3336 = vadd.f32 0.0, %v3335
    %v3337 = vpop.f32.mrf.mxu0
    %3338 = vdwg.mxu0
    %3339 = vmatpush.bf16.msra.mxu0 %v2056
    %3340 = vmatpush.bf16.msra.mxu0 %v2052
    %3341 = vmatpush.bf16.msra.mxu0 %v2048
    %3342 = vmatpush.bf16.msra.mxu0 %v2044
    %3343 = vmatpush.bf16.msra.mxu0 %v2040
    %3344 = vmatpush.bf16.msra.mxu0 %v2036
    %3345 = vmatpush.bf16.msra.mxu0 %v2032
    %3346 = vmatpush.bf16.msra.mxu0 %v2028
    %3347 = vmatmul.bf16.gmra.mxu0 %v3312
    %v3348 = vpop.f32.mrf.mxu0
    %v3349 = vadd.f32 0.0, %v3348
    %v3350 = vpop.f32.mrf.mxu0
    %3351 = vdwg.mxu0
    %3352 = vmatpush.bf16.msra.mxu0 %v2057
    %3353 = vmatpush.bf16.msra.mxu0 %v2053
    %3354 = vmatpush.bf16.msra.mxu0 %v2049
    %3355 = vmatpush.bf16.msra.mxu0 %v2045
    %3356 = vmatpush.bf16.msra.mxu0 %v2041
    %3357 = vmatpush.bf16.msra.mxu0 %v2037
    %3358 = vmatpush.bf16.msra.mxu0 %v2033
    %3359 = vmatpush.bf16.msra.mxu0 %v2029
    %3360 = vmatmul.bf16.gmra.mxu0 %v3312
    %v3361 = vpop.f32.mrf.mxu0
    %v3362 = vadd.f32 0.0, %v3361
    %v3363 = vpop.f32.mrf.mxu0
    %3364 = vdwg.mxu0
    %v3365 = vadd.f32 %v3308, %v3323
    %v3366 = vadd.f32 %v3309, %v3336
    %v3367 = vadd.f32 %v3310, %v3349
    %v3368 = vadd.f32 %v3311, %v3362
    %s3369 = scalar_lea.vmem [#allocation3], 96
    %v3370 = vld [vmem:[%s3369] sm:$0xff]
    %v3371 = vld [vmem:[%s3369 + $0x8] sm:$0xff]
    %v3372 = vld [vmem:[%s3369 + $0x10] sm:$0xff]
    %v3373 = vld [vmem:[%s3369 + $0x18] sm:$0xff]
    %v3374 = vpack.c.bf16 %v3305, %v3305
    %3375 = vmatpush.bf16.msra.mxu0 %v2275
    %3376 = vmatpush.bf16.msra.mxu0 %v2271
    %3377 = vmatpush.bf16.msra.mxu0 %v2267
    %3378 = vmatpush.bf16.msra.mxu0 %v2263
    %3379 = vmatpush.bf16.msra.mxu0 %v2259
    %3380 = vmatpush.bf16.msra.mxu0 %v2255
    %3381 = vmatpush.bf16.msra.mxu0 %v2251
    %3382 = vmatpush.bf16.msra.mxu0 %v2247
    %3383 = vmatmul.bf16.gmra.mxu0 %v3374
    %v3384 = vpop.f32.mrf.mxu0
    %v3385 = vadd.f32 0.0, %v3384
    %v3386 = vpop.f32.mrf.mxu0
    %3387 = vdwg.mxu0
    %3388 = vmatpush.bf16.msra.mxu0 %v2276
    %3389 = vmatpush.bf16.msra.mxu0 %v2272
    %3390 = vmatpush.bf16.msra.mxu0 %v2268
    %3391 = vmatpush.bf16.msra.mxu0 %v2264
    %3392 = vmatpush.bf16.msra.mxu0 %v2260
    %3393 = vmatpush.bf16.msra.mxu0 %v2256
    %3394 = vmatpush.bf16.msra.mxu0 %v2252
    %3395 = vmatpush.bf16.msra.mxu0 %v2248
    %3396 = vmatmul.bf16.gmra.mxu0 %v3374
    %v3397 = vpop.f32.mrf.mxu0
    %v3398 = vadd.f32 0.0, %v3397
    %v3399 = vpop.f32.mrf.mxu0
    %3400 = vdwg.mxu0
    %3401 = vmatpush.bf16.msra.mxu0 %v2277
    %3402 = vmatpush.bf16.msra.mxu0 %v2273
    %3403 = vmatpush.bf16.msra.mxu0 %v2269
    %3404 = vmatpush.bf16.msra.mxu0 %v2265
    %3405 = vmatpush.bf16.msra.mxu0 %v2261
    %3406 = vmatpush.bf16.msra.mxu0 %v2257
    %3407 = vmatpush.bf16.msra.mxu0 %v2253
    %3408 = vmatpush.bf16.msra.mxu0 %v2249
    %3409 = vmatmul.bf16.gmra.mxu0 %v3374
    %v3410 = vpop.f32.mrf.mxu0
    %v3411 = vadd.f32 0.0, %v3410
    %v3412 = vpop.f32.mrf.mxu0
    %3413 = vdwg.mxu0
    %3414 = vmatpush.bf16.msra.mxu0 %v2278
    %3415 = vmatpush.bf16.msra.mxu0 %v2274
    %3416 = vmatpush.bf16.msra.mxu0 %v2270
    %3417 = vmatpush.bf16.msra.mxu0 %v2266
    %3418 = vmatpush.bf16.msra.mxu0 %v2262
    %3419 = vmatpush.bf16.msra.mxu0 %v2258
    %3420 = vmatpush.bf16.msra.mxu0 %v2254
    %3421 = vmatpush.bf16.msra.mxu0 %v2250
    %3422 = vmatmul.bf16.gmra.mxu0 %v3374
    %v3423 = vpop.f32.mrf.mxu0
    %v3424 = vadd.f32 0.0, %v3423
    %v3425 = vpop.f32.mrf.mxu0
    %3426 = vdwg.mxu0
    %v3427 = vadd.f32 %v3370, %v3385
    %v3428 = vadd.f32 %v3371, %v3398
    %v3429 = vadd.f32 %v3372, %v3411
    %v3430 = vadd.f32 %v3373, %v3424
    %v3431 = vxor.u32 %v3365, 2147483648
    %v3432 = vmul.f32 %v3431, 1.442695
    %v3433 = vpow.pop %v3432
    %v3434 = vadd.f32 %v3433, 1.0
    %v3435 = vrcp.pop %v3434
    %v3436 = vmul.f32 %v3434, %v3435
    %v3437 = vsub.f32 1.0, %v3436
    %v3438 = vmul.f32 %v3435, %v3437
    %v3439 = vadd.f32 %v3435, %v3438
    %vm3440 = vweird.f32 %v3434
    %vm3441 = vweird.f32 %v3435
    %vm3442 = vmor %vm3440, %vm3441
    %v3443 = vsel %vm3442, %v3435, %v3439
    %v3444 = vand.u32 2147483647, %v3434
    %vm3445 = vcmp.eq.f32.partialorder %v3444, 8.507059e+37
    %v3446 = vand.u32 %v3434, 2147483648
    %v3447 = vor.u32 1.1754944e-38, %v3446
    %v3448 = vsel %vm3445, %v3447, %v3443
    %v3449 = vmul.f32 1.0, %v3448
    %v3450 = vxor.u32 %v3366, 2147483648
    %v3451 = vmul.f32 %v3450, 1.442695
    %v3452 = vpow.pop %v3451
    %v3453 = vadd.f32 %v3452, 1.0
    %v3454 = vrcp.pop %v3453
    %v3455 = vmul.f32 %v3453, %v3454
    %v3456 = vsub.f32 1.0, %v3455
    %v3457 = vmul.f32 %v3454, %v3456
    %v3458 = vadd.f32 %v3454, %v3457
    %vm3459 = vweird.f32 %v3453
    %vm3460 = vweird.f32 %v3454
    %vm3461 = vmor %vm3459, %vm3460
    %v3462 = vsel %vm3461, %v3454, %v3458
    %v3463 = vand.u32 2147483647, %v3453
    %vm3464 = vcmp.eq.f32.partialorder %v3463, 8.507059e+37
    %v3465 = vand.u32 %v3453, 2147483648
    %v3466 = vor.u32 1.1754944e-38, %v3465
    %v3467 = vsel %vm3464, %v3466, %v3462
    %v3468 = vmul.f32 1.0, %v3467
    %v3469 = vtanh.pop %v3367
    %v3470 = vxor.u32 %v3368, 2147483648
    %v3471 = vmul.f32 %v3470, 1.442695
    %v3472 = vpow.pop %v3471
    %v3473 = vadd.f32 %v3472, 1.0
    %v3474 = vrcp.pop %v3473
    %v3475 = vmul.f32 %v3473, %v3474
    %v3476 = vsub.f32 1.0, %v3475
    %v3477 = vmul.f32 %v3474, %v3476
    %v3478 = vadd.f32 %v3474, %v3477
    %vm3479 = vweird.f32 %v3473
    %vm3480 = vweird.f32 %v3474
    %vm3481 = vmor %vm3479, %vm3480
    %v3482 = vsel %vm3481, %v3474, %v3478
    %v3483 = vand.u32 2147483647, %v3473
    %vm3484 = vcmp.eq.f32.partialorder %v3483, 8.507059e+37
    %v3485 = vand.u32 %v3473, 2147483648
    %v3486 = vor.u32 1.1754944e-38, %v3485
    %v3487 = vsel %vm3484, %v3486, %v3482
    %v3488 = vmul.f32 1.0, %v3487
    %v3489 = vmul.f32 %v3468, %v3299
    %v3490 = vmul.f32 %v3449, %v3469
    %v3491 = vadd.f32 %v3489, %v3490
    %v3492 = vtanh.pop %v3491
    %v3493 = vmul.f32 %v3488, %v3492
    %v3494 = vxor.u32 %v3427, 2147483648
    %v3495 = vmul.f32 %v3494, 1.442695
    %v3496 = vpow.pop %v3495
    %v3497 = vadd.f32 %v3496, 1.0
    %v3498 = vrcp.pop %v3497
    %v3499 = vmul.f32 %v3497, %v3498
    %v3500 = vsub.f32 1.0, %v3499
    %v3501 = vmul.f32 %v3498, %v3500
    %v3502 = vadd.f32 %v3498, %v3501
    %vm3503 = vweird.f32 %v3497
    %vm3504 = vweird.f32 %v3498
    %vm3505 = vmor %vm3503, %vm3504
    %v3506 = vsel %vm3505, %v3498, %v3502
    %v3507 = vand.u32 2147483647, %v3497
    %vm3508 = vcmp.eq.f32.partialorder %v3507, 8.507059e+37
    %v3509 = vand.u32 %v3497, 2147483648
    %v3510 = vor.u32 1.1754944e-38, %v3509
    %v3511 = vsel %vm3508, %v3510, %v3506
    %v3512 = vmul.f32 1.0, %v3511
    %v3513 = vxor.u32 %v3428, 2147483648
    %v3514 = vmul.f32 %v3513, 1.442695
    %v3515 = vpow.pop %v3514
    %v3516 = vadd.f32 %v3515, 1.0
    %v3517 = vrcp.pop %v3516
    %v3518 = vmul.f32 %v3516, %v3517
    %v3519 = vsub.f32 1.0, %v3518
    %v3520 = vmul.f32 %v3517, %v3519
    %v3521 = vadd.f32 %v3517, %v3520
    %vm3522 = vweird.f32 %v3516
    %vm3523 = vweird.f32 %v3517
    %vm3524 = vmor %vm3522, %vm3523
    %v3525 = vsel %vm3524, %v3517, %v3521
    %v3526 = vand.u32 2147483647, %v3516
    %vm3527 = vcmp.eq.f32.partialorder %v3526, 8.507059e+37
    %v3528 = vand.u32 %v3516, 2147483648
    %v3529 = vor.u32 1.1754944e-38, %v3528
    %v3530 = vsel %vm3527, %v3529, %v3525
    %v3531 = vmul.f32 1.0, %v3530
    %v3532 = vtanh.pop %v3429
    %v3533 = vxor.u32 %v3430, 2147483648
    %v3534 = vmul.f32 %v3533, 1.442695
    %v3535 = vpow.pop %v3534
    %v3536 = vadd.f32 %v3535, 1.0
    %v3537 = vrcp.pop %v3536
    %v3538 = vmul.f32 %v3536, %v3537
    %v3539 = vsub.f32 1.0, %v3538
    %v3540 = vmul.f32 %v3537, %v3539
    %v3541 = vadd.f32 %v3537, %v3540
    %vm3542 = vweird.f32 %v3536
    %vm3543 = vweird.f32 %v3537
    %vm3544 = vmor %vm3542, %vm3543
    %v3545 = vsel %vm3544, %v3537, %v3541
    %v3546 = vand.u32 2147483647, %v3536
    %vm3547 = vcmp.eq.f32.partialorder %v3546, 8.507059e+37
    %v3548 = vand.u32 %v3536, 2147483648
    %v3549 = vor.u32 1.1754944e-38, %v3548
    %v3550 = vsel %vm3547, %v3549, %v3545
    %v3551 = vmul.f32 1.0, %v3550
    %v3552 = vmul.f32 %v3531, %v3306
    %v3553 = vmul.f32 %v3512, %v3532
    %v3554 = vadd.f32 %v3552, %v3553
    %v3555 = vtanh.pop %v3554
    %v3556 = vmul.f32 %v3551, %v3555
    %v3557 = vsel %vm3304, %v3493, %v3298
    %v3558 = vsel %vm3304, %v3491, %v3299
    %v3559 = vsel %vm3297, %v3556, %v3305
    %v3560 = vsel %vm3297, %v3554, %v3306
    %s3561 = scalar_lea.vmem [#allocation2], 160
    %v3562 = vld [vmem:[%s3561] sm:$0xff]
    %v3563 = vld [vmem:[%s3561 + $0x8] sm:$0xff]
    %v3564 = vld [vmem:[%s3561 + $0x10] sm:$0xff]
    %v3565 = vld [vmem:[%s3561 + $0x18] sm:$0xff]
    %v3566 = vpack.c.bf16 %v3557, %v3557
    %3567 = vmatpush.bf16.msra.mxu0 %v2054
    %3568 = vmatpush.bf16.msra.mxu0 %v2050
    %3569 = vmatpush.bf16.msra.mxu0 %v2046
    %3570 = vmatpush.bf16.msra.mxu0 %v2042
    %3571 = vmatpush.bf16.msra.mxu0 %v2038
    %3572 = vmatpush.bf16.msra.mxu0 %v2034
    %3573 = vmatpush.bf16.msra.mxu0 %v2030
    %3574 = vmatpush.bf16.msra.mxu0 %v2026
    %3575 = vmatmul.bf16.gmra.mxu0 %v3566
    %v3576 = vpop.f32.mrf.mxu0
    %v3577 = vadd.f32 0.0, %v3576
    %v3578 = vpop.f32.mrf.mxu0
    %3579 = vdwg.mxu0
    %3580 = vmatpush.bf16.msra.mxu0 %v2055
    %3581 = vmatpush.bf16.msra.mxu0 %v2051
    %3582 = vmatpush.bf16.msra.mxu0 %v2047
    %3583 = vmatpush.bf16.msra.mxu0 %v2043
    %3584 = vmatpush.bf16.msra.mxu0 %v2039
    %3585 = vmatpush.bf16.msra.mxu0 %v2035
    %3586 = vmatpush.bf16.msra.mxu0 %v2031
    %3587 = vmatpush.bf16.msra.mxu0 %v2027
    %3588 = vmatmul.bf16.gmra.mxu0 %v3566
    %v3589 = vpop.f32.mrf.mxu0
    %v3590 = vadd.f32 0.0, %v3589
    %v3591 = vpop.f32.mrf.mxu0
    %3592 = vdwg.mxu0
    %3593 = vmatpush.bf16.msra.mxu0 %v2056
    %3594 = vmatpush.bf16.msra.mxu0 %v2052
    %3595 = vmatpush.bf16.msra.mxu0 %v2048
    %3596 = vmatpush.bf16.msra.mxu0 %v2044
    %3597 = vmatpush.bf16.msra.mxu0 %v2040
    %3598 = vmatpush.bf16.msra.mxu0 %v2036
    %3599 = vmatpush.bf16.msra.mxu0 %v2032
    %3600 = vmatpush.bf16.msra.mxu0 %v2028
    %3601 = vmatmul.bf16.gmra.mxu0 %v3566
    %v3602 = vpop.f32.mrf.mxu0
    %v3603 = vadd.f32 0.0, %v3602
    %v3604 = vpop.f32.mrf.mxu0
    %3605 = vdwg.mxu0
    %3606 = vmatpush.bf16.msra.mxu0 %v2057
    %3607 = vmatpush.bf16.msra.mxu0 %v2053
    %3608 = vmatpush.bf16.msra.mxu0 %v2049
    %3609 = vmatpush.bf16.msra.mxu0 %v2045
    %3610 = vmatpush.bf16.msra.mxu0 %v2041
    %3611 = vmatpush.bf16.msra.mxu0 %v2037
    %3612 = vmatpush.bf16.msra.mxu0 %v2033
    %3613 = vmatpush.bf16.msra.mxu0 %v2029
    %3614 = vmatmul.bf16.gmra.mxu0 %v3566
    %v3615 = vpop.f32.mrf.mxu0
    %v3616 = vadd.f32 0.0, %v3615
    %v3617 = vpop.f32.mrf.mxu0
    %3618 = vdwg.mxu0
    %v3619 = vadd.f32 %v3562, %v3577
    %v3620 = vadd.f32 %v3563, %v3590
    %v3621 = vadd.f32 %v3564, %v3603
    %v3622 = vadd.f32 %v3565, %v3616
    %s3623 = scalar_lea.vmem [#allocation3], 64
    %v3624 = vld [vmem:[%s3623] sm:$0xff]
    %v3625 = vld [vmem:[%s3623 + $0x8] sm:$0xff]
    %v3626 = vld [vmem:[%s3623 + $0x10] sm:$0xff]
    %v3627 = vld [vmem:[%s3623 + $0x18] sm:$0xff]
    %v3628 = vpack.c.bf16 %v3559, %v3559
    %3629 = vmatpush.bf16.msra.mxu0 %v2275
    %3630 = vmatpush.bf16.msra.mxu0 %v2271
    %3631 = vmatpush.bf16.msra.mxu0 %v2267
    %3632 = vmatpush.bf16.msra.mxu0 %v2263
    %3633 = vmatpush.bf16.msra.mxu0 %v2259
    %3634 = vmatpush.bf16.msra.mxu0 %v2255
    %3635 = vmatpush.bf16.msra.mxu0 %v2251
    %3636 = vmatpush.bf16.msra.mxu0 %v2247
    %3637 = vmatmul.bf16.gmra.mxu0 %v3628
    %v3638 = vpop.f32.mrf.mxu0
    %v3639 = vadd.f32 0.0, %v3638
    %v3640 = vpop.f32.mrf.mxu0
    %3641 = vdwg.mxu0
    %3642 = vmatpush.bf16.msra.mxu0 %v2276
    %3643 = vmatpush.bf16.msra.mxu0 %v2272
    %3644 = vmatpush.bf16.msra.mxu0 %v2268
    %3645 = vmatpush.bf16.msra.mxu0 %v2264
    %3646 = vmatpush.bf16.msra.mxu0 %v2260
    %3647 = vmatpush.bf16.msra.mxu0 %v2256
    %3648 = vmatpush.bf16.msra.mxu0 %v2252
    %3649 = vmatpush.bf16.msra.mxu0 %v2248
    %3650 = vmatmul.bf16.gmra.mxu0 %v3628
    %v3651 = vpop.f32.mrf.mxu0
    %v3652 = vadd.f32 0.0, %v3651
    %v3653 = vpop.f32.mrf.mxu0
    %3654 = vdwg.mxu0
    %3655 = vmatpush.bf16.msra.mxu0 %v2277
    %3656 = vmatpush.bf16.msra.mxu0 %v2273
    %3657 = vmatpush.bf16.msra.mxu0 %v2269
    %3658 = vmatpush.bf16.msra.mxu0 %v2265
    %3659 = vmatpush.bf16.msra.mxu0 %v2261
    %3660 = vmatpush.bf16.msra.mxu0 %v2257
    %3661 = vmatpush.bf16.msra.mxu0 %v2253
    %3662 = vmatpush.bf16.msra.mxu0 %v2249
    %3663 = vmatmul.bf16.gmra.mxu0 %v3628
    %v3664 = vpop.f32.mrf.mxu0
    %v3665 = vadd.f32 0.0, %v3664
    %v3666 = vpop.f32.mrf.mxu0
    %3667 = vdwg.mxu0
    %3668 = vmatpush.bf16.msra.mxu0 %v2278
    %3669 = vmatpush.bf16.msra.mxu0 %v2274
    %3670 = vmatpush.bf16.msra.mxu0 %v2270
    %3671 = vmatpush.bf16.msra.mxu0 %v2266
    %3672 = vmatpush.bf16.msra.mxu0 %v2262
    %3673 = vmatpush.bf16.msra.mxu0 %v2258
    %3674 = vmatpush.bf16.msra.mxu0 %v2254
    %3675 = vmatpush.bf16.msra.mxu0 %v2250
    %3676 = vmatmul.bf16.gmra.mxu0 %v3628
    %v3677 = vpop.f32.mrf.mxu0
    %v3678 = vadd.f32 0.0, %v3677
    %v3679 = vpop.f32.mrf.mxu0
    %3680 = vdwg.mxu0
    %v3681 = vadd.f32 %v3624, %v3639
    %v3682 = vadd.f32 %v3625, %v3652
    %v3683 = vadd.f32 %v3626, %v3665
    %v3684 = vadd.f32 %v3627, %v3678
    %v3685 = vxor.u32 %v3619, 2147483648
    %v3686 = vmul.f32 %v3685, 1.442695
    %v3687 = vpow.pop %v3686
    %v3688 = vadd.f32 %v3687, 1.0
    %v3689 = vrcp.pop %v3688
    %v3690 = vmul.f32 %v3688, %v3689
    %v3691 = vsub.f32 1.0, %v3690
    %v3692 = vmul.f32 %v3689, %v3691
    %v3693 = vadd.f32 %v3689, %v3692
    %vm3694 = vweird.f32 %v3688
    %vm3695 = vweird.f32 %v3689
    %vm3696 = vmor %vm3694, %vm3695
    %v3697 = vsel %vm3696, %v3689, %v3693
    %v3698 = vand.u32 2147483647, %v3688
    %vm3699 = vcmp.eq.f32.partialorder %v3698, 8.507059e+37
    %v3700 = vand.u32 %v3688, 2147483648
    %v3701 = vor.u32 1.1754944e-38, %v3700
    %v3702 = vsel %vm3699, %v3701, %v3697
    %v3703 = vmul.f32 1.0, %v3702
    %v3704 = vxor.u32 %v3620, 2147483648
    %v3705 = vmul.f32 %v3704, 1.442695
    %v3706 = vpow.pop %v3705
    %v3707 = vadd.f32 %v3706, 1.0
    %v3708 = vrcp.pop %v3707
    %v3709 = vmul.f32 %v3707, %v3708
    %v3710 = vsub.f32 1.0, %v3709
    %v3711 = vmul.f32 %v3708, %v3710
    %v3712 = vadd.f32 %v3708, %v3711
    %vm3713 = vweird.f32 %v3707
    %vm3714 = vweird.f32 %v3708
    %vm3715 = vmor %vm3713, %vm3714
    %v3716 = vsel %vm3715, %v3708, %v3712
    %v3717 = vand.u32 2147483647, %v3707
    %vm3718 = vcmp.eq.f32.partialorder %v3717, 8.507059e+37
    %v3719 = vand.u32 %v3707, 2147483648
    %v3720 = vor.u32 1.1754944e-38, %v3719
    %v3721 = vsel %vm3718, %v3720, %v3716
    %v3722 = vmul.f32 1.0, %v3721
    %v3723 = vtanh.pop %v3621
    %v3724 = vxor.u32 %v3622, 2147483648
    %v3725 = vmul.f32 %v3724, 1.442695
    %v3726 = vpow.pop %v3725
    %v3727 = vadd.f32 %v3726, 1.0
    %v3728 = vrcp.pop %v3727
    %v3729 = vmul.f32 %v3727, %v3728
    %v3730 = vsub.f32 1.0, %v3729
    %v3731 = vmul.f32 %v3728, %v3730
    %v3732 = vadd.f32 %v3728, %v3731
    %vm3733 = vweird.f32 %v3727
    %vm3734 = vweird.f32 %v3728
    %vm3735 = vmor %vm3733, %vm3734
    %v3736 = vsel %vm3735, %v3728, %v3732
    %v3737 = vand.u32 2147483647, %v3727
    %vm3738 = vcmp.eq.f32.partialorder %v3737, 8.507059e+37
    %v3739 = vand.u32 %v3727, 2147483648
    %v3740 = vor.u32 1.1754944e-38, %v3739
    %v3741 = vsel %vm3738, %v3740, %v3736
    %v3742 = vmul.f32 1.0, %v3741
    %v3743 = vmul.f32 %v3722, %v3558
    %v3744 = vmul.f32 %v3703, %v3723
    %v3745 = vadd.f32 %v3743, %v3744
    %v3746 = vtanh.pop %v3745
    %v3747 = vmul.f32 %v3742, %v3746
    %v3748 = vxor.u32 %v3681, 2147483648
    %v3749 = vmul.f32 %v3748, 1.442695
    %v3750 = vpow.pop %v3749
    %v3751 = vadd.f32 %v3750, 1.0
    %v3752 = vrcp.pop %v3751
    %v3753 = vmul.f32 %v3751, %v3752
    %v3754 = vsub.f32 1.0, %v3753
    %v3755 = vmul.f32 %v3752, %v3754
    %v3756 = vadd.f32 %v3752, %v3755
    %vm3757 = vweird.f32 %v3751
    %vm3758 = vweird.f32 %v3752
    %vm3759 = vmor %vm3757, %vm3758
    %v3760 = vsel %vm3759, %v3752, %v3756
    %v3761 = vand.u32 2147483647, %v3751
    %vm3762 = vcmp.eq.f32.partialorder %v3761, 8.507059e+37
    %v3763 = vand.u32 %v3751, 2147483648
    %v3764 = vor.u32 1.1754944e-38, %v3763
    %v3765 = vsel %vm3762, %v3764, %v3760
    %v3766 = vmul.f32 1.0, %v3765
    %v3767 = vxor.u32 %v3682, 2147483648
    %v3768 = vmul.f32 %v3767, 1.442695
    %v3769 = vpow.pop %v3768
    %v3770 = vadd.f32 %v3769, 1.0
    %v3771 = vrcp.pop %v3770
    %v3772 = vmul.f32 %v3770, %v3771
    %v3773 = vsub.f32 1.0, %v3772
    %v3774 = vmul.f32 %v3771, %v3773
    %v3775 = vadd.f32 %v3771, %v3774
    %vm3776 = vweird.f32 %v3770
    %vm3777 = vweird.f32 %v3771
    %vm3778 = vmor %vm3776, %vm3777
    %v3779 = vsel %vm3778, %v3771, %v3775
    %v3780 = vand.u32 2147483647, %v3770
    %vm3781 = vcmp.eq.f32.partialorder %v3780, 8.507059e+37
    %v3782 = vand.u32 %v3770, 2147483648
    %v3783 = vor.u32 1.1754944e-38, %v3782
    %v3784 = vsel %vm3781, %v3783, %v3779
    %v3785 = vmul.f32 1.0, %v3784
    %v3786 = vtanh.pop %v3683
    %v3787 = vxor.u32 %v3684, 2147483648
    %v3788 = vmul.f32 %v3787, 1.442695
    %v3789 = vpow.pop %v3788
    %v3790 = vadd.f32 %v3789, 1.0
    %v3791 = vrcp.pop %v3790
    %v3792 = vmul.f32 %v3790, %v3791
    %v3793 = vsub.f32 1.0, %v3792
    %v3794 = vmul.f32 %v3791, %v3793
    %v3795 = vadd.f32 %v3791, %v3794
    %vm3796 = vweird.f32 %v3790
    %vm3797 = vweird.f32 %v3791
    %vm3798 = vmor %vm3796, %vm3797
    %v3799 = vsel %vm3798, %v3791, %v3795
    %v3800 = vand.u32 2147483647, %v3790
    %vm3801 = vcmp.eq.f32.partialorder %v3800, 8.507059e+37
    %v3802 = vand.u32 %v3790, 2147483648
    %v3803 = vor.u32 1.1754944e-38, %v3802
    %v3804 = vsel %vm3801, %v3803, %v3799
    %v3805 = vmul.f32 1.0, %v3804
    %v3806 = vmul.f32 %v3785, %v3560
    %v3807 = vmul.f32 %v3766, %v3786
    %v3808 = vadd.f32 %v3806, %v3807
    %v3809 = vtanh.pop %v3808
    %v3810 = vmul.f32 %v3805, %v3809
    %v3811 = vsel %vm3038, %v3747, %v3557
    %v3812 = vsel %vm3038, %v3745, %v3558
    %v3813 = vsel %vm3031, %v3810, %v3559
    %v3814 = vsel %vm3031, %v3808, %v3560
    %s3815 = scalar_lea.vmem [#allocation2], 192
    %v3816 = vld [vmem:[%s3815] sm:$0xff]
    %v3817 = vld [vmem:[%s3815 + $0x8] sm:$0xff]
    %v3818 = vld [vmem:[%s3815 + $0x10] sm:$0xff]
    %v3819 = vld [vmem:[%s3815 + $0x18] sm:$0xff]
    %v3820 = vpack.c.bf16 %v3811, %v3811
    %3821 = vmatpush.bf16.msra.mxu0 %v2054
    %3822 = vmatpush.bf16.msra.mxu0 %v2050
    %3823 = vmatpush.bf16.msra.mxu0 %v2046
    %3824 = vmatpush.bf16.msra.mxu0 %v2042
    %3825 = vmatpush.bf16.msra.mxu0 %v2038
    %3826 = vmatpush.bf16.msra.mxu0 %v2034
    %3827 = vmatpush.bf16.msra.mxu0 %v2030
    %3828 = vmatpush.bf16.msra.mxu0 %v2026
    %3829 = vmatmul.bf16.gmra.mxu0 %v3820
    %v3830 = vpop.f32.mrf.mxu0
    %v3831 = vadd.f32 0.0, %v3830
    %v3832 = vpop.f32.mrf.mxu0
    %3833 = vdwg.mxu0
    %3834 = vmatpush.bf16.msra.mxu0 %v2055
    %3835 = vmatpush.bf16.msra.mxu0 %v2051
    %3836 = vmatpush.bf16.msra.mxu0 %v2047
    %3837 = vmatpush.bf16.msra.mxu0 %v2043
    %3838 = vmatpush.bf16.msra.mxu0 %v2039
    %3839 = vmatpush.bf16.msra.mxu0 %v2035
    %3840 = vmatpush.bf16.msra.mxu0 %v2031
    %3841 = vmatpush.bf16.msra.mxu0 %v2027
    %3842 = vmatmul.bf16.gmra.mxu0 %v3820
    %v3843 = vpop.f32.mrf.mxu0
    %v3844 = vadd.f32 0.0, %v3843
    %v3845 = vpop.f32.mrf.mxu0
    %3846 = vdwg.mxu0
    %3847 = vmatpush.bf16.msra.mxu0 %v2056
    %3848 = vmatpush.bf16.msra.mxu0 %v2052
    %3849 = vmatpush.bf16.msra.mxu0 %v2048
    %3850 = vmatpush.bf16.msra.mxu0 %v2044
    %3851 = vmatpush.bf16.msra.mxu0 %v2040
    %3852 = vmatpush.bf16.msra.mxu0 %v2036
    %3853 = vmatpush.bf16.msra.mxu0 %v2032
    %3854 = vmatpush.bf16.msra.mxu0 %v2028
    %3855 = vmatmul.bf16.gmra.mxu0 %v3820
    %v3856 = vpop.f32.mrf.mxu0
    %v3857 = vadd.f32 0.0, %v3856
    %v3858 = vpop.f32.mrf.mxu0
    %3859 = vdwg.mxu0
    %3860 = vmatpush.bf16.msra.mxu0 %v2057
    %3861 = vmatpush.bf16.msra.mxu0 %v2053
    %3862 = vmatpush.bf16.msra.mxu0 %v2049
    %3863 = vmatpush.bf16.msra.mxu0 %v2045
    %3864 = vmatpush.bf16.msra.mxu0 %v2041
    %3865 = vmatpush.bf16.msra.mxu0 %v2037
    %3866 = vmatpush.bf16.msra.mxu0 %v2033
    %3867 = vmatpush.bf16.msra.mxu0 %v2029
    %3868 = vmatmul.bf16.gmra.mxu0 %v3820
    %v3869 = vpop.f32.mrf.mxu0
    %v3870 = vadd.f32 0.0, %v3869
    %v3871 = vpop.f32.mrf.mxu0
    %3872 = vdwg.mxu0
    %v3873 = vadd.f32 %v3816, %v3831
    %v3874 = vadd.f32 %v3817, %v3844
    %v3875 = vadd.f32 %v3818, %v3857
    %v3876 = vadd.f32 %v3819, %v3870
    %s3877 = scalar_lea.vmem [#allocation3], 32
    %v3878 = vld [vmem:[%s3877] sm:$0xff]
    %v3879 = vld [vmem:[%s3877 + $0x8] sm:$0xff]
    %v3880 = vld [vmem:[%s3877 + $0x10] sm:$0xff]
    %v3881 = vld [vmem:[%s3877 + $0x18] sm:$0xff]
    %v3882 = vpack.c.bf16 %v3813, %v3813
    %3883 = vmatpush.bf16.msra.mxu0 %v2275
    %3884 = vmatpush.bf16.msra.mxu0 %v2271
    %3885 = vmatpush.bf16.msra.mxu0 %v2267
    %3886 = vmatpush.bf16.msra.mxu0 %v2263
    %3887 = vmatpush.bf16.msra.mxu0 %v2259
    %3888 = vmatpush.bf16.msra.mxu0 %v2255
    %3889 = vmatpush.bf16.msra.mxu0 %v2251
    %3890 = vmatpush.bf16.msra.mxu0 %v2247
    %3891 = vmatmul.bf16.gmra.mxu0 %v3882
    %v3892 = vpop.f32.mrf.mxu0
    %v3893 = vadd.f32 0.0, %v3892
    %v3894 = vpop.f32.mrf.mxu0
    %3895 = vdwg.mxu0
    %3896 = vmatpush.bf16.msra.mxu0 %v2276
    %3897 = vmatpush.bf16.msra.mxu0 %v2272
    %3898 = vmatpush.bf16.msra.mxu0 %v2268
    %3899 = vmatpush.bf16.msra.mxu0 %v2264
    %3900 = vmatpush.bf16.msra.mxu0 %v2260
    %3901 = vmatpush.bf16.msra.mxu0 %v2256
    %3902 = vmatpush.bf16.msra.mxu0 %v2252
    %3903 = vmatpush.bf16.msra.mxu0 %v2248
    %3904 = vmatmul.bf16.gmra.mxu0 %v3882
    %v3905 = vpop.f32.mrf.mxu0
    %v3906 = vadd.f32 0.0, %v3905
    %v3907 = vpop.f32.mrf.mxu0
    %3908 = vdwg.mxu0
    %3909 = vmatpush.bf16.msra.mxu0 %v2277
    %3910 = vmatpush.bf16.msra.mxu0 %v2273
    %3911 = vmatpush.bf16.msra.mxu0 %v2269
    %3912 = vmatpush.bf16.msra.mxu0 %v2265
    %3913 = vmatpush.bf16.msra.mxu0 %v2261
    %3914 = vmatpush.bf16.msra.mxu0 %v2257
    %3915 = vmatpush.bf16.msra.mxu0 %v2253
    %3916 = vmatpush.bf16.msra.mxu0 %v2249
    %3917 = vmatmul.bf16.gmra.mxu0 %v3882
    %v3918 = vpop.f32.mrf.mxu0
    %v3919 = vadd.f32 0.0, %v3918
    %v3920 = vpop.f32.mrf.mxu0
    %3921 = vdwg.mxu0
    %3922 = vmatpush.bf16.msra.mxu0 %v2278
    %3923 = vmatpush.bf16.msra.mxu0 %v2274
    %3924 = vmatpush.bf16.msra.mxu0 %v2270
    %3925 = vmatpush.bf16.msra.mxu0 %v2266
    %3926 = vmatpush.bf16.msra.mxu0 %v2262
    %3927 = vmatpush.bf16.msra.mxu0 %v2258
    %3928 = vmatpush.bf16.msra.mxu0 %v2254
    %3929 = vmatpush.bf16.msra.mxu0 %v2250
    %3930 = vmatmul.bf16.gmra.mxu0 %v3882
    %v3931 = vpop.f32.mrf.mxu0
    %v3932 = vadd.f32 0.0, %v3931
    %v3933 = vpop.f32.mrf.mxu0
    %3934 = vdwg.mxu0
    %v3935 = vadd.f32 %v3878, %v3893
    %v3936 = vadd.f32 %v3879, %v3906
    %v3937 = vadd.f32 %v3880, %v3919
    %v3938 = vadd.f32 %v3881, %v3932
    %v3939 = vxor.u32 %v3873, 2147483648
    %v3940 = vmul.f32 %v3939, 1.442695
    %v3941 = vpow.pop %v3940
    %v3942 = vadd.f32 %v3941, 1.0
    %v3943 = vrcp.pop %v3942
    %v3944 = vmul.f32 %v3942, %v3943
    %v3945 = vsub.f32 1.0, %v3944
    %v3946 = vmul.f32 %v3943, %v3945
    %v3947 = vadd.f32 %v3943, %v3946
    %vm3948 = vweird.f32 %v3942
    %vm3949 = vweird.f32 %v3943
    %vm3950 = vmor %vm3948, %vm3949
    %v3951 = vsel %vm3950, %v3943, %v3947
    %v3952 = vand.u32 2147483647, %v3942
    %vm3953 = vcmp.eq.f32.partialorder %v3952, 8.507059e+37
    %v3954 = vand.u32 %v3942, 2147483648
    %v3955 = vor.u32 1.1754944e-38, %v3954
    %v3956 = vsel %vm3953, %v3955, %v3951
    %v3957 = vmul.f32 1.0, %v3956
    %v3958 = vxor.u32 %v3874, 2147483648
    %v3959 = vmul.f32 %v3958, 1.442695
    %v3960 = vpow.pop %v3959
    %v3961 = vadd.f32 %v3960, 1.0
    %v3962 = vrcp.pop %v3961
    %v3963 = vmul.f32 %v3961, %v3962
    %v3964 = vsub.f32 1.0, %v3963
    %v3965 = vmul.f32 %v3962, %v3964
    %v3966 = vadd.f32 %v3962, %v3965
    %vm3967 = vweird.f32 %v3961
    %vm3968 = vweird.f32 %v3962
    %vm3969 = vmor %vm3967, %vm3968
    %v3970 = vsel %vm3969, %v3962, %v3966
    %v3971 = vand.u32 2147483647, %v3961
    %vm3972 = vcmp.eq.f32.partialorder %v3971, 8.507059e+37
    %v3973 = vand.u32 %v3961, 2147483648
    %v3974 = vor.u32 1.1754944e-38, %v3973
    %v3975 = vsel %vm3972, %v3974, %v3970
    %v3976 = vmul.f32 1.0, %v3975
    %v3977 = vtanh.pop %v3875
    %v3978 = vxor.u32 %v3876, 2147483648
    %v3979 = vmul.f32 %v3978, 1.442695
    %v3980 = vpow.pop %v3979
    %v3981 = vadd.f32 %v3980, 1.0
    %v3982 = vrcp.pop %v3981
    %v3983 = vmul.f32 %v3981, %v3982
    %v3984 = vsub.f32 1.0, %v3983
    %v3985 = vmul.f32 %v3982, %v3984
    %v3986 = vadd.f32 %v3982, %v3985
    %vm3987 = vweird.f32 %v3981
    %vm3988 = vweird.f32 %v3982
    %vm3989 = vmor %vm3987, %vm3988
    %v3990 = vsel %vm3989, %v3982, %v3986
    %v3991 = vand.u32 2147483647, %v3981
    %vm3992 = vcmp.eq.f32.partialorder %v3991, 8.507059e+37
    %v3993 = vand.u32 %v3981, 2147483648
    %v3994 = vor.u32 1.1754944e-38, %v3993
    %v3995 = vsel %vm3992, %v3994, %v3990
    %v3996 = vmul.f32 1.0, %v3995
    %v3997 = vmul.f32 %v3976, %v3812
    %v3998 = vmul.f32 %v3957, %v3977
    %v3999 = vadd.f32 %v3997, %v3998
    %v4000 = vtanh.pop %v3999
    %v4001 = vmul.f32 %v3996, %v4000
    %v4002 = vxor.u32 %v3935, 2147483648
    %v4003 = vmul.f32 %v4002, 1.442695
    %v4004 = vpow.pop %v4003
    %v4005 = vadd.f32 %v4004, 1.0
    %v4006 = vrcp.pop %v4005
    %v4007 = vmul.f32 %v4005, %v4006
    %v4008 = vsub.f32 1.0, %v4007
    %v4009 = vmul.f32 %v4006, %v4008
    %v4010 = vadd.f32 %v4006, %v4009
    %vm4011 = vweird.f32 %v4005
    %vm4012 = vweird.f32 %v4006
    %vm4013 = vmor %vm4011, %vm4012
    %v4014 = vsel %vm4013, %v4006, %v4010
    %v4015 = vand.u32 2147483647, %v4005
    %vm4016 = vcmp.eq.f32.partialorder %v4015, 8.507059e+37
    %v4017 = vand.u32 %v4005, 2147483648
    %v4018 = vor.u32 1.1754944e-38, %v4017
    %v4019 = vsel %vm4016, %v4018, %v4014
    %v4020 = vmul.f32 1.0, %v4019
    %v4021 = vxor.u32 %v3936, 2147483648
    %v4022 = vmul.f32 %v4021, 1.442695
    %v4023 = vpow.pop %v4022
    %v4024 = vadd.f32 %v4023, 1.0
    %v4025 = vrcp.pop %v4024
    %v4026 = vmul.f32 %v4024, %v4025
    %v4027 = vsub.f32 1.0, %v4026
    %v4028 = vmul.f32 %v4025, %v4027
    %v4029 = vadd.f32 %v4025, %v4028
    %vm4030 = vweird.f32 %v4024
    %vm4031 = vweird.f32 %v4025
    %vm4032 = vmor %vm4030, %vm4031
    %v4033 = vsel %vm4032, %v4025, %v4029
    %v4034 = vand.u32 2147483647, %v4024
    %vm4035 = vcmp.eq.f32.partialorder %v4034, 8.507059e+37
    %v4036 = vand.u32 %v4024, 2147483648
    %v4037 = vor.u32 1.1754944e-38, %v4036
    %v4038 = vsel %vm4035, %v4037, %v4033
    %v4039 = vmul.f32 1.0, %v4038
    %v4040 = vtanh.pop %v3937
    %v4041 = vxor.u32 %v3938, 2147483648
    %v4042 = vmul.f32 %v4041, 1.442695
    %v4043 = vpow.pop %v4042
    %v4044 = vadd.f32 %v4043, 1.0
    %v4045 = vrcp.pop %v4044
    %v4046 = vmul.f32 %v4044, %v4045
    %v4047 = vsub.f32 1.0, %v4046
    %v4048 = vmul.f32 %v4045, %v4047
    %v4049 = vadd.f32 %v4045, %v4048
    %vm4050 = vweird.f32 %v4044
    %vm4051 = vweird.f32 %v4045
    %vm4052 = vmor %vm4050, %vm4051
    %v4053 = vsel %vm4052, %v4045, %v4049
    %v4054 = vand.u32 2147483647, %v4044
    %vm4055 = vcmp.eq.f32.partialorder %v4054, 8.507059e+37
    %v4056 = vand.u32 %v4044, 2147483648
    %v4057 = vor.u32 1.1754944e-38, %v4056
    %v4058 = vsel %vm4055, %v4057, %v4053
    %v4059 = vmul.f32 1.0, %v4058
    %v4060 = vmul.f32 %v4039, %v3814
    %v4061 = vmul.f32 %v4020, %v4040
    %v4062 = vadd.f32 %v4060, %v4061
    %v4063 = vtanh.pop %v4062
    %v4064 = vmul.f32 %v4059, %v4063
    %v4065 = vsel %vm2772, %v4001, %v3811
    %v4066 = vsel %vm2772, %v3999, %v3812
    %v4067 = vsel %vm2765, %v4064, %v3813
    %v4068 = vsel %vm2765, %v4062, %v3814
    %s4069 = scalar_lea.vmem [#allocation2], 224
    %v4070 = vld [vmem:[%s4069] sm:$0xff]
    %v4071 = vld [vmem:[%s4069 + $0x8] sm:$0xff]
    %v4072 = vld [vmem:[%s4069 + $0x10] sm:$0xff]
    %v4073 = vld [vmem:[%s4069 + $0x18] sm:$0xff]
    %v4074 = vpack.c.bf16 %v4065, %v4065
    %4075 = vmatpush.bf16.msra.mxu0 %v2054
    %4076 = vmatpush.bf16.msra.mxu0 %v2050
    %4077 = vmatpush.bf16.msra.mxu0 %v2046
    %4078 = vmatpush.bf16.msra.mxu0 %v2042
    %4079 = vmatpush.bf16.msra.mxu0 %v2038
    %4080 = vmatpush.bf16.msra.mxu0 %v2034
    %4081 = vmatpush.bf16.msra.mxu0 %v2030
    %4082 = vmatpush.bf16.msra.mxu0 %v2026
    %4083 = vmatmul.bf16.gmra.mxu0 %v4074
    %v4084 = vpop.f32.mrf.mxu0
    %v4085 = vadd.f32 0.0, %v4084
    %v4086 = vpop.f32.mrf.mxu0
    %4087 = vdwg.mxu0
    %4088 = vmatpush.bf16.msra.mxu0 %v2055
    %4089 = vmatpush.bf16.msra.mxu0 %v2051
    %4090 = vmatpush.bf16.msra.mxu0 %v2047
    %4091 = vmatpush.bf16.msra.mxu0 %v2043
    %4092 = vmatpush.bf16.msra.mxu0 %v2039
    %4093 = vmatpush.bf16.msra.mxu0 %v2035
    %4094 = vmatpush.bf16.msra.mxu0 %v2031
    %4095 = vmatpush.bf16.msra.mxu0 %v2027
    %4096 = vmatmul.bf16.gmra.mxu0 %v4074
    %v4097 = vpop.f32.mrf.mxu0
    %v4098 = vadd.f32 0.0, %v4097
    %v4099 = vpop.f32.mrf.mxu0
    %4100 = vdwg.mxu0
    %4101 = vmatpush.bf16.msra.mxu0 %v2056
    %4102 = vmatpush.bf16.msra.mxu0 %v2052
    %4103 = vmatpush.bf16.msra.mxu0 %v2048
    %4104 = vmatpush.bf16.msra.mxu0 %v2044
    %4105 = vmatpush.bf16.msra.mxu0 %v2040
    %4106 = vmatpush.bf16.msra.mxu0 %v2036
    %4107 = vmatpush.bf16.msra.mxu0 %v2032
    %4108 = vmatpush.bf16.msra.mxu0 %v2028
    %4109 = vmatmul.bf16.gmra.mxu0 %v4074
    %v4110 = vpop.f32.mrf.mxu0
    %v4111 = vadd.f32 0.0, %v4110
    %v4112 = vpop.f32.mrf.mxu0
    %4113 = vdwg.mxu0
    %4114 = vmatpush.bf16.msra.mxu0 %v2057
    %4115 = vmatpush.bf16.msra.mxu0 %v2053
    %4116 = vmatpush.bf16.msra.mxu0 %v2049
    %4117 = vmatpush.bf16.msra.mxu0 %v2045
    %4118 = vmatpush.bf16.msra.mxu0 %v2041
    %4119 = vmatpush.bf16.msra.mxu0 %v2037
    %4120 = vmatpush.bf16.msra.mxu0 %v2033
    %4121 = vmatpush.bf16.msra.mxu0 %v2029
    %4122 = vmatmul.bf16.gmra.mxu0 %v4074
    %v4123 = vpop.f32.mrf.mxu0
    %v4124 = vadd.f32 0.0, %v4123
    %v4125 = vpop.f32.mrf.mxu0
    %4126 = vdwg.mxu0
    %v4127 = vadd.f32 %v4070, %v4085
    %v4128 = vadd.f32 %v4071, %v4098
    %v4129 = vadd.f32 %v4072, %v4111
    %v4130 = vadd.f32 %v4073, %v4124
    %v4131 = vld [vmem:[#allocation3] sm:$0xff]
    %v4132 = vld [vmem:[#allocation3 + $0x8] sm:$0xff]
    %v4133 = vld [vmem:[#allocation3 + $0x10] sm:$0xff]
    %v4134 = vld [vmem:[#allocation3 + $0x18] sm:$0xff]
    %v4135 = vpack.c.bf16 %v4067, %v4067
    %4136 = vmatpush.bf16.msra.mxu0 %v2275
    %4137 = vmatpush.bf16.msra.mxu0 %v2271
    %4138 = vmatpush.bf16.msra.mxu0 %v2267
    %4139 = vmatpush.bf16.msra.mxu0 %v2263
    %4140 = vmatpush.bf16.msra.mxu0 %v2259
    %4141 = vmatpush.bf16.msra.mxu0 %v2255
    %4142 = vmatpush.bf16.msra.mxu0 %v2251
    %4143 = vmatpush.bf16.msra.mxu0 %v2247
    %4144 = vmatmul.bf16.gmra.mxu0 %v4135
    %v4145 = vpop.f32.mrf.mxu0
    %v4146 = vadd.f32 0.0, %v4145
    %v4147 = vpop.f32.mrf.mxu0
    %4148 = vdwg.mxu0
    %4149 = vmatpush.bf16.msra.mxu0 %v2276
    %4150 = vmatpush.bf16.msra.mxu0 %v2272
    %4151 = vmatpush.bf16.msra.mxu0 %v2268
    %4152 = vmatpush.bf16.msra.mxu0 %v2264
    %4153 = vmatpush.bf16.msra.mxu0 %v2260
    %4154 = vmatpush.bf16.msra.mxu0 %v2256
    %4155 = vmatpush.bf16.msra.mxu0 %v2252
    %4156 = vmatpush.bf16.msra.mxu0 %v2248
    %4157 = vmatmul.bf16.gmra.mxu0 %v4135
    %v4158 = vpop.f32.mrf.mxu0
    %v4159 = vadd.f32 0.0, %v4158
    %v4160 = vpop.f32.mrf.mxu0
    %4161 = vdwg.mxu0
    %4162 = vmatpush.bf16.msra.mxu0 %v2277
    %4163 = vmatpush.bf16.msra.mxu0 %v2273
    %4164 = vmatpush.bf16.msra.mxu0 %v2269
    %4165 = vmatpush.bf16.msra.mxu0 %v2265
    %4166 = vmatpush.bf16.msra.mxu0 %v2261
    %4167 = vmatpush.bf16.msra.mxu0 %v2257
    %4168 = vmatpush.bf16.msra.mxu0 %v2253
    %4169 = vmatpush.bf16.msra.mxu0 %v2249
    %4170 = vmatmul.bf16.gmra.mxu0 %v4135
    %v4171 = vpop.f32.mrf.mxu0
    %v4172 = vadd.f32 0.0, %v4171
    %v4173 = vpop.f32.mrf.mxu0
    %4174 = vdwg.mxu0
    %4175 = vmatpush.bf16.msra.mxu0 %v2278
    %4176 = vmatpush.bf16.msra.mxu0 %v2274
    %4177 = vmatpush.bf16.msra.mxu0 %v2270
    %4178 = vmatpush.bf16.msra.mxu0 %v2266
    %4179 = vmatpush.bf16.msra.mxu0 %v2262
    %4180 = vmatpush.bf16.msra.mxu0 %v2258
    %4181 = vmatpush.bf16.msra.mxu0 %v2254
    %4182 = vmatpush.bf16.msra.mxu0 %v2250
    %4183 = vmatmul.bf16.gmra.mxu0 %v4135
    %v4184 = vpop.f32.mrf.mxu0
    %v4185 = vadd.f32 0.0, %v4184
    %v4186 = vpop.f32.mrf.mxu0
    %4187 = vdwg.mxu0
    %v4188 = vadd.f32 %v4131, %v4146
    %v4189 = vadd.f32 %v4132, %v4159
    %v4190 = vadd.f32 %v4133, %v4172
    %v4191 = vadd.f32 %v4134, %v4185
    %v4192 = vxor.u32 %v4127, 2147483648
    %v4193 = vmul.f32 %v4192, 1.442695
    %v4194 = vpow.pop %v4193
    %v4195 = vadd.f32 %v4194, 1.0
    %v4196 = vrcp.pop %v4195
    %v4197 = vmul.f32 %v4195, %v4196
    %v4198 = vsub.f32 1.0, %v4197
    %v4199 = vmul.f32 %v4196, %v4198
    %v4200 = vadd.f32 %v4196, %v4199
    %vm4201 = vweird.f32 %v4195
    %vm4202 = vweird.f32 %v4196
    %vm4203 = vmor %vm4201, %vm4202
    %v4204 = vsel %vm4203, %v4196, %v4200
    %v4205 = vand.u32 2147483647, %v4195
    %vm4206 = vcmp.eq.f32.partialorder %v4205, 8.507059e+37
    %v4207 = vand.u32 %v4195, 2147483648
    %v4208 = vor.u32 1.1754944e-38, %v4207
    %v4209 = vsel %vm4206, %v4208, %v4204
    %v4210 = vmul.f32 1.0, %v4209
    %v4211 = vxor.u32 %v4128, 2147483648
    %v4212 = vmul.f32 %v4211, 1.442695
    %v4213 = vpow.pop %v4212
    %v4214 = vadd.f32 %v4213, 1.0
    %v4215 = vrcp.pop %v4214
    %v4216 = vmul.f32 %v4214, %v4215
    %v4217 = vsub.f32 1.0, %v4216
    %v4218 = vmul.f32 %v4215, %v4217
    %v4219 = vadd.f32 %v4215, %v4218
    %vm4220 = vweird.f32 %v4214
    %vm4221 = vweird.f32 %v4215
    %vm4222 = vmor %vm4220, %vm4221
    %v4223 = vsel %vm4222, %v4215, %v4219
    %v4224 = vand.u32 2147483647, %v4214
    %vm4225 = vcmp.eq.f32.partialorder %v4224, 8.507059e+37
    %v4226 = vand.u32 %v4214, 2147483648
    %v4227 = vor.u32 1.1754944e-38, %v4226
    %v4228 = vsel %vm4225, %v4227, %v4223
    %v4229 = vmul.f32 1.0, %v4228
    %v4230 = vtanh.pop %v4129
    %v4231 = vxor.u32 %v4130, 2147483648
    %v4232 = vmul.f32 %v4231, 1.442695
    %v4233 = vpow.pop %v4232
    %v4234 = vadd.f32 %v4233, 1.0
    %v4235 = vrcp.pop %v4234
    %v4236 = vmul.f32 %v4234, %v4235
    %v4237 = vsub.f32 1.0, %v4236
    %v4238 = vmul.f32 %v4235, %v4237
    %v4239 = vadd.f32 %v4235, %v4238
    %vm4240 = vweird.f32 %v4234
    %vm4241 = vweird.f32 %v4235
    %vm4242 = vmor %vm4240, %vm4241
    %v4243 = vsel %vm4242, %v4235, %v4239
    %v4244 = vand.u32 2147483647, %v4234
    %vm4245 = vcmp.eq.f32.partialorder %v4244, 8.507059e+37
    %v4246 = vand.u32 %v4234, 2147483648
    %v4247 = vor.u32 1.1754944e-38, %v4246
    %v4248 = vsel %vm4245, %v4247, %v4243
    %v4249 = vmul.f32 1.0, %v4248
    %v4250 = vmul.f32 %v4229, %v4066
    %v4251 = vmul.f32 %v4210, %v4230
    %v4252 = vadd.f32 %v4250, %v4251
    %v4253 = vtanh.pop %v4252
    %v4254 = vmul.f32 %v4249, %v4253
    %v4255 = vxor.u32 %v4188, 2147483648
    %v4256 = vmul.f32 %v4255, 1.442695
    %v4257 = vpow.pop %v4256
    %v4258 = vadd.f32 %v4257, 1.0
    %v4259 = vrcp.pop %v4258
    %v4260 = vmul.f32 %v4258, %v4259
    %v4261 = vsub.f32 1.0, %v4260
    %v4262 = vmul.f32 %v4259, %v4261
    %v4263 = vadd.f32 %v4259, %v4262
    %vm4264 = vweird.f32 %v4258
    %vm4265 = vweird.f32 %v4259
    %vm4266 = vmor %vm4264, %vm4265
    %v4267 = vsel %vm4266, %v4259, %v4263
    %v4268 = vand.u32 2147483647, %v4258
    %vm4269 = vcmp.eq.f32.partialorder %v4268, 8.507059e+37
    %v4270 = vand.u32 %v4258, 2147483648
    %v4271 = vor.u32 1.1754944e-38, %v4270
    %v4272 = vsel %vm4269, %v4271, %v4267
    %v4273 = vmul.f32 1.0, %v4272
    %v4274 = vxor.u32 %v4189, 2147483648
    %v4275 = vmul.f32 %v4274, 1.442695
    %v4276 = vpow.pop %v4275
    %v4277 = vadd.f32 %v4276, 1.0
    %v4278 = vrcp.pop %v4277
    %v4279 = vmul.f32 %v4277, %v4278
    %v4280 = vsub.f32 1.0, %v4279
    %v4281 = vmul.f32 %v4278, %v4280
    %v4282 = vadd.f32 %v4278, %v4281
    %vm4283 = vweird.f32 %v4277
    %vm4284 = vweird.f32 %v4278
    %vm4285 = vmor %vm4283, %vm4284
    %v4286 = vsel %vm4285, %v4278, %v4282
    %v4287 = vand.u32 2147483647, %v4277
    %vm4288 = vcmp.eq.f32.partialorder %v4287, 8.507059e+37
    %v4289 = vand.u32 %v4277, 2147483648
    %v4290 = vor.u32 1.1754944e-38, %v4289
    %v4291 = vsel %vm4288, %v4290, %v4286
    %v4292 = vmul.f32 1.0, %v4291
    %v4293 = vtanh.pop %v4190
    %v4294 = vxor.u32 %v4191, 2147483648
    %v4295 = vmul.f32 %v4294, 1.442695
    %v4296 = vpow.pop %v4295
    %v4297 = vadd.f32 %v4296, 1.0
    %v4298 = vrcp.pop %v4297
    %v4299 = vmul.f32 %v4297, %v4298
    %v4300 = vsub.f32 1.0, %v4299
    %v4301 = vmul.f32 %v4298, %v4300
    %v4302 = vadd.f32 %v4298, %v4301
    %vm4303 = vweird.f32 %v4297
    %vm4304 = vweird.f32 %v4298
    %vm4305 = vmor %vm4303, %vm4304
    %v4306 = vsel %vm4305, %v4298, %v4302
    %v4307 = vand.u32 2147483647, %v4297
    %vm4308 = vcmp.eq.f32.partialorder %v4307, 8.507059e+37
    %v4309 = vand.u32 %v4297, 2147483648
    %v4310 = vor.u32 1.1754944e-38, %v4309
    %v4311 = vsel %vm4308, %v4310, %v4306
    %v4312 = vmul.f32 1.0, %v4311
    %v4313 = vmul.f32 %v4292, %v4068
    %v4314 = vmul.f32 %v4273, %v4293
    %v4315 = vadd.f32 %v4313, %v4314
    %v4316 = vtanh.pop %v4315
    %v4317 = vmul.f32 %v4312, %v4316
    %v4318 = vsel %vm2506, %v4254, %v4065
    %v4319 = vsel %vm2499, %v4317, %v4067
    %v4320 = vpack.c.bf16 %v4318, %v4318
    %v4321 = vld [vmem:[%s6] sm:$0xf]
    %v4322 = vld [vmem:[%s6 + $0x4] sm:$0xf]
    %v4323 = vld [vmem:[%s6 + $0x8] sm:$0xf]
    %v4324 = vld [vmem:[%s6 + $0xc] sm:$0xf]
    %v4325 = vld [vmem:[%s6 + $0x10] sm:$0xf]
    %v4326 = vld [vmem:[%s6 + $0x14] sm:$0xf]
    %v4327 = vld [vmem:[%s6 + $0x18] sm:$0xf]
    %v4328 = vld [vmem:[%s6 + $0x1c] sm:$0xf]
    %v4329 = vld [vmem:[%s6 + $0x20] sm:$0xf]
    %v4330 = vld [vmem:[%s6 + $0x24] sm:$0xf]
    %v4331 = vld [vmem:[%s6 + $0x28] sm:$0xf]
    %v4332 = vld [vmem:[%s6 + $0x2c] sm:$0xf]
    %v4333 = vld [vmem:[%s6 + $0x30] sm:$0xf]
    %v4334 = vld [vmem:[%s6 + $0x34] sm:$0xf]
    %v4335 = vld [vmem:[%s6 + $0x38] sm:$0xf]
    %v4336 = vld [vmem:[%s6 + $0x3c] sm:$0xf]
    %v4337 = vpack.c.bf16 %v4319, %v4319
    %v4338 = vld [vmem:[%s7] sm:$0xf]
    %v4339 = vld [vmem:[%s7 + $0x4] sm:$0xf]
    %v4340 = vld [vmem:[%s7 + $0x8] sm:$0xf]
    %v4341 = vld [vmem:[%s7 + $0xc] sm:$0xf]
    %v4342 = vld [vmem:[%s7 + $0x10] sm:$0xf]
    %v4343 = vld [vmem:[%s7 + $0x14] sm:$0xf]
    %v4344 = vld [vmem:[%s7 + $0x18] sm:$0xf]
    %v4345 = vld [vmem:[%s7 + $0x1c] sm:$0xf]
    %v4346 = vld [vmem:[%s7 + $0x20] sm:$0xf]
    %v4347 = vld [vmem:[%s7 + $0x24] sm:$0xf]
    %v4348 = vld [vmem:[%s7 + $0x28] sm:$0xf]
    %v4349 = vld [vmem:[%s7 + $0x2c] sm:$0xf]
    %v4350 = vld [vmem:[%s7 + $0x30] sm:$0xf]
    %v4351 = vld [vmem:[%s7 + $0x34] sm:$0xf]
    %v4352 = vld [vmem:[%s7 + $0x38] sm:$0xf]
    %v4353 = vld [vmem:[%s7 + $0x3c] sm:$0xf]
    %v4370 = vunpack.c.l.b16 %v4338
    %v4371 = vunpack.c.l.b16 %v4339
    %v4372 = vunpack.c.l.b16 %v4340
    %v4373 = vunpack.c.l.b16 %v4341
    %v4374 = vunpack.c.l.b16 %v4342
    %v4375 = vunpack.c.l.b16 %v4343
    %v4376 = vunpack.c.l.b16 %v4344
    %v4377 = vunpack.c.l.b16 %v4345
    %v4378 = vunpack.c.l.b16 %v4346
    %v4379 = vunpack.c.l.b16 %v4347
    %v4380 = vunpack.c.l.b16 %v4348
    %v4381 = vunpack.c.l.b16 %v4349
    %v4382 = vunpack.c.l.b16 %v4350
    %v4383 = vunpack.c.l.b16 %v4351
    %v4384 = vunpack.c.l.b16 %v4352
    %v4385 = vunpack.c.l.b16 %v4353
    %v4386 = vpack.c.b16 %v4371, %v4370
    %v4387 = vpack.c.b16 %v4373, %v4372
    %v4388 = vpack.c.b16 %v4375, %v4374
    %v4389 = vpack.c.b16 %v4377, %v4376
    %v4390 = vpack.c.b16 %v4379, %v4378
    %v4391 = vpack.c.b16 %v4381, %v4380
    %v4392 = vpack.c.b16 %v4383, %v4382
    %v4393 = vpack.c.b16 %v4385, %v4384
    %4402 = vmatpush.bf16.msra.mxu0 %v4393
    %4403 = vmatpush.bf16.msra.mxu0 %v4392
    %4404 = vmatpush.bf16.msra.mxu0 %v4391
    %4405 = vmatpush.bf16.msra.mxu0 %v4390
    %4406 = vmatpush.bf16.msra.mxu0 %v4389
    %4407 = vmatpush.bf16.msra.mxu0 %v4388
    %4408 = vmatpush.bf16.msra.mxu0 %v4387
    %4409 = vmatpush.bf16.msra.mxu0 %v4386
    %4410 = vmatmul.bf16.gmra.mxu0 %v4337
    %v4411 = vpop.f32.mrf.mxu0
    %v4412 = vadd.f32 0.0, %v4411
    %v4413 = vpop.f32.mrf.mxu0
    %4414 = vdwg.mxu0
    %v4431 = vunpack.c.l.b16 %v4321
    %v4432 = vunpack.c.l.b16 %v4322
    %v4433 = vunpack.c.l.b16 %v4323
    %v4434 = vunpack.c.l.b16 %v4324
    %v4435 = vunpack.c.l.b16 %v4325
    %v4436 = vunpack.c.l.b16 %v4326
    %v4437 = vunpack.c.l.b16 %v4327
    %v4438 = vunpack.c.l.b16 %v4328
    %v4439 = vunpack.c.l.b16 %v4329
    %v4440 = vunpack.c.l.b16 %v4330
    %v4441 = vunpack.c.l.b16 %v4331
    %v4442 = vunpack.c.l.b16 %v4332
    %v4443 = vunpack.c.l.b16 %v4333
    %v4444 = vunpack.c.l.b16 %v4334
    %v4445 = vunpack.c.l.b16 %v4335
    %v4446 = vunpack.c.l.b16 %v4336
    %v4447 = vpack.c.b16 %v4432, %v4431
    %v4448 = vpack.c.b16 %v4434, %v4433
    %v4449 = vpack.c.b16 %v4436, %v4435
    %v4450 = vpack.c.b16 %v4438, %v4437
    %v4451 = vpack.c.b16 %v4440, %v4439
    %v4452 = vpack.c.b16 %v4442, %v4441
    %v4453 = vpack.c.b16 %v4444, %v4443
    %v4454 = vpack.c.b16 %v4446, %v4445
    %4463 = vmatpush.bf16.msra.mxu0 %v4454
    %4464 = vmatpush.bf16.msra.mxu0 %v4453
    %4465 = vmatpush.bf16.msra.mxu0 %v4452
    %4466 = vmatpush.bf16.msra.mxu0 %v4451
    %4467 = vmatpush.bf16.msra.mxu0 %v4450
    %4468 = vmatpush.bf16.msra.mxu0 %v4449
    %4469 = vmatpush.bf16.msra.mxu0 %v4448
    %4470 = vmatpush.bf16.msra.mxu0 %v4447
    %4471 = vmatmul.bf16.gmra.mxu0 %v4320
    %v4472 = vpop.f32.mrf.mxu0
    %v4473 = vadd.f32 %v4412, %v4472
    %v4474 = vpop.f32.mrf.mxu0
    %4475 = vdwg.mxu0
    %v4476 = vld [vmem:[%s8] sm:$0x1]
    %v4478 = vperm.slane %v4476, 0
    %v4480 = vadd.f32 %v4473, %v4478
    %4481 = vst [vmem:[%s9] sm:$0xff] %v4480
    // Predicated region
    $region46: #{bilstm_forward.1} parent=1 // pred_check
      _
    $region47: #{bilstm_forward.1} parent=1 // pred_check_branch
      %4483 = sbr.rel (0) target = $region49
    $region48: #{bilstm_forward.1} parent=1 // pred_region
      _
    $region49: #{bilstm_forward.1} parent=1 // pred_fallthru
      _
    // Predicated region
    $region50: #{bilstm_forward.1} parent=1 // pred_check
      _
    $region51: #{bilstm_forward.1} parent=1 // pred_check_branch
      %4485 = sbr.rel (0) target = $region53
    $region52: #{bilstm_forward.1} parent=1 // pred_region
      _
    $region53: #{bilstm_forward.1} parent=1 // pred_fallthru
      _
    %4486 = vsyncpa [#allocation5], 1
    %4487 = vsyncpa [#allocation7], 1

</llo_original>
